<compile_context>
chip_gen: v7x
topology: tpu7x:2x2x1
jax: 0.10.0
libtpu: 0.0.40
codegen_flags: <defaults>
</compile_context>

<pallas_src>
import math

import jax
import jax.numpy as jnp
import numpy as np
from jax import lax
from jax.experimental import pallas as pl
from jax.experimental.pallas import tpu as pltpu

N_UP = 5  # the Decoder has 5 ConvTranspose2d layers + a 1x1 head


# --------------------------------------------------------------------------------------
# Phase-major block-permutation shifts.
#   level 1   : columns are row-major over the base (r, r) grid
#   level n+1 : [phase(0,0) | phase(0,1) | phase(1,0) | phase(1,1)] lane blocks, each block
#               ordered at level n; full-res pixel (2y+py, 2x+px) lives in block (py, px).
# `leaf` is the globally pre-shifted copy of `a` (one full-width lane shift + one periodic
# edge mask).  The recursion only permutes lane blocks and reads its level-1 leaves from
# `leaf` — no sub-vreg per-leaf shift/mask work (review item #3).
# --------------------------------------------------------------------------------------
def _pshift_x(a, leaf, level):
    """value at (y, x+1); zero past the right edge.  Phase-major in, phase-major out."""
    if level == 1:
        return leaf
    q = a.shape[1] // 4
    return jnp.concatenate([
        a[:, q:2 * q],
        _pshift_x(a[:, :q], leaf[:, :q], level - 1),
        a[:, 3 * q:],
        _pshift_x(a[:, 2 * q:3 * q], leaf[:, 2 * q:3 * q], level - 1),
    ], axis=1)


def _pshift_y(a, leaf, level):
    """value at (y+1, x); zero past the bottom edge."""
    if level == 1:
        return leaf
    q = a.shape[1] // 4
    return jnp.concatenate([
        a[:, 2 * q:3 * q],
        a[:, 3 * q:],
        _pshift_y(a[:, :q], leaf[:, :q], level - 1),
        _pshift_y(a[:, q:2 * q], leaf[:, q:2 * q], level - 1),
    ], axis=1)


def _make_decoder_kernel(r, couts, cpads):
    """Fused 5x ConvTranspose2d(k3,s2,p1,op1) with the 1x1 head folded into layer 5."""
    n_up = len(couts)
    lmax = r * r * 4 ** (n_up - 1)          # column count of the (largest) layer-5 input

    def kernel(x_ref, *rest):
        o_ref = rest[-1]
        w_refs = rest[:-1]

        # Hoisted full-width periodic leaf masks + ones row; sliced (prefix) per layer.
        col = lax.broadcasted_iota(jnp.int32, (1, lmax), 1)
        mask_x_f = (col % r) == (r - 1)                 # right edge of a base row
        mask_y_f = (col % (r * r)) >= (r * (r - 1))     # bottom row of a base block
        ones_f = jnp.ones((1, lmax), jnp.float32)

        a = x_ref[0].astype(jnp.float32)                # (C0, r*r), row-major columns
        for li in range(n_up):
            level = li + 1
            L = a.shape[1]
            mx, my = mask_x_f[:, :L], mask_y_f[:, :L]

            # Leaf-level shifts of the WHOLE array: one lane shift + one select each.
            def leaf_x(v):
                if r == 1:
                    return jnp.zeros_like(v)
                s = jnp.concatenate(
                    [v[:, 1:], jnp.zeros((v.shape[0], 1), v.dtype)], axis=1)
                return jnp.where(mx, 0.0, s)

            def leaf_y(v):
                if r == 1:
                    return jnp.zeros_like(v)
                s = jnp.concatenate(
                    [v[:, r:], jnp.zeros((v.shape[0], r), v.dtype)], axis=1)
                return jnp.where(my, 0.0, s)

            s01 = _pshift_x(a, leaf_x(a), level)        # input at (y,   x+1)
            s10 = _pshift_y(a, leaf_y(a), level)        # input at (y+1, x  )
            s11 = _pshift_x(s10, leaf_x(s10), level)    # input at (y+1, x+1)

            # ONE fused MXU matmul for all 4 output phases (+ bias via the ones row):
            #   (4*Cout_pad, 4*Cin+1) @ (4*Cin+1, L)
            rhs = jnp.concatenate([a, s01, s10, s11, ones_f[:, :L]], axis=0)
            res = jnp.dot(w_refs[li][...], rhs, preferred_element_type=jnp.float32)

            co, cp = couts[li], cpads[li]
            blocks = [res[p * cp:p * cp + co, :] for p in range(4)]
            if li < n_up - 1:
                # pixel-shuffle assembly == lane concatenation in phase-major order
                a = jnp.concatenate(blocks, axis=1)
            else:
                # 1x1 head already folded into these weights: 4 aligned lane-dense stores
                for p in range(4):
                    o_ref[0, :, p * L:(p + 1) * L] = blocks[p]

    return kernel


# --------------------------------------------------------------------------------------
# Host-side parameter packing (PyTorch layouts -> one fused block weight per layer).
# Row block p of each weight holds the taps of output phase p in (00, 01, 10, 11) order;
# its last column is the bias (consumed by the constant ones row appended to the RHS).
# The 1x1 head is folded into the last layer's blocks.
# --------------------------------------------------------------------------------------
def _round_up(x, m):
    return (x + m - 1) // m * m


def _pack_params(params):
    ups = params["ups"]
    head_w, head_b = params["head"]
    hw = jnp.asarray(head_w, jnp.float32)[:, :, 0, 0]        # (c_out, c5)
    hb = jnp.asarray(head_b, jnp.float32)

    packed = []
    for li, (w, b) in enumerate(ups):
        wt = jnp.transpose(jnp.asarray(w, jnp.float32), (2, 3, 1, 0))  # (ky, kx, Cout, Cin)
        bias = jnp.asarray(b, jnp.float32).reshape(-1, 1)
        cout, cin = wt.shape[2], wt.shape[3]
        z = jnp.zeros((cout, cin), jnp.float32)
        # RHS row blocks are [a | s01 | s10 | s11 | ones]; sub-pixel tap placement:
        rows = [
            jnp.concatenate([wt[1, 1], z,        z,        z,        bias], axis=1),  # (0,0)
            jnp.concatenate([wt[1, 2], wt[1, 0], z,        z,        bias], axis=1),  # (0,1)
            jnp.concatenate([wt[2, 1], z,        wt[0, 1], z,        bias], axis=1),  # (1,0)
            jnp.concatenate([wt[2, 2], wt[2, 0], wt[0, 2], wt[0, 0], bias], axis=1),  # (1,1)
        ]
        if li == len(ups) - 1:                 # fold the 1x1 head into the last layer
            rows = [(hw @ rb).at[:, -1].add(hb) for rb in rows]
            cout = hw.shape[0]
        cp = _round_up(cout, 8)                # sublane-align the 4 output row blocks
        rows = [jnp.concatenate(
                    [rb, jnp.zeros((cp - cout, rb.shape[1]), jnp.float32)], axis=0)
                if cp > cout else rb for rb in rows]
        packed.append(jnp.concatenate(rows, axis=0))   # (4*cp, 4*cin+1)
    return packed


def _phase_major_to_nchw(a, r, n_levels):
    """(B, C, L) phase-major columns -> (B, C, r*2**n, r*2**n) NCHW (XLA-side plumbing)."""
    B, C, L = a.shape
    h = w = r
    m = L // (r * r)
    out = a.reshape(B, C, m, h, w)
    for _ in range(n_levels):
        m //= 4
        out = out.reshape(B, C, m, 2, 2, h, w)
        out = out.transpose(0, 1, 2, 5, 3, 6, 4)       # (B, C, m, h, py, w, px)
        h, w = 2 * h, 2 * w
        out = out.reshape(B, C, m, h, w)
    return out.reshape(B, C, h, w)


def decoder_forward(x, params):
    """x: (B, N, C) exactly as the PyTorch module takes it; returns NCHW like Decoder.forward."""
    B, N, C0 = x.shape
    r = int(math.isqrt(N))
    assert r * r == N, "N must be a perfect square"
    n_up = len(params["ups"])
    c_out = params["head"][0].shape[0]

    a0 = jnp.transpose(x, (0, 2, 1)).astype(jnp.float32)     # (B, C0, N); row-major columns
    packed = _pack_params(params)
    couts = [params["ups"][i][1].shape[0] for i in range(n_up - 1)] + [c_out]
    cpads = [p.shape[0] // 4 for p in packed]
    l_out = N * 4 ** n_up

    in_specs = [pl.BlockSpec((1, C0, N), lambda b: (b, 0, 0))]
    in_specs += [pl.BlockSpec(p.shape, lambda b: (0, 0)) for p in packed]

    # TODO(synk): for B == 1 on v7x, add a second "parallel" grid axis (e.g. over the four
    # top-level output phases) so both TensorCores get work; with B >= 2 the batch axis
    # already shards across the cores.
    out = pl.pallas_call(
        _make_decoder_kernel(r, couts, cpads),
        out_shape=jax.ShapeDtypeStruct((B, c_out, l_out), jnp.float32),
        grid=(B,),
        in_specs=in_specs,
        out_specs=pl.BlockSpec((1, c_out, l_out), lambda b: (b, 0, 0)),
        compiler_params=pltpu.CompilerParams(dimension_semantics=("parallel",)),
    )(a0, *packed)

    return _phase_major_to_nchw(out, r, n_up)


# ---------------- numpy reference of the PyTorch semantics (for verification) ----------------
def _ref_conv_transpose2d(x, w, b, s=2, p=1, op=1):
    x = np.asarray(x, np.float32)
    w = np.asarray(w, np.float32)
    b = np.asarray(b, np.float32)
    B, Ci, H, W = x.shape
    _, Co, K, _ = w.shape
    Ho = (H - 1) * s - 2 * p + K + op
    Wo = (W - 1) * s - 2 * p + K + op
    full = np.zeros((B, Co, (H - 1) * s + K, (W - 1) * s + K), np.float32)
    for ky in range(K):
        for kx in range(K):
            contrib = np.einsum("bcij,cd->bdij", x, w[:, :, ky, kx])
            full[:, :, ky:ky + (H - 1) * s + 1:s, kx:kx + (W - 1) * s + 1:s] += contrib
    return full[:, :, p:p + Ho, p:p + Wo] + b.reshape(1, -1, 1, 1)


def _ref_head(x, w, b):
    return (np.einsum("bcij,dc->bdij", np.asarray(x, np.float32),
                      np.asarray(w, np.float32)[:, :, 0, 0])
            + np.asarray(b, np.float32).reshape(1, -1, 1, 1))


if __name__ == "__main__":
    B, N, in_channels, out_channels = 2, 16, 64, 3      # N=16 -> 4x4 base feature map
    key = jax.random.PRNGKey(0)
    keys = jax.random.split(key, 8)

    def init_convT(k, cin, cout, ksz=3):
        kw, kb = jax.random.split(k)
        bound = 1.0 / math.sqrt(cin * ksz * ksz)
        w = jax.random.uniform(kw, (cin, cout, ksz, ksz), jnp.float32, -bound, bound)
        b = jax.random.uniform(kb, (cout,), jnp.float32, -bound, bound)
        return w, b

    def init_conv(k, cin, cout):
        kw, kb = jax.random.split(k)
        bound = 1.0 / math.sqrt(cin)
        w = jax.random.uniform(kw, (cout, cin, 1, 1), jnp.float32, -bound, bound)
        b = jax.random.uniform(kb, (cout,), jnp.float32, -bound, bound)
        return w, b

    chans = [in_channels, in_channels // 2, in_channels // 4,
             in_channels // 8, in_channels // 16, in_channels // 32]
    ups = [init_convT(keys[i], chans[i], chans[i + 1]) for i in range(N_UP)]
    head = init_conv(keys[5], chans[5], out_channels)
    params = {"ups": ups, "head": head}

    x = jax.random.normal(keys[6], (B, N, in_channels), jnp.float32)

    fwd = jax.jit(decoder_forward)
    out = jax.block_until_ready(fwd(x, params))          # (2, 3, 128, 128)

    # verify against an independent numpy implementation of PyTorch's scatter semantics
    r = int(math.isqrt(N))
    ref = np.transpose(np.asarray(x), (0, 2, 1)).reshape(B, in_channels, r, r)
    for w, b in ups:
        ref = _ref_conv_transpose2d(ref, w, b)
    ref = _ref_head(ref, *head)

    np.testing.assert_allclose(np.asarray(out), ref, rtol=2e-3, atol=2e-3)
    print("KERNEL_OK")
</pallas_src>

<mosaic_0001>
module attributes {stable_mosaic.version = 11 : i64} {
  func.func @kernel(%arg0: i32, %arg1: memref<1x64x16xf32, #tpu.memory_space<vmem>>, %arg2: memref<128x257xf32, #tpu.memory_space<vmem>>, %arg3: memref<64x129xf32, #tpu.memory_space<vmem>>, %arg4: memref<32x65xf32, #tpu.memory_space<vmem>>, %arg5: memref<32x33xf32, #tpu.memory_space<vmem>>, %arg6: memref<32x17xf32, #tpu.memory_space<vmem>>, %arg7: memref<1x3x16384xf32, #tpu.memory_space<vmem>>) attributes {dimension_semantics = [#tpu.dimension_semantics<parallel>], iteration_bounds = array<i64: 2>, scalar_prefetch = 0 : i64, scratch_operands = 0 : i64, tpu.core_type = #tpu.core_type<tc>, window_params = [{transform_indices = @transform_0, window_bounds = array<i64: 1, 64, 16>}, {pipeline_mode = #tpu.pipeline_mode<synchronous>, transform_indices = @transform_1, window_bounds = array<i64: 128, 257>}, {pipeline_mode = #tpu.pipeline_mode<synchronous>, transform_indices = @transform_2, window_bounds = array<i64: 64, 129>}, {pipeline_mode = #tpu.pipeline_mode<synchronous>, transform_indices = @transform_3, window_bounds = array<i64: 32, 65>}, {pipeline_mode = #tpu.pipeline_mode<synchronous>, transform_indices = @transform_4, window_bounds = array<i64: 32, 33>}, {pipeline_mode = #tpu.pipeline_mode<synchronous>, transform_indices = @transform_5, window_bounds = array<i64: 32, 17>}, {transform_indices = @transform_6, window_bounds = array<i64: 1, 3, 16384>}]} {
    %0 = tpu.iota {dimensions = array<i32: 1>} : vector<1x4096xi32>
    %c4_i32 = arith.constant 4 : i32
    %c0_i32 = arith.constant 0 : i32
    %1 = arith.cmpi eq, %c4_i32, %c0_i32 : i32
    %c1_i32 = arith.constant 1 : i32
    %2 = arith.select %1, %c1_i32, %c4_i32 : i32
    %3 = vector.broadcast %2 : i32 to vector<1x4096xi32>
    %4 = arith.remsi %0, %3 : vector<1x4096xi32>
    %c0_i32_0 = arith.constant 0 : i32
    %5 = vector.broadcast %c0_i32_0 : i32 to vector<1x4096xi32>
    %6 = arith.cmpi ne, %4, %5 : vector<1x4096xi32>
    %c0_i32_1 = arith.constant 0 : i32
    %7 = vector.broadcast %c0_i32_1 : i32 to vector<1x4096xi32>
    %8 = arith.cmpi slt, %4, %7 : vector<1x4096xi32>
    %c0_i32_2 = arith.constant 0 : i32
    %9 = arith.cmpi slt, %2, %c0_i32_2 : i32
    %10 = vector.broadcast %9 : i1 to vector<1x4096xi1>
    %11 = vector.broadcast %10 : vector<1x4096xi1> to vector<1x4096xi1>
    %12 = arith.xori %8, %11 : vector<1x4096xi1>
    %13 = arith.andi %12, %6 : vector<1x4096xi1>
    %14 = vector.broadcast %2 : i32 to vector<1x4096xi32>
    %15 = arith.addi %4, %14 : vector<1x4096xi32>
    %16 = arith.select %13, %15, %4 : vector<1x4096xi1>, vector<1x4096xi32>
    %c3_i32 = arith.constant 3 : i32
    %17 = vector.broadcast %c3_i32 : i32 to vector<1x4096xi32>
    %18 = arith.cmpi eq, %16, %17 : vector<1x4096xi32>
    %c16_i32 = arith.constant 16 : i32
    %c0_i32_3 = arith.constant 0 : i32
    %19 = arith.cmpi eq, %c16_i32, %c0_i32_3 : i32
    %c1_i32_4 = arith.constant 1 : i32
    %20 = arith.select %19, %c1_i32_4, %c16_i32 : i32
    %21 = vector.broadcast %20 : i32 to vector<1x4096xi32>
    %22 = arith.remsi %0, %21 : vector<1x4096xi32>
    %c0_i32_5 = arith.constant 0 : i32
    %23 = vector.broadcast %c0_i32_5 : i32 to vector<1x4096xi32>
    %24 = arith.cmpi ne, %22, %23 : vector<1x4096xi32>
    %c0_i32_6 = arith.constant 0 : i32
    %25 = vector.broadcast %c0_i32_6 : i32 to vector<1x4096xi32>
    %26 = arith.cmpi slt, %22, %25 : vector<1x4096xi32>
    %c0_i32_7 = arith.constant 0 : i32
    %27 = arith.cmpi slt, %20, %c0_i32_7 : i32
    %28 = vector.broadcast %27 : i1 to vector<1x4096xi1>
    %29 = vector.broadcast %28 : vector<1x4096xi1> to vector<1x4096xi1>
    %30 = arith.xori %26, %29 : vector<1x4096xi1>
    %31 = arith.andi %30, %24 : vector<1x4096xi1>
    %32 = vector.broadcast %20 : i32 to vector<1x4096xi32>
    %33 = arith.addi %22, %32 : vector<1x4096xi32>
    %34 = arith.select %31, %33, %22 : vector<1x4096xi1>, vector<1x4096xi32>
    %c12_i32 = arith.constant 12 : i32
    %35 = vector.broadcast %c12_i32 : i32 to vector<1x4096xi32>
    %36 = arith.cmpi sge, %34, %35 : vector<1x4096xi32>
    %cst = arith.constant 1.000000e+00 : f32
    %37 = vector.broadcast %cst : f32 to vector<1x4096xf32>
    %c0 = arith.constant 0 : index
    %c0_8 = arith.constant 0 : index
    %c0_9 = arith.constant 0 : index
    %38 = vector.load %arg1[%c0, %c0_8, %c0_9] : memref<1x64x16xf32, #tpu.memory_space<vmem>>, vector<1x64x16xf32>
    %39 = vector.shape_cast %38 : vector<1x64x16xf32> to vector<64x16xf32>
    %40 = vector.extract_strided_slice %18 {offsets = [0, 0], sizes = [1, 16], strides = [1, 1]} : vector<1x4096xi1> to vector<1x16xi1>
    %41 = vector.extract_strided_slice %36 {offsets = [0, 0], sizes = [1, 16], strides = [1, 1]} : vector<1x4096xi1> to vector<1x16xi1>
    %42 = vector.extract_strided_slice %39 {offsets = [0, 1], sizes = [64, 15], strides = [1, 1]} : vector<64x16xf32> to vector<64x15xf32>
    %cst_10 = arith.constant 0.000000e+00 : f32
    %43 = vector.broadcast %cst_10 : f32 to vector<64x1xf32>
    %44 = tpu.concatenate %42, %43 in 1 : vector<64x15xf32>, vector<64x1xf32> -> vector<64x16xf32>
    %cst_11 = arith.constant 0.000000e+00 : f32
    %45 = vector.shape_cast %40 : vector<1x16xi1> to vector<1x16xi1>
    %46 = vector.broadcast %45 : vector<1x16xi1> to vector<64x16xi1>
    %47 = vector.broadcast %cst_11 : f32 to vector<64x16xf32>
    %48 = arith.select %46, %47, %44 : vector<64x16xi1>, vector<64x16xf32>
    %49 = vector.extract_strided_slice %39 {offsets = [0, 4], sizes = [64, 12], strides = [1, 1]} : vector<64x16xf32> to vector<64x12xf32>
    %cst_12 = arith.constant 0.000000e+00 : f32
    %50 = vector.broadcast %cst_12 : f32 to vector<64x4xf32>
    %51 = tpu.concatenate %49, %50 in 1 : vector<64x12xf32>, vector<64x4xf32> -> vector<64x16xf32>
    %cst_13 = arith.constant 0.000000e+00 : f32
    %52 = vector.shape_cast %41 : vector<1x16xi1> to vector<1x16xi1>
    %53 = vector.broadcast %52 : vector<1x16xi1> to vector<64x16xi1>
    %54 = vector.broadcast %cst_13 : f32 to vector<64x16xf32>
    %55 = arith.select %53, %54, %51 : vector<64x16xi1>, vector<64x16xf32>
    %56 = vector.extract_strided_slice %55 {offsets = [0, 1], sizes = [64, 15], strides = [1, 1]} : vector<64x16xf32> to vector<64x15xf32>
    %cst_14 = arith.constant 0.000000e+00 : f32
    %57 = vector.broadcast %cst_14 : f32 to vector<64x1xf32>
    %58 = tpu.concatenate %56, %57 in 1 : vector<64x15xf32>, vector<64x1xf32> -> vector<64x16xf32>
    %cst_15 = arith.constant 0.000000e+00 : f32
    %59 = vector.shape_cast %40 : vector<1x16xi1> to vector<1x16xi1>
    %60 = vector.broadcast %59 : vector<1x16xi1> to vector<64x16xi1>
    %61 = vector.broadcast %cst_15 : f32 to vector<64x16xf32>
    %62 = arith.select %60, %61, %58 : vector<64x16xi1>, vector<64x16xf32>
    %63 = vector.extract_strided_slice %37 {offsets = [0, 0], sizes = [1, 16], strides = [1, 1]} : vector<1x4096xf32> to vector<1x16xf32>
    %64 = tpu.concatenate %39, %48, %55, %62, %63 in 0 : vector<64x16xf32>, vector<64x16xf32>, vector<64x16xf32>, vector<64x16xf32>, vector<1x16xf32> -> vector<257x16xf32>
    %c0_16 = arith.constant 0 : index
    %c0_17 = arith.constant 0 : index
    %65 = vector.load %arg2[%c0_16, %c0_17] : memref<128x257xf32, #tpu.memory_space<vmem>>, vector<128x257xf32>
    %cst_18 = arith.constant dense<0.000000e+00> : vector<128x16xf32>
    %66 = tpu.matmul %65, %64, %cst_18 {dimension_numbers = #tpu.dot_dimension_numbers<[1], [0], [0], [1], [0, 0, 1, 1], [], []>} : vector<128x257xf32>, vector<257x16xf32>, vector<128x16xf32> -> vector<128x16xf32>
    %67 = vector.extract_strided_slice %66 {offsets = [0, 0], sizes = [32, 16], strides = [1, 1]} : vector<128x16xf32> to vector<32x16xf32>
    %68 = vector.extract_strided_slice %66 {offsets = [32, 0], sizes = [32, 16], strides = [1, 1]} : vector<128x16xf32> to vector<32x16xf32>
    %69 = vector.extract_strided_slice %66 {offsets = [64, 0], sizes = [32, 16], strides = [1, 1]} : vector<128x16xf32> to vector<32x16xf32>
    %70 = vector.extract_strided_slice %66 {offsets = [96, 0], sizes = [32, 16], strides = [1, 1]} : vector<128x16xf32> to vector<32x16xf32>
    %71 = tpu.concatenate %67, %68, %69, %70 in 1 : vector<32x16xf32>, vector<32x16xf32>, vector<32x16xf32>, vector<32x16xf32> -> vector<32x64xf32>
    %72 = vector.extract_strided_slice %18 {offsets = [0, 0], sizes = [1, 64], strides = [1, 1]} : vector<1x4096xi1> to vector<1x64xi1>
    %73 = vector.extract_strided_slice %36 {offsets = [0, 0], sizes = [1, 64], strides = [1, 1]} : vector<1x4096xi1> to vector<1x64xi1>
    %74 = vector.extract_strided_slice %71 {offsets = [0, 1], sizes = [32, 63], strides = [1, 1]} : vector<32x64xf32> to vector<32x63xf32>
    %cst_19 = arith.constant 0.000000e+00 : f32
    %75 = vector.broadcast %cst_19 : f32 to vector<32x1xf32>
    %76 = tpu.concatenate %74, %75 in 1 : vector<32x63xf32>, vector<32x1xf32> -> vector<32x64xf32>
    %cst_20 = arith.constant 0.000000e+00 : f32
    %77 = vector.shape_cast %72 : vector<1x64xi1> to vector<1x64xi1>
    %78 = vector.broadcast %77 : vector<1x64xi1> to vector<32x64xi1>
    %79 = vector.broadcast %cst_20 : f32 to vector<32x64xf32>
    %80 = arith.select %78, %79, %76 : vector<32x64xi1>, vector<32x64xf32>
    %81 = vector.extract_strided_slice %71 {offsets = [0, 16], sizes = [32, 16], strides = [1, 1]} : vector<32x64xf32> to vector<32x16xf32>
    %82 = vector.extract_strided_slice %80 {offsets = [0, 0], sizes = [32, 16], strides = [1, 1]} : vector<32x64xf32> to vector<32x16xf32>
    %83 = vector.extract_strided_slice %71 {offsets = [0, 48], sizes = [32, 16], strides = [1, 1]} : vector<32x64xf32> to vector<32x16xf32>
    %84 = vector.extract_strided_slice %80 {offsets = [0, 32], sizes = [32, 16], strides = [1, 1]} : vector<32x64xf32> to vector<32x16xf32>
    %85 = tpu.concatenate %81, %82, %83, %84 in 1 : vector<32x16xf32>, vector<32x16xf32>, vector<32x16xf32>, vector<32x16xf32> -> vector<32x64xf32>
    %86 = vector.extract_strided_slice %71 {offsets = [0, 4], sizes = [32, 60], strides = [1, 1]} : vector<32x64xf32> to vector<32x60xf32>
    %cst_21 = arith.constant 0.000000e+00 : f32
    %87 = vector.broadcast %cst_21 : f32 to vector<32x4xf32>
    %88 = tpu.concatenate %86, %87 in 1 : vector<32x60xf32>, vector<32x4xf32> -> vector<32x64xf32>
    %cst_22 = arith.constant 0.000000e+00 : f32
    %89 = vector.shape_cast %73 : vector<1x64xi1> to vector<1x64xi1>
    %90 = vector.broadcast %89 : vector<1x64xi1> to vector<32x64xi1>
    %91 = vector.broadcast %cst_22 : f32 to vector<32x64xf32>
    %92 = arith.select %90, %91, %88 : vector<32x64xi1>, vector<32x64xf32>
    %93 = vector.extract_strided_slice %71 {offsets = [0, 32], sizes = [32, 16], strides = [1, 1]} : vector<32x64xf32> to vector<32x16xf32>
    %94 = vector.extract_strided_slice %71 {offsets = [0, 48], sizes = [32, 16], strides = [1, 1]} : vector<32x64xf32> to vector<32x16xf32>
    %95 = vector.extract_strided_slice %92 {offsets = [0, 0], sizes = [32, 16], strides = [1, 1]} : vector<32x64xf32> to vector<32x16xf32>
    %96 = vector.extract_strided_slice %92 {offsets = [0, 16], sizes = [32, 16], strides = [1, 1]} : vector<32x64xf32> to vector<32x16xf32>
    %97 = tpu.concatenate %93, %94, %95, %96 in 1 : vector<32x16xf32>, vector<32x16xf32>, vector<32x16xf32>, vector<32x16xf32> -> vector<32x64xf32>
    %98 = vector.extract_strided_slice %97 {offsets = [0, 1], sizes = [32, 63], strides = [1, 1]} : vector<32x64xf32> to vector<32x63xf32>
    %cst_23 = arith.constant 0.000000e+00 : f32
    %99 = vector.broadcast %cst_23 : f32 to vector<32x1xf32>
    %100 = tpu.concatenate %98, %99 in 1 : vector<32x63xf32>, vector<32x1xf32> -> vector<32x64xf32>
    %cst_24 = arith.constant 0.000000e+00 : f32
    %101 = vector.shape_cast %72 : vector<1x64xi1> to vector<1x64xi1>
    %102 = vector.broadcast %101 : vector<1x64xi1> to vector<32x64xi1>
    %103 = vector.broadcast %cst_24 : f32 to vector<32x64xf32>
    %104 = arith.select %102, %103, %100 : vector<32x64xi1>, vector<32x64xf32>
    %105 = vector.extract_strided_slice %97 {offsets = [0, 16], sizes = [32, 16], strides = [1, 1]} : vector<32x64xf32> to vector<32x16xf32>
    %106 = vector.extract_strided_slice %104 {offsets = [0, 0], sizes = [32, 16], strides = [1, 1]} : vector<32x64xf32> to vector<32x16xf32>
    %107 = vector.extract_strided_slice %97 {offsets = [0, 48], sizes = [32, 16], strides = [1, 1]} : vector<32x64xf32> to vector<32x16xf32>
    %108 = vector.extract_strided_slice %104 {offsets = [0, 32], sizes = [32, 16], strides = [1, 1]} : vector<32x64xf32> to vector<32x16xf32>
    %109 = tpu.concatenate %105, %106, %107, %108 in 1 : vector<32x16xf32>, vector<32x16xf32>, vector<32x16xf32>, vector<32x16xf32> -> vector<32x64xf32>
    %110 = vector.extract_strided_slice %37 {offsets = [0, 0], sizes = [1, 64], strides = [1, 1]} : vector<1x4096xf32> to vector<1x64xf32>
    %111 = tpu.concatenate %71, %85, %97, %109, %110 in 0 : vector<32x64xf32>, vector<32x64xf32>, vector<32x64xf32>, vector<32x64xf32>, vector<1x64xf32> -> vector<129x64xf32>
    %c0_25 = arith.constant 0 : index
    %c0_26 = arith.constant 0 : index
    %112 = vector.load %arg3[%c0_25, %c0_26] : memref<64x129xf32, #tpu.memory_space<vmem>>, vector<64x129xf32>
    %cst_27 = arith.constant dense<0.000000e+00> : vector<64x64xf32>
    %113 = tpu.matmul %112, %111, %cst_27 {dimension_numbers = #tpu.dot_dimension_numbers<[1], [0], [0], [1], [0, 0, 1, 1], [], []>} : vector<64x129xf32>, vector<129x64xf32>, vector<64x64xf32> -> vector<64x64xf32>
    %114 = vector.extract_strided_slice %113 {offsets = [0, 0], sizes = [16, 64], strides = [1, 1]} : vector<64x64xf32> to vector<16x64xf32>
    %115 = vector.extract_strided_slice %113 {offsets = [16, 0], sizes = [16, 64], strides = [1, 1]} : vector<64x64xf32> to vector<16x64xf32>
    %116 = vector.extract_strided_slice %113 {offsets = [32, 0], sizes = [16, 64], strides = [1, 1]} : vector<64x64xf32> to vector<16x64xf32>
    %117 = vector.extract_strided_slice %113 {offsets = [48, 0], sizes = [16, 64], strides = [1, 1]} : vector<64x64xf32> to vector<16x64xf32>
    %118 = tpu.concatenate %114, %115, %116, %117 in 1 : vector<16x64xf32>, vector<16x64xf32>, vector<16x64xf32>, vector<16x64xf32> -> vector<16x256xf32>
    %119 = vector.extract_strided_slice %18 {offsets = [0, 0], sizes = [1, 256], strides = [1, 1]} : vector<1x4096xi1> to vector<1x256xi1>
    %120 = vector.extract_strided_slice %36 {offsets = [0, 0], sizes = [1, 256], strides = [1, 1]} : vector<1x4096xi1> to vector<1x256xi1>
    %121 = vector.extract_strided_slice %118 {offsets = [0, 1], sizes = [16, 255], strides = [1, 1]} : vector<16x256xf32> to vector<16x255xf32>
    %cst_28 = arith.constant 0.000000e+00 : f32
    %122 = vector.broadcast %cst_28 : f32 to vector<16x1xf32>
    %123 = tpu.concatenate %121, %122 in 1 : vector<16x255xf32>, vector<16x1xf32> -> vector<16x256xf32>
    %cst_29 = arith.constant 0.000000e+00 : f32
    %124 = vector.shape_cast %119 : vector<1x256xi1> to vector<1x256xi1>
    %125 = vector.broadcast %124 : vector<1x256xi1> to vector<16x256xi1>
    %126 = vector.broadcast %cst_29 : f32 to vector<16x256xf32>
    %127 = arith.select %125, %126, %123 : vector<16x256xi1>, vector<16x256xf32>
    %128 = vector.extract_strided_slice %118 {offsets = [0, 64], sizes = [16, 64], strides = [1, 1]} : vector<16x256xf32> to vector<16x64xf32>
    %129 = vector.extract_strided_slice %118 {offsets = [0, 0], sizes = [16, 64], strides = [1, 1]} : vector<16x256xf32> to vector<16x64xf32>
    %130 = vector.extract_strided_slice %127 {offsets = [0, 0], sizes = [16, 64], strides = [1, 1]} : vector<16x256xf32> to vector<16x64xf32>
    %131 = vector.extract_strided_slice %129 {offsets = [0, 16], sizes = [16, 16], strides = [1, 1]} : vector<16x64xf32> to vector<16x16xf32>
    %132 = vector.extract_strided_slice %130 {offsets = [0, 0], sizes = [16, 16], strides = [1, 1]} : vector<16x64xf32> to vector<16x16xf32>
    %133 = vector.extract_strided_slice %129 {offsets = [0, 48], sizes = [16, 16], strides = [1, 1]} : vector<16x64xf32> to vector<16x16xf32>
    %134 = vector.extract_strided_slice %130 {offsets = [0, 32], sizes = [16, 16], strides = [1, 1]} : vector<16x64xf32> to vector<16x16xf32>
    %135 = tpu.concatenate %131, %132, %133, %134 in 1 : vector<16x16xf32>, vector<16x16xf32>, vector<16x16xf32>, vector<16x16xf32> -> vector<16x64xf32>
    %136 = vector.extract_strided_slice %118 {offsets = [0, 192], sizes = [16, 64], strides = [1, 1]} : vector<16x256xf32> to vector<16x64xf32>
    %137 = vector.extract_strided_slice %118 {offsets = [0, 128], sizes = [16, 64], strides = [1, 1]} : vector<16x256xf32> to vector<16x64xf32>
    %138 = vector.extract_strided_slice %127 {offsets = [0, 128], sizes = [16, 64], strides = [1, 1]} : vector<16x256xf32> to vector<16x64xf32>
    %139 = vector.extract_strided_slice %137 {offsets = [0, 16], sizes = [16, 16], strides = [1, 1]} : vector<16x64xf32> to vector<16x16xf32>
    %140 = vector.extract_strided_slice %138 {offsets = [0, 0], sizes = [16, 16], strides = [1, 1]} : vector<16x64xf32> to vector<16x16xf32>
    %141 = vector.extract_strided_slice %137 {offsets = [0, 48], sizes = [16, 16], strides = [1, 1]} : vector<16x64xf32> to vector<16x16xf32>
    %142 = vector.extract_strided_slice %138 {offsets = [0, 32], sizes = [16, 16], strides = [1, 1]} : vector<16x64xf32> to vector<16x16xf32>
    %143 = tpu.concatenate %139, %140, %141, %142 in 1 : vector<16x16xf32>, vector<16x16xf32>, vector<16x16xf32>, vector<16x16xf32> -> vector<16x64xf32>
    %144 = tpu.concatenate %128, %135, %136, %143 in 1 : vector<16x64xf32>, vector<16x64xf32>, vector<16x64xf32>, vector<16x64xf32> -> vector<16x256xf32>
    %145 = vector.extract_strided_slice %118 {offsets = [0, 4], sizes = [16, 252], strides = [1, 1]} : vector<16x256xf32> to vector<16x252xf32>
    %cst_30 = arith.constant 0.000000e+00 : f32
    %146 = vector.broadcast %cst_30 : f32 to vector<16x4xf32>
    %147 = tpu.concatenate %145, %146 in 1 : vector<16x252xf32>, vector<16x4xf32> -> vector<16x256xf32>
    %cst_31 = arith.constant 0.000000e+00 : f32
    %148 = vector.shape_cast %120 : vector<1x256xi1> to vector<1x256xi1>
    %149 = vector.broadcast %148 : vector<1x256xi1> to vector<16x256xi1>
    %150 = vector.broadcast %cst_31 : f32 to vector<16x256xf32>
    %151 = arith.select %149, %150, %147 : vector<16x256xi1>, vector<16x256xf32>
    %152 = vector.extract_strided_slice %118 {offsets = [0, 128], sizes = [16, 64], strides = [1, 1]} : vector<16x256xf32> to vector<16x64xf32>
    %153 = vector.extract_strided_slice %118 {offsets = [0, 192], sizes = [16, 64], strides = [1, 1]} : vector<16x256xf32> to vector<16x64xf32>
    %154 = vector.extract_strided_slice %118 {offsets = [0, 0], sizes = [16, 64], strides = [1, 1]} : vector<16x256xf32> to vector<16x64xf32>
    %155 = vector.extract_strided_slice %151 {offsets = [0, 0], sizes = [16, 64], strides = [1, 1]} : vector<16x256xf32> to vector<16x64xf32>
    %156 = vector.extract_strided_slice %154 {offsets = [0, 32], sizes = [16, 16], strides = [1, 1]} : vector<16x64xf32> to vector<16x16xf32>
    %157 = vector.extract_strided_slice %154 {offsets = [0, 48], sizes = [16, 16], strides = [1, 1]} : vector<16x64xf32> to vector<16x16xf32>
    %158 = vector.extract_strided_slice %155 {offsets = [0, 0], sizes = [16, 16], strides = [1, 1]} : vector<16x64xf32> to vector<16x16xf32>
    %159 = vector.extract_strided_slice %155 {offsets = [0, 16], sizes = [16, 16], strides = [1, 1]} : vector<16x64xf32> to vector<16x16xf32>
    %160 = tpu.concatenate %156, %157, %158, %159 in 1 : vector<16x16xf32>, vector<16x16xf32>, vector<16x16xf32>, vector<16x16xf32> -> vector<16x64xf32>
    %161 = vector.extract_strided_slice %118 {offsets = [0, 64], sizes = [16, 64], strides = [1, 1]} : vector<16x256xf32> to vector<16x64xf32>
    %162 = vector.extract_strided_slice %151 {offsets = [0, 64], sizes = [16, 64], strides = [1, 1]} : vector<16x256xf32> to vector<16x64xf32>
    %163 = vector.extract_strided_slice %161 {offsets = [0, 32], sizes = [16, 16], strides = [1, 1]} : vector<16x64xf32> to vector<16x16xf32>
    %164 = vector.extract_strided_slice %161 {offsets = [0, 48], sizes = [16, 16], strides = [1, 1]} : vector<16x64xf32> to vector<16x16xf32>
    %165 = vector.extract_strided_slice %162 {offsets = [0, 0], sizes = [16, 16], strides = [1, 1]} : vector<16x64xf32> to vector<16x16xf32>
    %166 = vector.extract_strided_slice %162 {offsets = [0, 16], sizes = [16, 16], strides = [1, 1]} : vector<16x64xf32> to vector<16x16xf32>
    %167 = tpu.concatenate %163, %164, %165, %166 in 1 : vector<16x16xf32>, vector<16x16xf32>, vector<16x16xf32>, vector<16x16xf32> -> vector<16x64xf32>
    %168 = tpu.concatenate %152, %153, %160, %167 in 1 : vector<16x64xf32>, vector<16x64xf32>, vector<16x64xf32>, vector<16x64xf32> -> vector<16x256xf32>
    %169 = vector.extract_strided_slice %168 {offsets = [0, 1], sizes = [16, 255], strides = [1, 1]} : vector<16x256xf32> to vector<16x255xf32>
    %cst_32 = arith.constant 0.000000e+00 : f32
    %170 = vector.broadcast %cst_32 : f32 to vector<16x1xf32>
    %171 = tpu.concatenate %169, %170 in 1 : vector<16x255xf32>, vector<16x1xf32> -> vector<16x256xf32>
    %cst_33 = arith.constant 0.000000e+00 : f32
    %172 = vector.shape_cast %119 : vector<1x256xi1> to vector<1x256xi1>
    %173 = vector.broadcast %172 : vector<1x256xi1> to vector<16x256xi1>
    %174 = vector.broadcast %cst_33 : f32 to vector<16x256xf32>
    %175 = arith.select %173, %174, %171 : vector<16x256xi1>, vector<16x256xf32>
    %176 = vector.extract_strided_slice %168 {offsets = [0, 64], sizes = [16, 64], strides = [1, 1]} : vector<16x256xf32> to vector<16x64xf32>
    %177 = vector.extract_strided_slice %168 {offsets = [0, 0], sizes = [16, 64], strides = [1, 1]} : vector<16x256xf32> to vector<16x64xf32>
    %178 = vector.extract_strided_slice %175 {offsets = [0, 0], sizes = [16, 64], strides = [1, 1]} : vector<16x256xf32> to vector<16x64xf32>
    %179 = vector.extract_strided_slice %177 {offsets = [0, 16], sizes = [16, 16], strides = [1, 1]} : vector<16x64xf32> to vector<16x16xf32>
    %180 = vector.extract_strided_slice %178 {offsets = [0, 0], sizes = [16, 16], strides = [1, 1]} : vector<16x64xf32> to vector<16x16xf32>
    %181 = vector.extract_strided_slice %177 {offsets = [0, 48], sizes = [16, 16], strides = [1, 1]} : vector<16x64xf32> to vector<16x16xf32>
    %182 = vector.extract_strided_slice %178 {offsets = [0, 32], sizes = [16, 16], strides = [1, 1]} : vector<16x64xf32> to vector<16x16xf32>
    %183 = tpu.concatenate %179, %180, %181, %182 in 1 : vector<16x16xf32>, vector<16x16xf32>, vector<16x16xf32>, vector<16x16xf32> -> vector<16x64xf32>
    %184 = vector.extract_strided_slice %168 {offsets = [0, 192], sizes = [16, 64], strides = [1, 1]} : vector<16x256xf32> to vector<16x64xf32>
    %185 = vector.extract_strided_slice %168 {offsets = [0, 128], sizes = [16, 64], strides = [1, 1]} : vector<16x256xf32> to vector<16x64xf32>
    %186 = vector.extract_strided_slice %175 {offsets = [0, 128], sizes = [16, 64], strides = [1, 1]} : vector<16x256xf32> to vector<16x64xf32>
    %187 = vector.extract_strided_slice %185 {offsets = [0, 16], sizes = [16, 16], strides = [1, 1]} : vector<16x64xf32> to vector<16x16xf32>
    %188 = vector.extract_strided_slice %186 {offsets = [0, 0], sizes = [16, 16], strides = [1, 1]} : vector<16x64xf32> to vector<16x16xf32>
    %189 = vector.extract_strided_slice %185 {offsets = [0, 48], sizes = [16, 16], strides = [1, 1]} : vector<16x64xf32> to vector<16x16xf32>
    %190 = vector.extract_strided_slice %186 {offsets = [0, 32], sizes = [16, 16], strides = [1, 1]} : vector<16x64xf32> to vector<16x16xf32>
    %191 = tpu.concatenate %187, %188, %189, %190 in 1 : vector<16x16xf32>, vector<16x16xf32>, vector<16x16xf32>, vector<16x16xf32> -> vector<16x64xf32>
    %192 = tpu.concatenate %176, %183, %184, %191 in 1 : vector<16x64xf32>, vector<16x64xf32>, vector<16x64xf32>, vector<16x64xf32> -> vector<16x256xf32>
    %193 = vector.extract_strided_slice %37 {offsets = [0, 0], sizes = [1, 256], strides = [1, 1]} : vector<1x4096xf32> to vector<1x256xf32>
    %194 = tpu.concatenate %118, %144, %168, %192, %193 in 0 : vector<16x256xf32>, vector<16x256xf32>, vector<16x256xf32>, vector<16x256xf32>, vector<1x256xf32> -> vector<65x256xf32>
    %c0_34 = arith.constant 0 : index
    %c0_35 = arith.constant 0 : index
    %195 = vector.load %arg4[%c0_34, %c0_35] : memref<32x65xf32, #tpu.memory_space<vmem>>, vector<32x65xf32>
    %cst_36 = arith.constant dense<0.000000e+00> : vector<32x256xf32>
    %196 = tpu.matmul %195, %194, %cst_36 {dimension_numbers = #tpu.dot_dimension_numbers<[1], [0], [0], [1], [0, 0, 1, 1], [], []>} : vector<32x65xf32>, vector<65x256xf32>, vector<32x256xf32> -> vector<32x256xf32>
    %197 = vector.extract_strided_slice %196 {offsets = [0, 0], sizes = [8, 256], strides = [1, 1]} : vector<32x256xf32> to vector<8x256xf32>
    %198 = vector.extract_strided_slice %196 {offsets = [8, 0], sizes = [8, 256], strides = [1, 1]} : vector<32x256xf32> to vector<8x256xf32>
    %199 = vector.extract_strided_slice %196 {offsets = [16, 0], sizes = [8, 256], strides = [1, 1]} : vector<32x256xf32> to vector<8x256xf32>
    %200 = vector.extract_strided_slice %196 {offsets = [24, 0], sizes = [8, 256], strides = [1, 1]} : vector<32x256xf32> to vector<8x256xf32>
    %201 = tpu.concatenate %197, %198, %199, %200 in 1 : vector<8x256xf32>, vector<8x256xf32>, vector<8x256xf32>, vector<8x256xf32> -> vector<8x1024xf32>
    %202 = vector.extract_strided_slice %18 {offsets = [0, 0], sizes = [1, 1024], strides = [1, 1]} : vector<1x4096xi1> to vector<1x1024xi1>
    %203 = vector.extract_strided_slice %36 {offsets = [0, 0], sizes = [1, 1024], strides = [1, 1]} : vector<1x4096xi1> to vector<1x1024xi1>
    %204 = vector.extract_strided_slice %201 {offsets = [0, 1], sizes = [8, 1023], strides = [1, 1]} : vector<8x1024xf32> to vector<8x1023xf32>
    %cst_37 = arith.constant 0.000000e+00 : f32
    %205 = vector.broadcast %cst_37 : f32 to vector<8x1xf32>
    %206 = tpu.concatenate %204, %205 in 1 : vector<8x1023xf32>, vector<8x1xf32> -> vector<8x1024xf32>
    %cst_38 = arith.constant 0.000000e+00 : f32
    %207 = vector.shape_cast %202 : vector<1x1024xi1> to vector<1x1024xi1>
    %208 = vector.broadcast %207 : vector<1x1024xi1> to vector<8x1024xi1>
    %209 = vector.broadcast %cst_38 : f32 to vector<8x1024xf32>
    %210 = arith.select %208, %209, %206 : vector<8x1024xi1>, vector<8x1024xf32>
    %211 = vector.extract_strided_slice %201 {offsets = [0, 256], sizes = [8, 256], strides = [1, 1]} : vector<8x1024xf32> to vector<8x256xf32>
    %212 = vector.extract_strided_slice %201 {offsets = [0, 0], sizes = [8, 256], strides = [1, 1]} : vector<8x1024xf32> to vector<8x256xf32>
    %213 = vector.extract_strided_slice %210 {offsets = [0, 0], sizes = [8, 256], strides = [1, 1]} : vector<8x1024xf32> to vector<8x256xf32>
    %214 = vector.extract_strided_slice %212 {offsets = [0, 64], sizes = [8, 64], strides = [1, 1]} : vector<8x256xf32> to vector<8x64xf32>
    %215 = vector.extract_strided_slice %212 {offsets = [0, 0], sizes = [8, 64], strides = [1, 1]} : vector<8x256xf32> to vector<8x64xf32>
    %216 = vector.extract_strided_slice %213 {offsets = [0, 0], sizes = [8, 64], strides = [1, 1]} : vector<8x256xf32> to vector<8x64xf32>
    %217 = vector.extract_strided_slice %215 {offsets = [0, 16], sizes = [8, 16], strides = [1, 1]} : vector<8x64xf32> to vector<8x16xf32>
    %218 = vector.extract_strided_slice %216 {offsets = [0, 0], sizes = [8, 16], strides = [1, 1]} : vector<8x64xf32> to vector<8x16xf32>
    %219 = vector.extract_strided_slice %215 {offsets = [0, 48], sizes = [8, 16], strides = [1, 1]} : vector<8x64xf32> to vector<8x16xf32>
    %220 = vector.extract_strided_slice %216 {offsets = [0, 32], sizes = [8, 16], strides = [1, 1]} : vector<8x64xf32> to vector<8x16xf32>
    %221 = tpu.concatenate %217, %218, %219, %220 in 1 : vector<8x16xf32>, vector<8x16xf32>, vector<8x16xf32>, vector<8x16xf32> -> vector<8x64xf32>
    %222 = vector.extract_strided_slice %212 {offsets = [0, 192], sizes = [8, 64], strides = [1, 1]} : vector<8x256xf32> to vector<8x64xf32>
    %223 = vector.extract_strided_slice %212 {offsets = [0, 128], sizes = [8, 64], strides = [1, 1]} : vector<8x256xf32> to vector<8x64xf32>
    %224 = vector.extract_strided_slice %213 {offsets = [0, 128], sizes = [8, 64], strides = [1, 1]} : vector<8x256xf32> to vector<8x64xf32>
    %225 = vector.extract_strided_slice %223 {offsets = [0, 16], sizes = [8, 16], strides = [1, 1]} : vector<8x64xf32> to vector<8x16xf32>
    %226 = vector.extract_strided_slice %224 {offsets = [0, 0], sizes = [8, 16], strides = [1, 1]} : vector<8x64xf32> to vector<8x16xf32>
    %227 = vector.extract_strided_slice %223 {offsets = [0, 48], sizes = [8, 16], strides = [1, 1]} : vector<8x64xf32> to vector<8x16xf32>
    %228 = vector.extract_strided_slice %224 {offsets = [0, 32], sizes = [8, 16], strides = [1, 1]} : vector<8x64xf32> to vector<8x16xf32>
    %229 = tpu.concatenate %225, %226, %227, %228 in 1 : vector<8x16xf32>, vector<8x16xf32>, vector<8x16xf32>, vector<8x16xf32> -> vector<8x64xf32>
    %230 = tpu.concatenate %214, %221, %222, %229 in 1 : vector<8x64xf32>, vector<8x64xf32>, vector<8x64xf32>, vector<8x64xf32> -> vector<8x256xf32>
    %231 = vector.extract_strided_slice %201 {offsets = [0, 768], sizes = [8, 256], strides = [1, 1]} : vector<8x1024xf32> to vector<8x256xf32>
    %232 = vector.extract_strided_slice %201 {offsets = [0, 512], sizes = [8, 256], strides = [1, 1]} : vector<8x1024xf32> to vector<8x256xf32>
    %233 = vector.extract_strided_slice %210 {offsets = [0, 512], sizes = [8, 256], strides = [1, 1]} : vector<8x1024xf32> to vector<8x256xf32>
    %234 = vector.extract_strided_slice %232 {offsets = [0, 64], sizes = [8, 64], strides = [1, 1]} : vector<8x256xf32> to vector<8x64xf32>
    %235 = vector.extract_strided_slice %232 {offsets = [0, 0], sizes = [8, 64], strides = [1, 1]} : vector<8x256xf32> to vector<8x64xf32>
    %236 = vector.extract_strided_slice %233 {offsets = [0, 0], sizes = [8, 64], strides = [1, 1]} : vector<8x256xf32> to vector<8x64xf32>
    %237 = vector.extract_strided_slice %235 {offsets = [0, 16], sizes = [8, 16], strides = [1, 1]} : vector<8x64xf32> to vector<8x16xf32>
    %238 = vector.extract_strided_slice %236 {offsets = [0, 0], sizes = [8, 16], strides = [1, 1]} : vector<8x64xf32> to vector<8x16xf32>
    %239 = vector.extract_strided_slice %235 {offsets = [0, 48], sizes = [8, 16], strides = [1, 1]} : vector<8x64xf32> to vector<8x16xf32>
    %240 = vector.extract_strided_slice %236 {offsets = [0, 32], sizes = [8, 16], strides = [1, 1]} : vector<8x64xf32> to vector<8x16xf32>
    %241 = tpu.concatenate %237, %238, %239, %240 in 1 : vector<8x16xf32>, vector<8x16xf32>, vector<8x16xf32>, vector<8x16xf32> -> vector<8x64xf32>
    %242 = vector.extract_strided_slice %232 {offsets = [0, 192], sizes = [8, 64], strides = [1, 1]} : vector<8x256xf32> to vector<8x64xf32>
    %243 = vector.extract_strided_slice %232 {offsets = [0, 128], sizes = [8, 64], strides = [1, 1]} : vector<8x256xf32> to vector<8x64xf32>
    %244 = vector.extract_strided_slice %233 {offsets = [0, 128], sizes = [8, 64], strides = [1, 1]} : vector<8x256xf32> to vector<8x64xf32>
    %245 = vector.extract_strided_slice %243 {offsets = [0, 16], sizes = [8, 16], strides = [1, 1]} : vector<8x64xf32> to vector<8x16xf32>
    %246 = vector.extract_strided_slice %244 {offsets = [0, 0], sizes = [8, 16], strides = [1, 1]} : vector<8x64xf32> to vector<8x16xf32>
    %247 = vector.extract_strided_slice %243 {offsets = [0, 48], sizes = [8, 16], strides = [1, 1]} : vector<8x64xf32> to vector<8x16xf32>
    %248 = vector.extract_strided_slice %244 {offsets = [0, 32], sizes = [8, 16], strides = [1, 1]} : vector<8x64xf32> to vector<8x16xf32>
    %249 = tpu.concatenate %245, %246, %247, %248 in 1 : vector<8x16xf32>, vector<8x16xf32>, vector<8x16xf32>, vector<8x16xf32> -> vector<8x64xf32>
    %250 = tpu.concatenate %234, %241, %242, %249 in 1 : vector<8x64xf32>, vector<8x64xf32>, vector<8x64xf32>, vector<8x64xf32> -> vector<8x256xf32>
    %251 = tpu.concatenate %211, %230, %231, %250 in 1 : vector<8x256xf32>, vector<8x256xf32>, vector<8x256xf32>, vector<8x256xf32> -> vector<8x1024xf32>
    %252 = vector.extract_strided_slice %201 {offsets = [0, 4], sizes = [8, 1020], strides = [1, 1]} : vector<8x1024xf32> to vector<8x1020xf32>
    %cst_39 = arith.constant 0.000000e+00 : f32
    %253 = vector.broadcast %cst_39 : f32 to vector<8x4xf32>
    %254 = tpu.concatenate %252, %253 in 1 : vector<8x1020xf32>, vector<8x4xf32> -> vector<8x1024xf32>
    %cst_40 = arith.constant 0.000000e+00 : f32
    %255 = vector.shape_cast %203 : vector<1x1024xi1> to vector<1x1024xi1>
    %256 = vector.broadcast %255 : vector<1x1024xi1> to vector<8x1024xi1>
    %257 = vector.broadcast %cst_40 : f32 to vector<8x1024xf32>
    %258 = arith.select %256, %257, %254 : vector<8x1024xi1>, vector<8x1024xf32>
    %259 = vector.extract_strided_slice %201 {offsets = [0, 512], sizes = [8, 256], strides = [1, 1]} : vector<8x1024xf32> to vector<8x256xf32>
    %260 = vector.extract_strided_slice %201 {offsets = [0, 768], sizes = [8, 256], strides = [1, 1]} : vector<8x1024xf32> to vector<8x256xf32>
    %261 = vector.extract_strided_slice %201 {offsets = [0, 0], sizes = [8, 256], strides = [1, 1]} : vector<8x1024xf32> to vector<8x256xf32>
    %262 = vector.extract_strided_slice %258 {offsets = [0, 0], sizes = [8, 256], strides = [1, 1]} : vector<8x1024xf32> to vector<8x256xf32>
    %263 = vector.extract_strided_slice %261 {offsets = [0, 128], sizes = [8, 64], strides = [1, 1]} : vector<8x256xf32> to vector<8x64xf32>
    %264 = vector.extract_strided_slice %261 {offsets = [0, 192], sizes = [8, 64], strides = [1, 1]} : vector<8x256xf32> to vector<8x64xf32>
    %265 = vector.extract_strided_slice %261 {offsets = [0, 0], sizes = [8, 64], strides = [1, 1]} : vector<8x256xf32> to vector<8x64xf32>
    %266 = vector.extract_strided_slice %262 {offsets = [0, 0], sizes = [8, 64], strides = [1, 1]} : vector<8x256xf32> to vector<8x64xf32>
    %267 = vector.extract_strided_slice %265 {offsets = [0, 32], sizes = [8, 16], strides = [1, 1]} : vector<8x64xf32> to vector<8x16xf32>
    %268 = vector.extract_strided_slice %265 {offsets = [0, 48], sizes = [8, 16], strides = [1, 1]} : vector<8x64xf32> to vector<8x16xf32>
    %269 = vector.extract_strided_slice %266 {offsets = [0, 0], sizes = [8, 16], strides = [1, 1]} : vector<8x64xf32> to vector<8x16xf32>
    %270 = vector.extract_strided_slice %266 {offsets = [0, 16], sizes = [8, 16], strides = [1, 1]} : vector<8x64xf32> to vector<8x16xf32>
    %271 = tpu.concatenate %267, %268, %269, %270 in 1 : vector<8x16xf32>, vector<8x16xf32>, vector<8x16xf32>, vector<8x16xf32> -> vector<8x64xf32>
    %272 = vector.extract_strided_slice %261 {offsets = [0, 64], sizes = [8, 64], strides = [1, 1]} : vector<8x256xf32> to vector<8x64xf32>
    %273 = vector.extract_strided_slice %262 {offsets = [0, 64], sizes = [8, 64], strides = [1, 1]} : vector<8x256xf32> to vector<8x64xf32>
    %274 = vector.extract_strided_slice %272 {offsets = [0, 32], sizes = [8, 16], strides = [1, 1]} : vector<8x64xf32> to vector<8x16xf32>
    %275 = vector.extract_strided_slice %272 {offsets = [0, 48], sizes = [8, 16], strides = [1, 1]} : vector<8x64xf32> to vector<8x16xf32>
    %276 = vector.extract_strided_slice %273 {offsets = [0, 0], sizes = [8, 16], strides = [1, 1]} : vector<8x64xf32> to vector<8x16xf32>
    %277 = vector.extract_strided_slice %273 {offsets = [0, 16], sizes = [8, 16], strides = [1, 1]} : vector<8x64xf32> to vector<8x16xf32>
    %278 = tpu.concatenate %274, %275, %276, %277 in 1 : vector<8x16xf32>, vector<8x16xf32>, vector<8x16xf32>, vector<8x16xf32> -> vector<8x64xf32>
    %279 = tpu.concatenate %263, %264, %271, %278 in 1 : vector<8x64xf32>, vector<8x64xf32>, vector<8x64xf32>, vector<8x64xf32> -> vector<8x256xf32>
    %280 = vector.extract_strided_slice %201 {offsets = [0, 256], sizes = [8, 256], strides = [1, 1]} : vector<8x1024xf32> to vector<8x256xf32>
    %281 = vector.extract_strided_slice %258 {offsets = [0, 256], sizes = [8, 256], strides = [1, 1]} : vector<8x1024xf32> to vector<8x256xf32>
    %282 = vector.extract_strided_slice %280 {offsets = [0, 128], sizes = [8, 64], strides = [1, 1]} : vector<8x256xf32> to vector<8x64xf32>
    %283 = vector.extract_strided_slice %280 {offsets = [0, 192], sizes = [8, 64], strides = [1, 1]} : vector<8x256xf32> to vector<8x64xf32>
    %284 = vector.extract_strided_slice %280 {offsets = [0, 0], sizes = [8, 64], strides = [1, 1]} : vector<8x256xf32> to vector<8x64xf32>
    %285 = vector.extract_strided_slice %281 {offsets = [0, 0], sizes = [8, 64], strides = [1, 1]} : vector<8x256xf32> to vector<8x64xf32>
    %286 = vector.extract_strided_slice %284 {offsets = [0, 32], sizes = [8, 16], strides = [1, 1]} : vector<8x64xf32> to vector<8x16xf32>
    %287 = vector.extract_strided_slice %284 {offsets = [0, 48], sizes = [8, 16], strides = [1, 1]} : vector<8x64xf32> to vector<8x16xf32>
    %288 = vector.extract_strided_slice %285 {offsets = [0, 0], sizes = [8, 16], strides = [1, 1]} : vector<8x64xf32> to vector<8x16xf32>
    %289 = vector.extract_strided_slice %285 {offsets = [0, 16], sizes = [8, 16], strides = [1, 1]} : vector<8x64xf32> to vector<8x16xf32>
    %290 = tpu.concatenate %286, %287, %288, %289 in 1 : vector<8x16xf32>, vector<8x16xf32>, vector<8x16xf32>, vector<8x16xf32> -> vector<8x64xf32>
    %291 = vector.extract_strided_slice %280 {offsets = [0, 64], sizes = [8, 64], strides = [1, 1]} : vector<8x256xf32> to vector<8x64xf32>
    %292 = vector.extract_strided_slice %281 {offsets = [0, 64], sizes = [8, 64], strides = [1, 1]} : vector<8x256xf32> to vector<8x64xf32>
    %293 = vector.extract_strided_slice %291 {offsets = [0, 32], sizes = [8, 16], strides = [1, 1]} : vector<8x64xf32> to vector<8x16xf32>
    %294 = vector.extract_strided_slice %291 {offsets = [0, 48], sizes = [8, 16], strides = [1, 1]} : vector<8x64xf32> to vector<8x16xf32>
    %295 = vector.extract_strided_slice %292 {offsets = [0, 0], sizes = [8, 16], strides = [1, 1]} : vector<8x64xf32> to vector<8x16xf32>
    %296 = vector.extract_strided_slice %292 {offsets = [0, 16], sizes = [8, 16], strides = [1, 1]} : vector<8x64xf32> to vector<8x16xf32>
    %297 = tpu.concatenate %293, %294, %295, %296 in 1 : vector<8x16xf32>, vector<8x16xf32>, vector<8x16xf32>, vector<8x16xf32> -> vector<8x64xf32>
    %298 = tpu.concatenate %282, %283, %290, %297 in 1 : vector<8x64xf32>, vector<8x64xf32>, vector<8x64xf32>, vector<8x64xf32> -> vector<8x256xf32>
    %299 = tpu.concatenate %259, %260, %279, %298 in 1 : vector<8x256xf32>, vector<8x256xf32>, vector<8x256xf32>, vector<8x256xf32> -> vector<8x1024xf32>
    %300 = vector.extract_strided_slice %299 {offsets = [0, 1], sizes = [8, 1023], strides = [1, 1]} : vector<8x1024xf32> to vector<8x1023xf32>
    %cst_41 = arith.constant 0.000000e+00 : f32
    %301 = vector.broadcast %cst_41 : f32 to vector<8x1xf32>
    %302 = tpu.concatenate %300, %301 in 1 : vector<8x1023xf32>, vector<8x1xf32> -> vector<8x1024xf32>
    %cst_42 = arith.constant 0.000000e+00 : f32
    %303 = vector.shape_cast %202 : vector<1x1024xi1> to vector<1x1024xi1>
    %304 = vector.broadcast %303 : vector<1x1024xi1> to vector<8x1024xi1>
    %305 = vector.broadcast %cst_42 : f32 to vector<8x1024xf32>
    %306 = arith.select %304, %305, %302 : vector<8x1024xi1>, vector<8x1024xf32>
    %307 = vector.extract_strided_slice %299 {offsets = [0, 256], sizes = [8, 256], strides = [1, 1]} : vector<8x1024xf32> to vector<8x256xf32>
    %308 = vector.extract_strided_slice %299 {offsets = [0, 0], sizes = [8, 256], strides = [1, 1]} : vector<8x1024xf32> to vector<8x256xf32>
    %309 = vector.extract_strided_slice %306 {offsets = [0, 0], sizes = [8, 256], strides = [1, 1]} : vector<8x1024xf32> to vector<8x256xf32>
    %310 = vector.extract_strided_slice %308 {offsets = [0, 64], sizes = [8, 64], strides = [1, 1]} : vector<8x256xf32> to vector<8x64xf32>
    %311 = vector.extract_strided_slice %308 {offsets = [0, 0], sizes = [8, 64], strides = [1, 1]} : vector<8x256xf32> to vector<8x64xf32>
    %312 = vector.extract_strided_slice %309 {offsets = [0, 0], sizes = [8, 64], strides = [1, 1]} : vector<8x256xf32> to vector<8x64xf32>
    %313 = vector.extract_strided_slice %311 {offsets = [0, 16], sizes = [8, 16], strides = [1, 1]} : vector<8x64xf32> to vector<8x16xf32>
    %314 = vector.extract_strided_slice %312 {offsets = [0, 0], sizes = [8, 16], strides = [1, 1]} : vector<8x64xf32> to vector<8x16xf32>
    %315 = vector.extract_strided_slice %311 {offsets = [0, 48], sizes = [8, 16], strides = [1, 1]} : vector<8x64xf32> to vector<8x16xf32>
    %316 = vector.extract_strided_slice %312 {offsets = [0, 32], sizes = [8, 16], strides = [1, 1]} : vector<8x64xf32> to vector<8x16xf32>
    %317 = tpu.concatenate %313, %314, %315, %316 in 1 : vector<8x16xf32>, vector<8x16xf32>, vector<8x16xf32>, vector<8x16xf32> -> vector<8x64xf32>
    %318 = vector.extract_strided_slice %308 {offsets = [0, 192], sizes = [8, 64], strides = [1, 1]} : vector<8x256xf32> to vector<8x64xf32>
    %319 = vector.extract_strided_slice %308 {offsets = [0, 128], sizes = [8, 64], strides = [1, 1]} : vector<8x256xf32> to vector<8x64xf32>
    %320 = vector.extract_strided_slice %309 {offsets = [0, 128], sizes = [8, 64], strides = [1, 1]} : vector<8x256xf32> to vector<8x64xf32>
    %321 = vector.extract_strided_slice %319 {offsets = [0, 16], sizes = [8, 16], strides = [1, 1]} : vector<8x64xf32> to vector<8x16xf32>
    %322 = vector.extract_strided_slice %320 {offsets = [0, 0], sizes = [8, 16], strides = [1, 1]} : vector<8x64xf32> to vector<8x16xf32>
    %323 = vector.extract_strided_slice %319 {offsets = [0, 48], sizes = [8, 16], strides = [1, 1]} : vector<8x64xf32> to vector<8x16xf32>
    %324 = vector.extract_strided_slice %320 {offsets = [0, 32], sizes = [8, 16], strides = [1, 1]} : vector<8x64xf32> to vector<8x16xf32>
    %325 = tpu.concatenate %321, %322, %323, %324 in 1 : vector<8x16xf32>, vector<8x16xf32>, vector<8x16xf32>, vector<8x16xf32> -> vector<8x64xf32>
    %326 = tpu.concatenate %310, %317, %318, %325 in 1 : vector<8x64xf32>, vector<8x64xf32>, vector<8x64xf32>, vector<8x64xf32> -> vector<8x256xf32>
    %327 = vector.extract_strided_slice %299 {offsets = [0, 768], sizes = [8, 256], strides = [1, 1]} : vector<8x1024xf32> to vector<8x256xf32>
    %328 = vector.extract_strided_slice %299 {offsets = [0, 512], sizes = [8, 256], strides = [1, 1]} : vector<8x1024xf32> to vector<8x256xf32>
    %329 = vector.extract_strided_slice %306 {offsets = [0, 512], sizes = [8, 256], strides = [1, 1]} : vector<8x1024xf32> to vector<8x256xf32>
    %330 = vector.extract_strided_slice %328 {offsets = [0, 64], sizes = [8, 64], strides = [1, 1]} : vector<8x256xf32> to vector<8x64xf32>
    %331 = vector.extract_strided_slice %328 {offsets = [0, 0], sizes = [8, 64], strides = [1, 1]} : vector<8x256xf32> to vector<8x64xf32>
    %332 = vector.extract_strided_slice %329 {offsets = [0, 0], sizes = [8, 64], strides = [1, 1]} : vector<8x256xf32> to vector<8x64xf32>
    %333 = vector.extract_strided_slice %331 {offsets = [0, 16], sizes = [8, 16], strides = [1, 1]} : vector<8x64xf32> to vector<8x16xf32>
    %334 = vector.extract_strided_slice %332 {offsets = [0, 0], sizes = [8, 16], strides = [1, 1]} : vector<8x64xf32> to vector<8x16xf32>
    %335 = vector.extract_strided_slice %331 {offsets = [0, 48], sizes = [8, 16], strides = [1, 1]} : vector<8x64xf32> to vector<8x16xf32>
    %336 = vector.extract_strided_slice %332 {offsets = [0, 32], sizes = [8, 16], strides = [1, 1]} : vector<8x64xf32> to vector<8x16xf32>
    %337 = tpu.concatenate %333, %334, %335, %336 in 1 : vector<8x16xf32>, vector<8x16xf32>, vector<8x16xf32>, vector<8x16xf32> -> vector<8x64xf32>
    %338 = vector.extract_strided_slice %328 {offsets = [0, 192], sizes = [8, 64], strides = [1, 1]} : vector<8x256xf32> to vector<8x64xf32>
    %339 = vector.extract_strided_slice %328 {offsets = [0, 128], sizes = [8, 64], strides = [1, 1]} : vector<8x256xf32> to vector<8x64xf32>
    %340 = vector.extract_strided_slice %329 {offsets = [0, 128], sizes = [8, 64], strides = [1, 1]} : vector<8x256xf32> to vector<8x64xf32>
    %341 = vector.extract_strided_slice %339 {offsets = [0, 16], sizes = [8, 16], strides = [1, 1]} : vector<8x64xf32> to vector<8x16xf32>
    %342 = vector.extract_strided_slice %340 {offsets = [0, 0], sizes = [8, 16], strides = [1, 1]} : vector<8x64xf32> to vector<8x16xf32>
    %343 = vector.extract_strided_slice %339 {offsets = [0, 48], sizes = [8, 16], strides = [1, 1]} : vector<8x64xf32> to vector<8x16xf32>
    %344 = vector.extract_strided_slice %340 {offsets = [0, 32], sizes = [8, 16], strides = [1, 1]} : vector<8x64xf32> to vector<8x16xf32>
    %345 = tpu.concatenate %341, %342, %343, %344 in 1 : vector<8x16xf32>, vector<8x16xf32>, vector<8x16xf32>, vector<8x16xf32> -> vector<8x64xf32>
    %346 = tpu.concatenate %330, %337, %338, %345 in 1 : vector<8x64xf32>, vector<8x64xf32>, vector<8x64xf32>, vector<8x64xf32> -> vector<8x256xf32>
    %347 = tpu.concatenate %307, %326, %327, %346 in 1 : vector<8x256xf32>, vector<8x256xf32>, vector<8x256xf32>, vector<8x256xf32> -> vector<8x1024xf32>
    %348 = vector.extract_strided_slice %37 {offsets = [0, 0], sizes = [1, 1024], strides = [1, 1]} : vector<1x4096xf32> to vector<1x1024xf32>
    %349 = tpu.concatenate %201, %251, %299, %347, %348 in 0 : vector<8x1024xf32>, vector<8x1024xf32>, vector<8x1024xf32>, vector<8x1024xf32>, vector<1x1024xf32> -> vector<33x1024xf32>
    %c0_43 = arith.constant 0 : index
    %c0_44 = arith.constant 0 : index
    %350 = vector.load %arg5[%c0_43, %c0_44] : memref<32x33xf32, #tpu.memory_space<vmem>>, vector<32x33xf32>
    %cst_45 = arith.constant dense<0.000000e+00> : vector<32x1024xf32>
    %351 = tpu.matmul %350, %349, %cst_45 {dimension_numbers = #tpu.dot_dimension_numbers<[1], [0], [0], [1], [0, 0, 1, 1], [], []>} : vector<32x33xf32>, vector<33x1024xf32>, vector<32x1024xf32> -> vector<32x1024xf32>
    %352 = vector.extract_strided_slice %351 {offsets = [0, 0], sizes = [4, 1024], strides = [1, 1]} : vector<32x1024xf32> to vector<4x1024xf32>
    %353 = vector.extract_strided_slice %351 {offsets = [8, 0], sizes = [4, 1024], strides = [1, 1]} : vector<32x1024xf32> to vector<4x1024xf32>
    %354 = vector.extract_strided_slice %351 {offsets = [16, 0], sizes = [4, 1024], strides = [1, 1]} : vector<32x1024xf32> to vector<4x1024xf32>
    %355 = vector.extract_strided_slice %351 {offsets = [24, 0], sizes = [4, 1024], strides = [1, 1]} : vector<32x1024xf32> to vector<4x1024xf32>
    %356 = tpu.concatenate %352, %353, %354, %355 in 1 : vector<4x1024xf32>, vector<4x1024xf32>, vector<4x1024xf32>, vector<4x1024xf32> -> vector<4x4096xf32>
    %357 = vector.extract_strided_slice %356 {offsets = [0, 1], sizes = [4, 4095], strides = [1, 1]} : vector<4x4096xf32> to vector<4x4095xf32>
    %cst_46 = arith.constant 0.000000e+00 : f32
    %358 = vector.broadcast %cst_46 : f32 to vector<4x1xf32>
    %359 = tpu.concatenate %357, %358 in 1 : vector<4x4095xf32>, vector<4x1xf32> -> vector<4x4096xf32>
    %cst_47 = arith.constant 0.000000e+00 : f32
    %360 = vector.shape_cast %18 : vector<1x4096xi1> to vector<1x4096xi1>
    %361 = vector.broadcast %360 : vector<1x4096xi1> to vector<4x4096xi1>
    %362 = vector.broadcast %cst_47 : f32 to vector<4x4096xf32>
    %363 = arith.select %361, %362, %359 : vector<4x4096xi1>, vector<4x4096xf32>
    %364 = vector.extract_strided_slice %356 {offsets = [0, 1024], sizes = [4, 1024], strides = [1, 1]} : vector<4x4096xf32> to vector<4x1024xf32>
    %365 = vector.extract_strided_slice %356 {offsets = [0, 0], sizes = [4, 1024], strides = [1, 1]} : vector<4x4096xf32> to vector<4x1024xf32>
    %366 = vector.extract_strided_slice %363 {offsets = [0, 0], sizes = [4, 1024], strides = [1, 1]} : vector<4x4096xf32> to vector<4x1024xf32>
    %367 = vector.extract_strided_slice %365 {offsets = [0, 256], sizes = [4, 256], strides = [1, 1]} : vector<4x1024xf32> to vector<4x256xf32>
    %368 = vector.extract_strided_slice %365 {offsets = [0, 0], sizes = [4, 256], strides = [1, 1]} : vector<4x1024xf32> to vector<4x256xf32>
    %369 = vector.extract_strided_slice %366 {offsets = [0, 0], sizes = [4, 256], strides = [1, 1]} : vector<4x1024xf32> to vector<4x256xf32>
    %370 = vector.extract_strided_slice %368 {offsets = [0, 64], sizes = [4, 64], strides = [1, 1]} : vector<4x256xf32> to vector<4x64xf32>
    %371 = vector.extract_strided_slice %368 {offsets = [0, 0], sizes = [4, 64], strides = [1, 1]} : vector<4x256xf32> to vector<4x64xf32>
    %372 = vector.extract_strided_slice %369 {offsets = [0, 0], sizes = [4, 64], strides = [1, 1]} : vector<4x256xf32> to vector<4x64xf32>
    %373 = vector.extract_strided_slice %371 {offsets = [0, 16], sizes = [4, 16], strides = [1, 1]} : vector<4x64xf32> to vector<4x16xf32>
    %374 = vector.extract_strided_slice %372 {offsets = [0, 0], sizes = [4, 16], strides = [1, 1]} : vector<4x64xf32> to vector<4x16xf32>
    %375 = vector.extract_strided_slice %371 {offsets = [0, 48], sizes = [4, 16], strides = [1, 1]} : vector<4x64xf32> to vector<4x16xf32>
    %376 = vector.extract_strided_slice %372 {offsets = [0, 32], sizes = [4, 16], strides = [1, 1]} : vector<4x64xf32> to vector<4x16xf32>
    %377 = tpu.concatenate %373, %374, %375, %376 in 1 : vector<4x16xf32>, vector<4x16xf32>, vector<4x16xf32>, vector<4x16xf32> -> vector<4x64xf32>
    %378 = vector.extract_strided_slice %368 {offsets = [0, 192], sizes = [4, 64], strides = [1, 1]} : vector<4x256xf32> to vector<4x64xf32>
    %379 = vector.extract_strided_slice %368 {offsets = [0, 128], sizes = [4, 64], strides = [1, 1]} : vector<4x256xf32> to vector<4x64xf32>
    %380 = vector.extract_strided_slice %369 {offsets = [0, 128], sizes = [4, 64], strides = [1, 1]} : vector<4x256xf32> to vector<4x64xf32>
    %381 = vector.extract_strided_slice %379 {offsets = [0, 16], sizes = [4, 16], strides = [1, 1]} : vector<4x64xf32> to vector<4x16xf32>
    %382 = vector.extract_strided_slice %380 {offsets = [0, 0], sizes = [4, 16], strides = [1, 1]} : vector<4x64xf32> to vector<4x16xf32>
    %383 = vector.extract_strided_slice %379 {offsets = [0, 48], sizes = [4, 16], strides = [1, 1]} : vector<4x64xf32> to vector<4x16xf32>
    %384 = vector.extract_strided_slice %380 {offsets = [0, 32], sizes = [4, 16], strides = [1, 1]} : vector<4x64xf32> to vector<4x16xf32>
    %385 = tpu.concatenate %381, %382, %383, %384 in 1 : vector<4x16xf32>, vector<4x16xf32>, vector<4x16xf32>, vector<4x16xf32> -> vector<4x64xf32>
    %386 = tpu.concatenate %370, %377, %378, %385 in 1 : vector<4x64xf32>, vector<4x64xf32>, vector<4x64xf32>, vector<4x64xf32> -> vector<4x256xf32>
    %387 = vector.extract_strided_slice %365 {offsets = [0, 768], sizes = [4, 256], strides = [1, 1]} : vector<4x1024xf32> to vector<4x256xf32>
    %388 = vector.extract_strided_slice %365 {offsets = [0, 512], sizes = [4, 256], strides = [1, 1]} : vector<4x1024xf32> to vector<4x256xf32>
    %389 = vector.extract_strided_slice %366 {offsets = [0, 512], sizes = [4, 256], strides = [1, 1]} : vector<4x1024xf32> to vector<4x256xf32>
    %390 = vector.extract_strided_slice %388 {offsets = [0, 64], sizes = [4, 64], strides = [1, 1]} : vector<4x256xf32> to vector<4x64xf32>
    %391 = vector.extract_strided_slice %388 {offsets = [0, 0], sizes = [4, 64], strides = [1, 1]} : vector<4x256xf32> to vector<4x64xf32>
    %392 = vector.extract_strided_slice %389 {offsets = [0, 0], sizes = [4, 64], strides = [1, 1]} : vector<4x256xf32> to vector<4x64xf32>
    %393 = vector.extract_strided_slice %391 {offsets = [0, 16], sizes = [4, 16], strides = [1, 1]} : vector<4x64xf32> to vector<4x16xf32>
    %394 = vector.extract_strided_slice %392 {offsets = [0, 0], sizes = [4, 16], strides = [1, 1]} : vector<4x64xf32> to vector<4x16xf32>
    %395 = vector.extract_strided_slice %391 {offsets = [0, 48], sizes = [4, 16], strides = [1, 1]} : vector<4x64xf32> to vector<4x16xf32>
    %396 = vector.extract_strided_slice %392 {offsets = [0, 32], sizes = [4, 16], strides = [1, 1]} : vector<4x64xf32> to vector<4x16xf32>
    %397 = tpu.concatenate %393, %394, %395, %396 in 1 : vector<4x16xf32>, vector<4x16xf32>, vector<4x16xf32>, vector<4x16xf32> -> vector<4x64xf32>
    %398 = vector.extract_strided_slice %388 {offsets = [0, 192], sizes = [4, 64], strides = [1, 1]} : vector<4x256xf32> to vector<4x64xf32>
    %399 = vector.extract_strided_slice %388 {offsets = [0, 128], sizes = [4, 64], strides = [1, 1]} : vector<4x256xf32> to vector<4x64xf32>
    %400 = vector.extract_strided_slice %389 {offsets = [0, 128], sizes = [4, 64], strides = [1, 1]} : vector<4x256xf32> to vector<4x64xf32>
    %401 = vector.extract_strided_slice %399 {offsets = [0, 16], sizes = [4, 16], strides = [1, 1]} : vector<4x64xf32> to vector<4x16xf32>
    %402 = vector.extract_strided_slice %400 {offsets = [0, 0], sizes = [4, 16], strides = [1, 1]} : vector<4x64xf32> to vector<4x16xf32>
    %403 = vector.extract_strided_slice %399 {offsets = [0, 48], sizes = [4, 16], strides = [1, 1]} : vector<4x64xf32> to vector<4x16xf32>
    %404 = vector.extract_strided_slice %400 {offsets = [0, 32], sizes = [4, 16], strides = [1, 1]} : vector<4x64xf32> to vector<4x16xf32>
    %405 = tpu.concatenate %401, %402, %403, %404 in 1 : vector<4x16xf32>, vector<4x16xf32>, vector<4x16xf32>, vector<4x16xf32> -> vector<4x64xf32>
    %406 = tpu.concatenate %390, %397, %398, %405 in 1 : vector<4x64xf32>, vector<4x64xf32>, vector<4x64xf32>, vector<4x64xf32> -> vector<4x256xf32>
    %407 = tpu.concatenate %367, %386, %387, %406 in 1 : vector<4x256xf32>, vector<4x256xf32>, vector<4x256xf32>, vector<4x256xf32> -> vector<4x1024xf32>
    %408 = vector.extract_strided_slice %356 {offsets = [0, 3072], sizes = [4, 1024], strides = [1, 1]} : vector<4x4096xf32> to vector<4x1024xf32>
    %409 = vector.extract_strided_slice %356 {offsets = [0, 2048], sizes = [4, 1024], strides = [1, 1]} : vector<4x4096xf32> to vector<4x1024xf32>
    %410 = vector.extract_strided_slice %363 {offsets = [0, 2048], sizes = [4, 1024], strides = [1, 1]} : vector<4x4096xf32> to vector<4x1024xf32>
    %411 = vector.extract_strided_slice %409 {offsets = [0, 256], sizes = [4, 256], strides = [1, 1]} : vector<4x1024xf32> to vector<4x256xf32>
    %412 = vector.extract_strided_slice %409 {offsets = [0, 0], sizes = [4, 256], strides = [1, 1]} : vector<4x1024xf32> to vector<4x256xf32>
    %413 = vector.extract_strided_slice %410 {offsets = [0, 0], sizes = [4, 256], strides = [1, 1]} : vector<4x1024xf32> to vector<4x256xf32>
    %414 = vector.extract_strided_slice %412 {offsets = [0, 64], sizes = [4, 64], strides = [1, 1]} : vector<4x256xf32> to vector<4x64xf32>
    %415 = vector.extract_strided_slice %412 {offsets = [0, 0], sizes = [4, 64], strides = [1, 1]} : vector<4x256xf32> to vector<4x64xf32>
    %416 = vector.extract_strided_slice %413 {offsets = [0, 0], sizes = [4, 64], strides = [1, 1]} : vector<4x256xf32> to vector<4x64xf32>
    %417 = vector.extract_strided_slice %415 {offsets = [0, 16], sizes = [4, 16], strides = [1, 1]} : vector<4x64xf32> to vector<4x16xf32>
    %418 = vector.extract_strided_slice %416 {offsets = [0, 0], sizes = [4, 16], strides = [1, 1]} : vector<4x64xf32> to vector<4x16xf32>
    %419 = vector.extract_strided_slice %415 {offsets = [0, 48], sizes = [4, 16], strides = [1, 1]} : vector<4x64xf32> to vector<4x16xf32>
    %420 = vector.extract_strided_slice %416 {offsets = [0, 32], sizes = [4, 16], strides = [1, 1]} : vector<4x64xf32> to vector<4x16xf32>
    %421 = tpu.concatenate %417, %418, %419, %420 in 1 : vector<4x16xf32>, vector<4x16xf32>, vector<4x16xf32>, vector<4x16xf32> -> vector<4x64xf32>
    %422 = vector.extract_strided_slice %412 {offsets = [0, 192], sizes = [4, 64], strides = [1, 1]} : vector<4x256xf32> to vector<4x64xf32>
    %423 = vector.extract_strided_slice %412 {offsets = [0, 128], sizes = [4, 64], strides = [1, 1]} : vector<4x256xf32> to vector<4x64xf32>
    %424 = vector.extract_strided_slice %413 {offsets = [0, 128], sizes = [4, 64], strides = [1, 1]} : vector<4x256xf32> to vector<4x64xf32>
    %425 = vector.extract_strided_slice %423 {offsets = [0, 16], sizes = [4, 16], strides = [1, 1]} : vector<4x64xf32> to vector<4x16xf32>
    %426 = vector.extract_strided_slice %424 {offsets = [0, 0], sizes = [4, 16], strides = [1, 1]} : vector<4x64xf32> to vector<4x16xf32>
    %427 = vector.extract_strided_slice %423 {offsets = [0, 48], sizes = [4, 16], strides = [1, 1]} : vector<4x64xf32> to vector<4x16xf32>
    %428 = vector.extract_strided_slice %424 {offsets = [0, 32], sizes = [4, 16], strides = [1, 1]} : vector<4x64xf32> to vector<4x16xf32>
    %429 = tpu.concatenate %425, %426, %427, %428 in 1 : vector<4x16xf32>, vector<4x16xf32>, vector<4x16xf32>, vector<4x16xf32> -> vector<4x64xf32>
    %430 = tpu.concatenate %414, %421, %422, %429 in 1 : vector<4x64xf32>, vector<4x64xf32>, vector<4x64xf32>, vector<4x64xf32> -> vector<4x256xf32>
    %431 = vector.extract_strided_slice %409 {offsets = [0, 768], sizes = [4, 256], strides = [1, 1]} : vector<4x1024xf32> to vector<4x256xf32>
    %432 = vector.extract_strided_slice %409 {offsets = [0, 512], sizes = [4, 256], strides = [1, 1]} : vector<4x1024xf32> to vector<4x256xf32>
    %433 = vector.extract_strided_slice %410 {offsets = [0, 512], sizes = [4, 256], strides = [1, 1]} : vector<4x1024xf32> to vector<4x256xf32>
    %434 = vector.extract_strided_slice %432 {offsets = [0, 64], sizes = [4, 64], strides = [1, 1]} : vector<4x256xf32> to vector<4x64xf32>
    %435 = vector.extract_strided_slice %432 {offsets = [0, 0], sizes = [4, 64], strides = [1, 1]} : vector<4x256xf32> to vector<4x64xf32>
    %436 = vector.extract_strided_slice %433 {offsets = [0, 0], sizes = [4, 64], strides = [1, 1]} : vector<4x256xf32> to vector<4x64xf32>
    %437 = vector.extract_strided_slice %435 {offsets = [0, 16], sizes = [4, 16], strides = [1, 1]} : vector<4x64xf32> to vector<4x16xf32>
    %438 = vector.extract_strided_slice %436 {offsets = [0, 0], sizes = [4, 16], strides = [1, 1]} : vector<4x64xf32> to vector<4x16xf32>
    %439 = vector.extract_strided_slice %435 {offsets = [0, 48], sizes = [4, 16], strides = [1, 1]} : vector<4x64xf32> to vector<4x16xf32>
    %440 = vector.extract_strided_slice %436 {offsets = [0, 32], sizes = [4, 16], strides = [1, 1]} : vector<4x64xf32> to vector<4x16xf32>
    %441 = tpu.concatenate %437, %438, %439, %440 in 1 : vector<4x16xf32>, vector<4x16xf32>, vector<4x16xf32>, vector<4x16xf32> -> vector<4x64xf32>
    %442 = vector.extract_strided_slice %432 {offsets = [0, 192], sizes = [4, 64], strides = [1, 1]} : vector<4x256xf32> to vector<4x64xf32>
    %443 = vector.extract_strided_slice %432 {offsets = [0, 128], sizes = [4, 64], strides = [1, 1]} : vector<4x256xf32> to vector<4x64xf32>
    %444 = vector.extract_strided_slice %433 {offsets = [0, 128], sizes = [4, 64], strides = [1, 1]} : vector<4x256xf32> to vector<4x64xf32>
    %445 = vector.extract_strided_slice %443 {offsets = [0, 16], sizes = [4, 16], strides = [1, 1]} : vector<4x64xf32> to vector<4x16xf32>
    %446 = vector.extract_strided_slice %444 {offsets = [0, 0], sizes = [4, 16], strides = [1, 1]} : vector<4x64xf32> to vector<4x16xf32>
    %447 = vector.extract_strided_slice %443 {offsets = [0, 48], sizes = [4, 16], strides = [1, 1]} : vector<4x64xf32> to vector<4x16xf32>
    %448 = vector.extract_strided_slice %444 {offsets = [0, 32], sizes = [4, 16], strides = [1, 1]} : vector<4x64xf32> to vector<4x16xf32>
    %449 = tpu.concatenate %445, %446, %447, %448 in 1 : vector<4x16xf32>, vector<4x16xf32>, vector<4x16xf32>, vector<4x16xf32> -> vector<4x64xf32>
    %450 = tpu.concatenate %434, %441, %442, %449 in 1 : vector<4x64xf32>, vector<4x64xf32>, vector<4x64xf32>, vector<4x64xf32> -> vector<4x256xf32>
    %451 = tpu.concatenate %411, %430, %431, %450 in 1 : vector<4x256xf32>, vector<4x256xf32>, vector<4x256xf32>, vector<4x256xf32> -> vector<4x1024xf32>
    %452 = tpu.concatenate %364, %407, %408, %451 in 1 : vector<4x1024xf32>, vector<4x1024xf32>, vector<4x1024xf32>, vector<4x1024xf32> -> vector<4x4096xf32>
    %453 = vector.extract_strided_slice %356 {offsets = [0, 4], sizes = [4, 4092], strides = [1, 1]} : vector<4x4096xf32> to vector<4x4092xf32>
    %cst_48 = arith.constant 0.000000e+00 : f32
    %454 = vector.broadcast %cst_48 : f32 to vector<4x4xf32>
    %455 = tpu.concatenate %453, %454 in 1 : vector<4x4092xf32>, vector<4x4xf32> -> vector<4x4096xf32>
    %cst_49 = arith.constant 0.000000e+00 : f32
    %456 = vector.shape_cast %36 : vector<1x4096xi1> to vector<1x4096xi1>
    %457 = vector.broadcast %456 : vector<1x4096xi1> to vector<4x4096xi1>
    %458 = vector.broadcast %cst_49 : f32 to vector<4x4096xf32>
    %459 = arith.select %457, %458, %455 : vector<4x4096xi1>, vector<4x4096xf32>
    %460 = vector.extract_strided_slice %356 {offsets = [0, 2048], sizes = [4, 1024], strides = [1, 1]} : vector<4x4096xf32> to vector<4x1024xf32>
    %461 = vector.extract_strided_slice %356 {offsets = [0, 3072], sizes = [4, 1024], strides = [1, 1]} : vector<4x4096xf32> to vector<4x1024xf32>
    %462 = vector.extract_strided_slice %356 {offsets = [0, 0], sizes = [4, 1024], strides = [1, 1]} : vector<4x4096xf32> to vector<4x1024xf32>
    %463 = vector.extract_strided_slice %459 {offsets = [0, 0], sizes = [4, 1024], strides = [1, 1]} : vector<4x4096xf32> to vector<4x1024xf32>
    %464 = vector.extract_strided_slice %462 {offsets = [0, 512], sizes = [4, 256], strides = [1, 1]} : vector<4x1024xf32> to vector<4x256xf32>
    %465 = vector.extract_strided_slice %462 {offsets = [0, 768], sizes = [4, 256], strides = [1, 1]} : vector<4x1024xf32> to vector<4x256xf32>
    %466 = vector.extract_strided_slice %462 {offsets = [0, 0], sizes = [4, 256], strides = [1, 1]} : vector<4x1024xf32> to vector<4x256xf32>
    %467 = vector.extract_strided_slice %463 {offsets = [0, 0], sizes = [4, 256], strides = [1, 1]} : vector<4x1024xf32> to vector<4x256xf32>
    %468 = vector.extract_strided_slice %466 {offsets = [0, 128], sizes = [4, 64], strides = [1, 1]} : vector<4x256xf32> to vector<4x64xf32>
    %469 = vector.extract_strided_slice %466 {offsets = [0, 192], sizes = [4, 64], strides = [1, 1]} : vector<4x256xf32> to vector<4x64xf32>
    %470 = vector.extract_strided_slice %466 {offsets = [0, 0], sizes = [4, 64], strides = [1, 1]} : vector<4x256xf32> to vector<4x64xf32>
    %471 = vector.extract_strided_slice %467 {offsets = [0, 0], sizes = [4, 64], strides = [1, 1]} : vector<4x256xf32> to vector<4x64xf32>
    %472 = vector.extract_strided_slice %470 {offsets = [0, 32], sizes = [4, 16], strides = [1, 1]} : vector<4x64xf32> to vector<4x16xf32>
    %473 = vector.extract_strided_slice %470 {offsets = [0, 48], sizes = [4, 16], strides = [1, 1]} : vector<4x64xf32> to vector<4x16xf32>
    %474 = vector.extract_strided_slice %471 {offsets = [0, 0], sizes = [4, 16], strides = [1, 1]} : vector<4x64xf32> to vector<4x16xf32>
    %475 = vector.extract_strided_slice %471 {offsets = [0, 16], sizes = [4, 16], strides = [1, 1]} : vector<4x64xf32> to vector<4x16xf32>
    %476 = tpu.concatenate %472, %473, %474, %475 in 1 : vector<4x16xf32>, vector<4x16xf32>, vector<4x16xf32>, vector<4x16xf32> -> vector<4x64xf32>
    %477 = vector.extract_strided_slice %466 {offsets = [0, 64], sizes = [4, 64], strides = [1, 1]} : vector<4x256xf32> to vector<4x64xf32>
    %478 = vector.extract_strided_slice %467 {offsets = [0, 64], sizes = [4, 64], strides = [1, 1]} : vector<4x256xf32> to vector<4x64xf32>
    %479 = vector.extract_strided_slice %477 {offsets = [0, 32], sizes = [4, 16], strides = [1, 1]} : vector<4x64xf32> to vector<4x16xf32>
    %480 = vector.extract_strided_slice %477 {offsets = [0, 48], sizes = [4, 16], strides = [1, 1]} : vector<4x64xf32> to vector<4x16xf32>
    %481 = vector.extract_strided_slice %478 {offsets = [0, 0], sizes = [4, 16], strides = [1, 1]} : vector<4x64xf32> to vector<4x16xf32>
    %482 = vector.extract_strided_slice %478 {offsets = [0, 16], sizes = [4, 16], strides = [1, 1]} : vector<4x64xf32> to vector<4x16xf32>
    %483 = tpu.concatenate %479, %480, %481, %482 in 1 : vector<4x16xf32>, vector<4x16xf32>, vector<4x16xf32>, vector<4x16xf32> -> vector<4x64xf32>
    %484 = tpu.concatenate %468, %469, %476, %483 in 1 : vector<4x64xf32>, vector<4x64xf32>, vector<4x64xf32>, vector<4x64xf32> -> vector<4x256xf32>
    %485 = vector.extract_strided_slice %462 {offsets = [0, 256], sizes = [4, 256], strides = [1, 1]} : vector<4x1024xf32> to vector<4x256xf32>
    %486 = vector.extract_strided_slice %463 {offsets = [0, 256], sizes = [4, 256], strides = [1, 1]} : vector<4x1024xf32> to vector<4x256xf32>
    %487 = vector.extract_strided_slice %485 {offsets = [0, 128], sizes = [4, 64], strides = [1, 1]} : vector<4x256xf32> to vector<4x64xf32>
    %488 = vector.extract_strided_slice %485 {offsets = [0, 192], sizes = [4, 64], strides = [1, 1]} : vector<4x256xf32> to vector<4x64xf32>
    %489 = vector.extract_strided_slice %485 {offsets = [0, 0], sizes = [4, 64], strides = [1, 1]} : vector<4x256xf32> to vector<4x64xf32>
    %490 = vector.extract_strided_slice %486 {offsets = [0, 0], sizes = [4, 64], strides = [1, 1]} : vector<4x256xf32> to vector<4x64xf32>
    %491 = vector.extract_strided_slice %489 {offsets = [0, 32], sizes = [4, 16], strides = [1, 1]} : vector<4x64xf32> to vector<4x16xf32>
    %492 = vector.extract_strided_slice %489 {offsets = [0, 48], sizes = [4, 16], strides = [1, 1]} : vector<4x64xf32> to vector<4x16xf32>
    %493 = vector.extract_strided_slice %490 {offsets = [0, 0], sizes = [4, 16], strides = [1, 1]} : vector<4x64xf32> to vector<4x16xf32>
    %494 = vector.extract_strided_slice %490 {offsets = [0, 16], sizes = [4, 16], strides = [1, 1]} : vector<4x64xf32> to vector<4x16xf32>
    %495 = tpu.concatenate %491, %492, %493, %494 in 1 : vector<4x16xf32>, vector<4x16xf32>, vector<4x16xf32>, vector<4x16xf32> -> vector<4x64xf32>
    %496 = vector.extract_strided_slice %485 {offsets = [0, 64], sizes = [4, 64], strides = [1, 1]} : vector<4x256xf32> to vector<4x64xf32>
    %497 = vector.extract_strided_slice %486 {offsets = [0, 64], sizes = [4, 64], strides = [1, 1]} : vector<4x256xf32> to vector<4x64xf32>
    %498 = vector.extract_strided_slice %496 {offsets = [0, 32], sizes = [4, 16], strides = [1, 1]} : vector<4x64xf32> to vector<4x16xf32>
    %499 = vector.extract_strided_slice %496 {offsets = [0, 48], sizes = [4, 16], strides = [1, 1]} : vector<4x64xf32> to vector<4x16xf32>
    %500 = vector.extract_strided_slice %497 {offsets = [0, 0], sizes = [4, 16], strides = [1, 1]} : vector<4x64xf32> to vector<4x16xf32>
    %501 = vector.extract_strided_slice %497 {offsets = [0, 16], sizes = [4, 16], strides = [1, 1]} : vector<4x64xf32> to vector<4x16xf32>
    %502 = tpu.concatenate %498, %499, %500, %501 in 1 : vector<4x16xf32>, vector<4x16xf32>, vector<4x16xf32>, vector<4x16xf32> -> vector<4x64xf32>
    %503 = tpu.concatenate %487, %488, %495, %502 in 1 : vector<4x64xf32>, vector<4x64xf32>, vector<4x64xf32>, vector<4x64xf32> -> vector<4x256xf32>
    %504 = tpu.concatenate %464, %465, %484, %503 in 1 : vector<4x256xf32>, vector<4x256xf32>, vector<4x256xf32>, vector<4x256xf32> -> vector<4x1024xf32>
    %505 = vector.extract_strided_slice %356 {offsets = [0, 1024], sizes = [4, 1024], strides = [1, 1]} : vector<4x4096xf32> to vector<4x1024xf32>
    %506 = vector.extract_strided_slice %459 {offsets = [0, 1024], sizes = [4, 1024], strides = [1, 1]} : vector<4x4096xf32> to vector<4x1024xf32>
    %507 = vector.extract_strided_slice %505 {offsets = [0, 512], sizes = [4, 256], strides = [1, 1]} : vector<4x1024xf32> to vector<4x256xf32>
    %508 = vector.extract_strided_slice %505 {offsets = [0, 768], sizes = [4, 256], strides = [1, 1]} : vector<4x1024xf32> to vector<4x256xf32>
    %509 = vector.extract_strided_slice %505 {offsets = [0, 0], sizes = [4, 256], strides = [1, 1]} : vector<4x1024xf32> to vector<4x256xf32>
    %510 = vector.extract_strided_slice %506 {offsets = [0, 0], sizes = [4, 256], strides = [1, 1]} : vector<4x1024xf32> to vector<4x256xf32>
    %511 = vector.extract_strided_slice %509 {offsets = [0, 128], sizes = [4, 64], strides = [1, 1]} : vector<4x256xf32> to vector<4x64xf32>
    %512 = vector.extract_strided_slice %509 {offsets = [0, 192], sizes = [4, 64], strides = [1, 1]} : vector<4x256xf32> to vector<4x64xf32>
    %513 = vector.extract_strided_slice %509 {offsets = [0, 0], sizes = [4, 64], strides = [1, 1]} : vector<4x256xf32> to vector<4x64xf32>
    %514 = vector.extract_strided_slice %510 {offsets = [0, 0], sizes = [4, 64], strides = [1, 1]} : vector<4x256xf32> to vector<4x64xf32>
    %515 = vector.extract_strided_slice %513 {offsets = [0, 32], sizes = [4, 16], strides = [1, 1]} : vector<4x64xf32> to vector<4x16xf32>
    %516 = vector.extract_strided_slice %513 {offsets = [0, 48], sizes = [4, 16], strides = [1, 1]} : vector<4x64xf32> to vector<4x16xf32>
    %517 = vector.extract_strided_slice %514 {offsets = [0, 0], sizes = [4, 16], strides = [1, 1]} : vector<4x64xf32> to vector<4x16xf32>
    %518 = vector.extract_strided_slice %514 {offsets = [0, 16], sizes = [4, 16], strides = [1, 1]} : vector<4x64xf32> to vector<4x16xf32>
    %519 = tpu.concatenate %515, %516, %517, %518 in 1 : vector<4x16xf32>, vector<4x16xf32>, vector<4x16xf32>, vector<4x16xf32> -> vector<4x64xf32>
    %520 = vector.extract_strided_slice %509 {offsets = [0, 64], sizes = [4, 64], strides = [1, 1]} : vector<4x256xf32> to vector<4x64xf32>
    %521 = vector.extract_strided_slice %510 {offsets = [0, 64], sizes = [4, 64], strides = [1, 1]} : vector<4x256xf32> to vector<4x64xf32>
    %522 = vector.extract_strided_slice %520 {offsets = [0, 32], sizes = [4, 16], strides = [1, 1]} : vector<4x64xf32> to vector<4x16xf32>
    %523 = vector.extract_strided_slice %520 {offsets = [0, 48], sizes = [4, 16], strides = [1, 1]} : vector<4x64xf32> to vector<4x16xf32>
    %524 = vector.extract_strided_slice %521 {offsets = [0, 0], sizes = [4, 16], strides = [1, 1]} : vector<4x64xf32> to vector<4x16xf32>
    %525 = vector.extract_strided_slice %521 {offsets = [0, 16], sizes = [4, 16], strides = [1, 1]} : vector<4x64xf32> to vector<4x16xf32>
    %526 = tpu.concatenate %522, %523, %524, %525 in 1 : vector<4x16xf32>, vector<4x16xf32>, vector<4x16xf32>, vector<4x16xf32> -> vector<4x64xf32>
    %527 = tpu.concatenate %511, %512, %519, %526 in 1 : vector<4x64xf32>, vector<4x64xf32>, vector<4x64xf32>, vector<4x64xf32> -> vector<4x256xf32>
    %528 = vector.extract_strided_slice %505 {offsets = [0, 256], sizes = [4, 256], strides = [1, 1]} : vector<4x1024xf32> to vector<4x256xf32>
    %529 = vector.extract_strided_slice %506 {offsets = [0, 256], sizes = [4, 256], strides = [1, 1]} : vector<4x1024xf32> to vector<4x256xf32>
    %530 = vector.extract_strided_slice %528 {offsets = [0, 128], sizes = [4, 64], strides = [1, 1]} : vector<4x256xf32> to vector<4x64xf32>
    %531 = vector.extract_strided_slice %528 {offsets = [0, 192], sizes = [4, 64], strides = [1, 1]} : vector<4x256xf32> to vector<4x64xf32>
    %532 = vector.extract_strided_slice %528 {offsets = [0, 0], sizes = [4, 64], strides = [1, 1]} : vector<4x256xf32> to vector<4x64xf32>
    %533 = vector.extract_strided_slice %529 {offsets = [0, 0], sizes = [4, 64], strides = [1, 1]} : vector<4x256xf32> to vector<4x64xf32>
    %534 = vector.extract_strided_slice %532 {offsets = [0, 32], sizes = [4, 16], strides = [1, 1]} : vector<4x64xf32> to vector<4x16xf32>
    %535 = vector.extract_strided_slice %532 {offsets = [0, 48], sizes = [4, 16], strides = [1, 1]} : vector<4x64xf32> to vector<4x16xf32>
    %536 = vector.extract_strided_slice %533 {offsets = [0, 0], sizes = [4, 16], strides = [1, 1]} : vector<4x64xf32> to vector<4x16xf32>
    %537 = vector.extract_strided_slice %533 {offsets = [0, 16], sizes = [4, 16], strides = [1, 1]} : vector<4x64xf32> to vector<4x16xf32>
    %538 = tpu.concatenate %534, %535, %536, %537 in 1 : vector<4x16xf32>, vector<4x16xf32>, vector<4x16xf32>, vector<4x16xf32> -> vector<4x64xf32>
    %539 = vector.extract_strided_slice %528 {offsets = [0, 64], sizes = [4, 64], strides = [1, 1]} : vector<4x256xf32> to vector<4x64xf32>
    %540 = vector.extract_strided_slice %529 {offsets = [0, 64], sizes = [4, 64], strides = [1, 1]} : vector<4x256xf32> to vector<4x64xf32>
    %541 = vector.extract_strided_slice %539 {offsets = [0, 32], sizes = [4, 16], strides = [1, 1]} : vector<4x64xf32> to vector<4x16xf32>
    %542 = vector.extract_strided_slice %539 {offsets = [0, 48], sizes = [4, 16], strides = [1, 1]} : vector<4x64xf32> to vector<4x16xf32>
    %543 = vector.extract_strided_slice %540 {offsets = [0, 0], sizes = [4, 16], strides = [1, 1]} : vector<4x64xf32> to vector<4x16xf32>
    %544 = vector.extract_strided_slice %540 {offsets = [0, 16], sizes = [4, 16], strides = [1, 1]} : vector<4x64xf32> to vector<4x16xf32>
    %545 = tpu.concatenate %541, %542, %543, %544 in 1 : vector<4x16xf32>, vector<4x16xf32>, vector<4x16xf32>, vector<4x16xf32> -> vector<4x64xf32>
    %546 = tpu.concatenate %530, %531, %538, %545 in 1 : vector<4x64xf32>, vector<4x64xf32>, vector<4x64xf32>, vector<4x64xf32> -> vector<4x256xf32>
    %547 = tpu.concatenate %507, %508, %527, %546 in 1 : vector<4x256xf32>, vector<4x256xf32>, vector<4x256xf32>, vector<4x256xf32> -> vector<4x1024xf32>
    %548 = tpu.concatenate %460, %461, %504, %547 in 1 : vector<4x1024xf32>, vector<4x1024xf32>, vector<4x1024xf32>, vector<4x1024xf32> -> vector<4x4096xf32>
    %549 = vector.extract_strided_slice %548 {offsets = [0, 1], sizes = [4, 4095], strides = [1, 1]} : vector<4x4096xf32> to vector<4x4095xf32>
    %cst_50 = arith.constant 0.000000e+00 : f32
    %550 = vector.broadcast %cst_50 : f32 to vector<4x1xf32>
    %551 = tpu.concatenate %549, %550 in 1 : vector<4x4095xf32>, vector<4x1xf32> -> vector<4x4096xf32>
    %cst_51 = arith.constant 0.000000e+00 : f32
    %552 = vector.shape_cast %18 : vector<1x4096xi1> to vector<1x4096xi1>
    %553 = vector.broadcast %552 : vector<1x4096xi1> to vector<4x4096xi1>
    %554 = vector.broadcast %cst_51 : f32 to vector<4x4096xf32>
    %555 = arith.select %553, %554, %551 : vector<4x4096xi1>, vector<4x4096xf32>
    %556 = vector.extract_strided_slice %548 {offsets = [0, 1024], sizes = [4, 1024], strides = [1, 1]} : vector<4x4096xf32> to vector<4x1024xf32>
    %557 = vector.extract_strided_slice %548 {offsets = [0, 0], sizes = [4, 1024], strides = [1, 1]} : vector<4x4096xf32> to vector<4x1024xf32>
    %558 = vector.extract_strided_slice %555 {offsets = [0, 0], sizes = [4, 1024], strides = [1, 1]} : vector<4x4096xf32> to vector<4x1024xf32>
    %559 = vector.extract_strided_slice %557 {offsets = [0, 256], sizes = [4, 256], strides = [1, 1]} : vector<4x1024xf32> to vector<4x256xf32>
    %560 = vector.extract_strided_slice %557 {offsets = [0, 0], sizes = [4, 256], strides = [1, 1]} : vector<4x1024xf32> to vector<4x256xf32>
    %561 = vector.extract_strided_slice %558 {offsets = [0, 0], sizes = [4, 256], strides = [1, 1]} : vector<4x1024xf32> to vector<4x256xf32>
    %562 = vector.extract_strided_slice %560 {offsets = [0, 64], sizes = [4, 64], strides = [1, 1]} : vector<4x256xf32> to vector<4x64xf32>
    %563 = vector.extract_strided_slice %560 {offsets = [0, 0], sizes = [4, 64], strides = [1, 1]} : vector<4x256xf32> to vector<4x64xf32>
    %564 = vector.extract_strided_slice %561 {offsets = [0, 0], sizes = [4, 64], strides = [1, 1]} : vector<4x256xf32> to vector<4x64xf32>
    %565 = vector.extract_strided_slice %563 {offsets = [0, 16], sizes = [4, 16], strides = [1, 1]} : vector<4x64xf32> to vector<4x16xf32>
    %566 = vector.extract_strided_slice %564 {offsets = [0, 0], sizes = [4, 16], strides = [1, 1]} : vector<4x64xf32> to vector<4x16xf32>
    %567 = vector.extract_strided_slice %563 {offsets = [0, 48], sizes = [4, 16], strides = [1, 1]} : vector<4x64xf32> to vector<4x16xf32>
    %568 = vector.extract_strided_slice %564 {offsets = [0, 32], sizes = [4, 16], strides = [1, 1]} : vector<4x64xf32> to vector<4x16xf32>
    %569 = tpu.concatenate %565, %566, %567, %568 in 1 : vector<4x16xf32>, vector<4x16xf32>, vector<4x16xf32>, vector<4x16xf32> -> vector<4x64xf32>
    %570 = vector.extract_strided_slice %560 {offsets = [0, 192], sizes = [4, 64], strides = [1, 1]} : vector<4x256xf32> to vector<4x64xf32>
    %571 = vector.extract_strided_slice %560 {offsets = [0, 128], sizes = [4, 64], strides = [1, 1]} : vector<4x256xf32> to vector<4x64xf32>
    %572 = vector.extract_strided_slice %561 {offsets = [0, 128], sizes = [4, 64], strides = [1, 1]} : vector<4x256xf32> to vector<4x64xf32>
    %573 = vector.extract_strided_slice %571 {offsets = [0, 16], sizes = [4, 16], strides = [1, 1]} : vector<4x64xf32> to vector<4x16xf32>
    %574 = vector.extract_strided_slice %572 {offsets = [0, 0], sizes = [4, 16], strides = [1, 1]} : vector<4x64xf32> to vector<4x16xf32>
    %575 = vector.extract_strided_slice %571 {offsets = [0, 48], sizes = [4, 16], strides = [1, 1]} : vector<4x64xf32> to vector<4x16xf32>
    %576 = vector.extract_strided_slice %572 {offsets = [0, 32], sizes = [4, 16], strides = [1, 1]} : vector<4x64xf32> to vector<4x16xf32>
    %577 = tpu.concatenate %573, %574, %575, %576 in 1 : vector<4x16xf32>, vector<4x16xf32>, vector<4x16xf32>, vector<4x16xf32> -> vector<4x64xf32>
    %578 = tpu.concatenate %562, %569, %570, %577 in 1 : vector<4x64xf32>, vector<4x64xf32>, vector<4x64xf32>, vector<4x64xf32> -> vector<4x256xf32>
    %579 = vector.extract_strided_slice %557 {offsets = [0, 768], sizes = [4, 256], strides = [1, 1]} : vector<4x1024xf32> to vector<4x256xf32>
    %580 = vector.extract_strided_slice %557 {offsets = [0, 512], sizes = [4, 256], strides = [1, 1]} : vector<4x1024xf32> to vector<4x256xf32>
    %581 = vector.extract_strided_slice %558 {offsets = [0, 512], sizes = [4, 256], strides = [1, 1]} : vector<4x1024xf32> to vector<4x256xf32>
    %582 = vector.extract_strided_slice %580 {offsets = [0, 64], sizes = [4, 64], strides = [1, 1]} : vector<4x256xf32> to vector<4x64xf32>
    %583 = vector.extract_strided_slice %580 {offsets = [0, 0], sizes = [4, 64], strides = [1, 1]} : vector<4x256xf32> to vector<4x64xf32>
    %584 = vector.extract_strided_slice %581 {offsets = [0, 0], sizes = [4, 64], strides = [1, 1]} : vector<4x256xf32> to vector<4x64xf32>
    %585 = vector.extract_strided_slice %583 {offsets = [0, 16], sizes = [4, 16], strides = [1, 1]} : vector<4x64xf32> to vector<4x16xf32>
    %586 = vector.extract_strided_slice %584 {offsets = [0, 0], sizes = [4, 16], strides = [1, 1]} : vector<4x64xf32> to vector<4x16xf32>
    %587 = vector.extract_strided_slice %583 {offsets = [0, 48], sizes = [4, 16], strides = [1, 1]} : vector<4x64xf32> to vector<4x16xf32>
    %588 = vector.extract_strided_slice %584 {offsets = [0, 32], sizes = [4, 16], strides = [1, 1]} : vector<4x64xf32> to vector<4x16xf32>
    %589 = tpu.concatenate %585, %586, %587, %588 in 1 : vector<4x16xf32>, vector<4x16xf32>, vector<4x16xf32>, vector<4x16xf32> -> vector<4x64xf32>
    %590 = vector.extract_strided_slice %580 {offsets = [0, 192], sizes = [4, 64], strides = [1, 1]} : vector<4x256xf32> to vector<4x64xf32>
    %591 = vector.extract_strided_slice %580 {offsets = [0, 128], sizes = [4, 64], strides = [1, 1]} : vector<4x256xf32> to vector<4x64xf32>
    %592 = vector.extract_strided_slice %581 {offsets = [0, 128], sizes = [4, 64], strides = [1, 1]} : vector<4x256xf32> to vector<4x64xf32>
    %593 = vector.extract_strided_slice %591 {offsets = [0, 16], sizes = [4, 16], strides = [1, 1]} : vector<4x64xf32> to vector<4x16xf32>
    %594 = vector.extract_strided_slice %592 {offsets = [0, 0], sizes = [4, 16], strides = [1, 1]} : vector<4x64xf32> to vector<4x16xf32>
    %595 = vector.extract_strided_slice %591 {offsets = [0, 48], sizes = [4, 16], strides = [1, 1]} : vector<4x64xf32> to vector<4x16xf32>
    %596 = vector.extract_strided_slice %592 {offsets = [0, 32], sizes = [4, 16], strides = [1, 1]} : vector<4x64xf32> to vector<4x16xf32>
    %597 = tpu.concatenate %593, %594, %595, %596 in 1 : vector<4x16xf32>, vector<4x16xf32>, vector<4x16xf32>, vector<4x16xf32> -> vector<4x64xf32>
    %598 = tpu.concatenate %582, %589, %590, %597 in 1 : vector<4x64xf32>, vector<4x64xf32>, vector<4x64xf32>, vector<4x64xf32> -> vector<4x256xf32>
    %599 = tpu.concatenate %559, %578, %579, %598 in 1 : vector<4x256xf32>, vector<4x256xf32>, vector<4x256xf32>, vector<4x256xf32> -> vector<4x1024xf32>
    %600 = vector.extract_strided_slice %548 {offsets = [0, 3072], sizes = [4, 1024], strides = [1, 1]} : vector<4x4096xf32> to vector<4x1024xf32>
    %601 = vector.extract_strided_slice %548 {offsets = [0, 2048], sizes = [4, 1024], strides = [1, 1]} : vector<4x4096xf32> to vector<4x1024xf32>
    %602 = vector.extract_strided_slice %555 {offsets = [0, 2048], sizes = [4, 1024], strides = [1, 1]} : vector<4x4096xf32> to vector<4x1024xf32>
    %603 = vector.extract_strided_slice %601 {offsets = [0, 256], sizes = [4, 256], strides = [1, 1]} : vector<4x1024xf32> to vector<4x256xf32>
    %604 = vector.extract_strided_slice %601 {offsets = [0, 0], sizes = [4, 256], strides = [1, 1]} : vector<4x1024xf32> to vector<4x256xf32>
    %605 = vector.extract_strided_slice %602 {offsets = [0, 0], sizes = [4, 256], strides = [1, 1]} : vector<4x1024xf32> to vector<4x256xf32>
    %606 = vector.extract_strided_slice %604 {offsets = [0, 64], sizes = [4, 64], strides = [1, 1]} : vector<4x256xf32> to vector<4x64xf32>
    %607 = vector.extract_strided_slice %604 {offsets = [0, 0], sizes = [4, 64], strides = [1, 1]} : vector<4x256xf32> to vector<4x64xf32>
    %608 = vector.extract_strided_slice %605 {offsets = [0, 0], sizes = [4, 64], strides = [1, 1]} : vector<4x256xf32> to vector<4x64xf32>
    %609 = vector.extract_strided_slice %607 {offsets = [0, 16], sizes = [4, 16], strides = [1, 1]} : vector<4x64xf32> to vector<4x16xf32>
    %610 = vector.extract_strided_slice %608 {offsets = [0, 0], sizes = [4, 16], strides = [1, 1]} : vector<4x64xf32> to vector<4x16xf32>
    %611 = vector.extract_strided_slice %607 {offsets = [0, 48], sizes = [4, 16], strides = [1, 1]} : vector<4x64xf32> to vector<4x16xf32>
    %612 = vector.extract_strided_slice %608 {offsets = [0, 32], sizes = [4, 16], strides = [1, 1]} : vector<4x64xf32> to vector<4x16xf32>
    %613 = tpu.concatenate %609, %610, %611, %612 in 1 : vector<4x16xf32>, vector<4x16xf32>, vector<4x16xf32>, vector<4x16xf32> -> vector<4x64xf32>
    %614 = vector.extract_strided_slice %604 {offsets = [0, 192], sizes = [4, 64], strides = [1, 1]} : vector<4x256xf32> to vector<4x64xf32>
    %615 = vector.extract_strided_slice %604 {offsets = [0, 128], sizes = [4, 64], strides = [1, 1]} : vector<4x256xf32> to vector<4x64xf32>
    %616 = vector.extract_strided_slice %605 {offsets = [0, 128], sizes = [4, 64], strides = [1, 1]} : vector<4x256xf32> to vector<4x64xf32>
    %617 = vector.extract_strided_slice %615 {offsets = [0, 16], sizes = [4, 16], strides = [1, 1]} : vector<4x64xf32> to vector<4x16xf32>
    %618 = vector.extract_strided_slice %616 {offsets = [0, 0], sizes = [4, 16], strides = [1, 1]} : vector<4x64xf32> to vector<4x16xf32>
    %619 = vector.extract_strided_slice %615 {offsets = [0, 48], sizes = [4, 16], strides = [1, 1]} : vector<4x64xf32> to vector<4x16xf32>
    %620 = vector.extract_strided_slice %616 {offsets = [0, 32], sizes = [4, 16], strides = [1, 1]} : vector<4x64xf32> to vector<4x16xf32>
    %621 = tpu.concatenate %617, %618, %619, %620 in 1 : vector<4x16xf32>, vector<4x16xf32>, vector<4x16xf32>, vector<4x16xf32> -> vector<4x64xf32>
    %622 = tpu.concatenate %606, %613, %614, %621 in 1 : vector<4x64xf32>, vector<4x64xf32>, vector<4x64xf32>, vector<4x64xf32> -> vector<4x256xf32>
    %623 = vector.extract_strided_slice %601 {offsets = [0, 768], sizes = [4, 256], strides = [1, 1]} : vector<4x1024xf32> to vector<4x256xf32>
    %624 = vector.extract_strided_slice %601 {offsets = [0, 512], sizes = [4, 256], strides = [1, 1]} : vector<4x1024xf32> to vector<4x256xf32>
    %625 = vector.extract_strided_slice %602 {offsets = [0, 512], sizes = [4, 256], strides = [1, 1]} : vector<4x1024xf32> to vector<4x256xf32>
    %626 = vector.extract_strided_slice %624 {offsets = [0, 64], sizes = [4, 64], strides = [1, 1]} : vector<4x256xf32> to vector<4x64xf32>
    %627 = vector.extract_strided_slice %624 {offsets = [0, 0], sizes = [4, 64], strides = [1, 1]} : vector<4x256xf32> to vector<4x64xf32>
    %628 = vector.extract_strided_slice %625 {offsets = [0, 0], sizes = [4, 64], strides = [1, 1]} : vector<4x256xf32> to vector<4x64xf32>
    %629 = vector.extract_strided_slice %627 {offsets = [0, 16], sizes = [4, 16], strides = [1, 1]} : vector<4x64xf32> to vector<4x16xf32>
    %630 = vector.extract_strided_slice %628 {offsets = [0, 0], sizes = [4, 16], strides = [1, 1]} : vector<4x64xf32> to vector<4x16xf32>
    %631 = vector.extract_strided_slice %627 {offsets = [0, 48], sizes = [4, 16], strides = [1, 1]} : vector<4x64xf32> to vector<4x16xf32>
    %632 = vector.extract_strided_slice %628 {offsets = [0, 32], sizes = [4, 16], strides = [1, 1]} : vector<4x64xf32> to vector<4x16xf32>
    %633 = tpu.concatenate %629, %630, %631, %632 in 1 : vector<4x16xf32>, vector<4x16xf32>, vector<4x16xf32>, vector<4x16xf32> -> vector<4x64xf32>
    %634 = vector.extract_strided_slice %624 {offsets = [0, 192], sizes = [4, 64], strides = [1, 1]} : vector<4x256xf32> to vector<4x64xf32>
    %635 = vector.extract_strided_slice %624 {offsets = [0, 128], sizes = [4, 64], strides = [1, 1]} : vector<4x256xf32> to vector<4x64xf32>
    %636 = vector.extract_strided_slice %625 {offsets = [0, 128], sizes = [4, 64], strides = [1, 1]} : vector<4x256xf32> to vector<4x64xf32>
    %637 = vector.extract_strided_slice %635 {offsets = [0, 16], sizes = [4, 16], strides = [1, 1]} : vector<4x64xf32> to vector<4x16xf32>
    %638 = vector.extract_strided_slice %636 {offsets = [0, 0], sizes = [4, 16], strides = [1, 1]} : vector<4x64xf32> to vector<4x16xf32>
    %639 = vector.extract_strided_slice %635 {offsets = [0, 48], sizes = [4, 16], strides = [1, 1]} : vector<4x64xf32> to vector<4x16xf32>
    %640 = vector.extract_strided_slice %636 {offsets = [0, 32], sizes = [4, 16], strides = [1, 1]} : vector<4x64xf32> to vector<4x16xf32>
    %641 = tpu.concatenate %637, %638, %639, %640 in 1 : vector<4x16xf32>, vector<4x16xf32>, vector<4x16xf32>, vector<4x16xf32> -> vector<4x64xf32>
    %642 = tpu.concatenate %626, %633, %634, %641 in 1 : vector<4x64xf32>, vector<4x64xf32>, vector<4x64xf32>, vector<4x64xf32> -> vector<4x256xf32>
    %643 = tpu.concatenate %603, %622, %623, %642 in 1 : vector<4x256xf32>, vector<4x256xf32>, vector<4x256xf32>, vector<4x256xf32> -> vector<4x1024xf32>
    %644 = tpu.concatenate %556, %599, %600, %643 in 1 : vector<4x1024xf32>, vector<4x1024xf32>, vector<4x1024xf32>, vector<4x1024xf32> -> vector<4x4096xf32>
    %645 = tpu.concatenate %356, %452, %548, %644, %37 in 0 : vector<4x4096xf32>, vector<4x4096xf32>, vector<4x4096xf32>, vector<4x4096xf32>, vector<1x4096xf32> -> vector<17x4096xf32>
    %c0_52 = arith.constant 0 : index
    %c0_53 = arith.constant 0 : index
    %646 = vector.load %arg6[%c0_52, %c0_53] : memref<32x17xf32, #tpu.memory_space<vmem>>, vector<32x17xf32>
    %cst_54 = arith.constant dense<0.000000e+00> : vector<32x4096xf32>
    %647 = tpu.matmul %646, %645, %cst_54 {dimension_numbers = #tpu.dot_dimension_numbers<[1], [0], [0], [1], [0, 0, 1, 1], [], []>} : vector<32x17xf32>, vector<17x4096xf32>, vector<32x4096xf32> -> vector<32x4096xf32>
    %648 = vector.extract_strided_slice %647 {offsets = [0, 0], sizes = [3, 4096], strides = [1, 1]} : vector<32x4096xf32> to vector<3x4096xf32>
    %649 = vector.extract_strided_slice %647 {offsets = [8, 0], sizes = [3, 4096], strides = [1, 1]} : vector<32x4096xf32> to vector<3x4096xf32>
    %650 = vector.extract_strided_slice %647 {offsets = [16, 0], sizes = [3, 4096], strides = [1, 1]} : vector<32x4096xf32> to vector<3x4096xf32>
    %651 = vector.extract_strided_slice %647 {offsets = [24, 0], sizes = [3, 4096], strides = [1, 1]} : vector<32x4096xf32> to vector<3x4096xf32>
    %c0_55 = arith.constant 0 : index
    %c0_56 = arith.constant 0 : index
    %c0_57 = arith.constant 0 : index
    %652 = vector.load %arg7[%c0_55, %c0_56, %c0_57] : memref<1x3x16384xf32, #tpu.memory_space<vmem>>, vector<1x3x4096xf32>
    %653 = vector.shape_cast %652 : vector<1x3x4096xf32> to vector<3x4096xf32>
    %654 = vector.shape_cast %648 : vector<3x4096xf32> to vector<1x3x4096xf32>
    tpu.vector_store %arg7[%c0_55, %c0_56, %c0_57], %654 {strides = array<i32>} : memref<1x3x16384xf32, #tpu.memory_space<vmem>>, vector<1x3x4096xf32>,
    %c0_58 = arith.constant 0 : index
    %c0_59 = arith.constant 0 : index
    %c4096 = arith.constant 4096 : index
    %655 = vector.load %arg7[%c0_58, %c0_59, %c4096] : memref<1x3x16384xf32, #tpu.memory_space<vmem>>, vector<1x3x4096xf32>
    %656 = vector.shape_cast %655 : vector<1x3x4096xf32> to vector<3x4096xf32>
    %657 = vector.shape_cast %649 : vector<3x4096xf32> to vector<1x3x4096xf32>
    tpu.vector_store %arg7[%c0_58, %c0_59, %c4096], %657 {strides = array<i32>} : memref<1x3x16384xf32, #tpu.memory_space<vmem>>, vector<1x3x4096xf32>,
    %c0_60 = arith.constant 0 : index
    %c0_61 = arith.constant 0 : index
    %c8192 = arith.constant 8192 : index
    %658 = vector.load %arg7[%c0_60, %c0_61, %c8192] : memref<1x3x16384xf32, #tpu.memory_space<vmem>>, vector<1x3x4096xf32>
    %659 = vector.shape_cast %658 : vector<1x3x4096xf32> to vector<3x4096xf32>
    %660 = vector.shape_cast %650 : vector<3x4096xf32> to vector<1x3x4096xf32>
    tpu.vector_store %arg7[%c0_60, %c0_61, %c8192], %660 {strides = array<i32>} : memref<1x3x16384xf32, #tpu.memory_space<vmem>>, vector<1x3x4096xf32>,
    %c0_62 = arith.constant 0 : index
    %c0_63 = arith.constant 0 : index
    %c12288 = arith.constant 12288 : index
    %661 = vector.load %arg7[%c0_62, %c0_63, %c12288] : memref<1x3x16384xf32, #tpu.memory_space<vmem>>, vector<1x3x4096xf32>
    %662 = vector.shape_cast %661 : vector<1x3x4096xf32> to vector<3x4096xf32>
    %663 = vector.shape_cast %651 : vector<3x4096xf32> to vector<1x3x4096xf32>
    tpu.vector_store %arg7[%c0_62, %c0_63, %c12288], %663 {strides = array<i32>} : memref<1x3x16384xf32, #tpu.memory_space<vmem>>, vector<1x3x4096xf32>,
    return
  }
  func.func @transform_0(%arg0: i32) -> (i32, i32, i32) {
    %c0_i32 = arith.constant 0 : i32
    %c0_i32_0 = arith.constant 0 : i32
    %c0_i32_1 = arith.constant 0 : i32
    return %arg0, %c0_i32, %c0_i32_0 : i32, i32, i32
  }
  func.func @transform_1(%arg0: i32) -> (i32, i32) {
    %c0_i32 = arith.constant 0 : i32
    %c0_i32_0 = arith.constant 0 : i32
    %c0_i32_1 = arith.constant 0 : i32
    return %c0_i32, %c0_i32_0 : i32, i32
  }
  func.func @transform_2(%arg0: i32) -> (i32, i32) {
    %c0_i32 = arith.constant 0 : i32
    %c0_i32_0 = arith.constant 0 : i32
    %c0_i32_1 = arith.constant 0 : i32
    return %c0_i32, %c0_i32_0 : i32, i32
  }
  func.func @transform_3(%arg0: i32) -> (i32, i32) {
    %c0_i32 = arith.constant 0 : i32
    %c0_i32_0 = arith.constant 0 : i32
    %c0_i32_1 = arith.constant 0 : i32
    return %c0_i32, %c0_i32_0 : i32, i32
  }
  func.func @transform_4(%arg0: i32) -> (i32, i32) {
    %c0_i32 = arith.constant 0 : i32
    %c0_i32_0 = arith.constant 0 : i32
    %c0_i32_1 = arith.constant 0 : i32
    return %c0_i32, %c0_i32_0 : i32, i32
  }
  func.func @transform_5(%arg0: i32) -> (i32, i32) {
    %c0_i32 = arith.constant 0 : i32
    %c0_i32_0 = arith.constant 0 : i32
    %c0_i32_1 = arith.constant 0 : i32
    return %c0_i32, %c0_i32_0 : i32, i32
  }
  func.func @transform_6(%arg0: i32) -> (i32, i32, i32) {
    %c0_i32 = arith.constant 0 : i32
    %c0_i32_0 = arith.constant 0 : i32
    %c0_i32_1 = arith.constant 0 : i32
    return %arg0, %c0_i32, %c0_i32_0 : i32, i32, i32
  }
}

</mosaic_0001>

<llo_original>
// kernel: decoder_forward.1
$region0: #{decoder_forward.1}
  #allocation0 [shape = 'u32[]', space=smem, size = 0x4, offset = 0x4, fixed_abs, tag = 'smem constant byte address 0x4 - core index']
  #allocation1 [shape = 'u32[144,128]{1,0:T(1,128)}', space=vmem, size = 0x12000, scoped, tag = 'internal scratch']
  %s0 = inlined_call_operand.vmem [shape: f32[2,64,16], index: 0, kind: input, shape index: {}]
  %s1 = inlined_call_operand.vmem [shape: f32[128,257], index: 1, kind: input, shape index: {}]
  %s2 = inlined_call_operand.vmem [shape: f32[64,129], index: 2, kind: input, shape index: {}]
  %s3 = inlined_call_operand.vmem [shape: f32[32,65], index: 3, kind: input, shape index: {}]
  %s4 = inlined_call_operand.vmem [shape: f32[32,33], index: 4, kind: input, shape index: {}]
  %s5 = inlined_call_operand.vmem [shape: f32[32,17], index: 5, kind: input, shape index: {}]
  %s6 = inlined_call_operand.vmem [shape: f32[2,3,16384], index: 6, kind: output, shape index: {}]
  %s7 = sld [smem:[#allocation0]]
  $region57: #{decoder_forward.1} parent=0
    _
  %s9 = ssub.s32 1, %s7
  %s10 = scalar_select 0, %s9, %s7
  loop: start=0, step=1, limit=4
  $region2: #{decoder_forward.1} parent=0 // loop_pre_header
    _
  $region3: #{decoder_forward.1} parent=0 // loop_header
    %s12 = sphi 0, %s16
    %p13 = scmp.ge.s32.totalorder %s12, 4
    %s22 = sphi 0, %s24
    %s25 = sphi 0, %s22
    %s26 = sphi 0, %s25
    %s42 = sphi 0, %s26
    %s46 = sphi 0, %s46
    %s48 = sphi 0, %s46
    %s49 = sphi 0, %s48
    %s63 = sphi 0, %s49
    %s67 = sphi 0, %s67
    %s69 = sphi 0, %s67
    %s70 = sphi 0, %s69
    %s84 = sphi 0, %s70
    %s88 = sphi 0, %s88
    %s90 = sphi 0, %s88
    %s91 = sphi 0, %s90
    %s105 = sphi 0, %s91
    %s109 = sphi 0, %s109
    %s111 = sphi 0, %s109
    %s112 = sphi 0, %s111
    %s126 = sphi 0, %s112
    %s130 = sphi 0, %s130
    %s132 = sphi 0, %s130
    %s133 = sphi 0, %s132
    %s147 = sphi 0, %s133
    %s153 = sphi 0, %s155
    %s156 = sphi 0, %s153
    %s157 = sphi 0, %s156
    %s173 = sphi 0, %s157
  $region4: #{decoder_forward.1} parent=0 // loop_header_branch
    %15 = sbr.rel (%p13) target = $region8
  $region5: #{decoder_forward.1} parent=0 // loop_body
    %s17 = ssub.s32 %s12, 1
    %s18 = ssub.s32 %s12, 2
    %s19 = sadd.s32 %s12, 1
    %s20 = ssub.s32 %s12, %s19
    %p21 = scmp.eq.s32.totalorder %s20, 0
    %s23 = sadd.s32 %s22, 1
    %s24 = scalar_select %p21, %s22, %s23
    %p27 = pneg %p21
    %p28 = scmp.eq.s32.totalorder %s12, 1
    %p29 = por %p27, %p28
    %p30 = scmp.ne.s32.totalorder %s22, %s25
    %p31 = scmp.eq.s32.totalorder %s12, 0
    %p32 = por %p30, %p31
    %p33 = scmp.ne.s32.totalorder %s22, %s25
    %p34 = scmp.eq.s32.totalorder %s17, 1
    %p35 = por %p33, %p34
    %p36 = scmp.ne.s32.totalorder %s25, %s26
    %p37 = scmp.eq.s32.totalorder %s17, 0
    %p38 = por %p36, %p37
    %p39 = scmp.ne.s32.totalorder %s25, %s26
    %p40 = scmp.eq.s32.totalorder %s18, 1
    %p41 = por %p39, %p40
    %p43 = scmp.ne.s32.totalorder %s26, %s42
    %p44 = scmp.eq.s32.totalorder %s18, 0
    %p45 = por %p43, %p44
    %s47 = sadd.s32 %s46, 1
    %p50 = scmp.eq.s32.totalorder %s12, 1
    %p51 = scmp.ne.s32.totalorder %s46, %s48
    %p52 = scmp.eq.s32.totalorder %s12, 0
    %p53 = por %p51, %p52
    %p54 = scmp.ne.s32.totalorder %s46, %s48
    %p55 = scmp.eq.s32.totalorder %s17, 1
    %p56 = por %p54, %p55
    %p57 = scmp.ne.s32.totalorder %s48, %s49
    %p58 = scmp.eq.s32.totalorder %s17, 0
    %p59 = por %p57, %p58
    %p60 = scmp.ne.s32.totalorder %s48, %s49
    %p61 = scmp.eq.s32.totalorder %s18, 1
    %p62 = por %p60, %p61
    %p64 = scmp.ne.s32.totalorder %s49, %s63
    %p65 = scmp.eq.s32.totalorder %s18, 0
    %p66 = por %p64, %p65
    %s68 = sadd.s32 %s67, 1
    %p71 = scmp.eq.s32.totalorder %s12, 1
    %p72 = scmp.ne.s32.totalorder %s67, %s69
    %p73 = scmp.eq.s32.totalorder %s12, 0
    %p74 = por %p72, %p73
    %p75 = scmp.ne.s32.totalorder %s67, %s69
    %p76 = scmp.eq.s32.totalorder %s17, 1
    %p77 = por %p75, %p76
    %p78 = scmp.ne.s32.totalorder %s69, %s70
    %p79 = scmp.eq.s32.totalorder %s17, 0
    %p80 = por %p78, %p79
    %p81 = scmp.ne.s32.totalorder %s69, %s70
    %p82 = scmp.eq.s32.totalorder %s18, 1
    %p83 = por %p81, %p82
    %p85 = scmp.ne.s32.totalorder %s70, %s84
    %p86 = scmp.eq.s32.totalorder %s18, 0
    %p87 = por %p85, %p86
    %s89 = sadd.s32 %s88, 1
    %p92 = scmp.eq.s32.totalorder %s12, 1
    %p93 = scmp.ne.s32.totalorder %s88, %s90
    %p94 = scmp.eq.s32.totalorder %s12, 0
    %p95 = por %p93, %p94
    %p96 = scmp.ne.s32.totalorder %s88, %s90
    %p97 = scmp.eq.s32.totalorder %s17, 1
    %p98 = por %p96, %p97
    %p99 = scmp.ne.s32.totalorder %s90, %s91
    %p100 = scmp.eq.s32.totalorder %s17, 0
    %p101 = por %p99, %p100
    %p102 = scmp.ne.s32.totalorder %s90, %s91
    %p103 = scmp.eq.s32.totalorder %s18, 1
    %p104 = por %p102, %p103
    %p106 = scmp.ne.s32.totalorder %s91, %s105
    %p107 = scmp.eq.s32.totalorder %s18, 0
    %p108 = por %p106, %p107
    %s110 = sadd.s32 %s109, 1
    %p113 = scmp.eq.s32.totalorder %s12, 1
    %p114 = scmp.ne.s32.totalorder %s109, %s111
    %p115 = scmp.eq.s32.totalorder %s12, 0
    %p116 = por %p114, %p115
    %p117 = scmp.ne.s32.totalorder %s109, %s111
    %p118 = scmp.eq.s32.totalorder %s17, 1
    %p119 = por %p117, %p118
    %p120 = scmp.ne.s32.totalorder %s111, %s112
    %p121 = scmp.eq.s32.totalorder %s17, 0
    %p122 = por %p120, %p121
    %p123 = scmp.ne.s32.totalorder %s111, %s112
    %p124 = scmp.eq.s32.totalorder %s18, 1
    %p125 = por %p123, %p124
    %p127 = scmp.ne.s32.totalorder %s112, %s126
    %p128 = scmp.eq.s32.totalorder %s18, 0
    %p129 = por %p127, %p128
    %s131 = sadd.s32 %s130, 1
    %p134 = scmp.eq.s32.totalorder %s12, 1
    %p135 = scmp.ne.s32.totalorder %s130, %s132
    %p136 = scmp.eq.s32.totalorder %s12, 0
    %p137 = por %p135, %p136
    %p138 = scmp.ne.s32.totalorder %s130, %s132
    %p139 = scmp.eq.s32.totalorder %s17, 1
    %p140 = por %p138, %p139
    %p141 = scmp.ne.s32.totalorder %s132, %s133
    %p142 = scmp.eq.s32.totalorder %s17, 0
    %p143 = por %p141, %p142
    %p144 = scmp.ne.s32.totalorder %s132, %s133
    %p145 = scmp.eq.s32.totalorder %s18, 1
    %p146 = por %p144, %p145
    %p148 = scmp.ne.s32.totalorder %s133, %s147
    %p149 = scmp.eq.s32.totalorder %s18, 0
    %p150 = por %p148, %p149
    %s151 = ssub.s32 %s12, %s19
    %p152 = scmp.eq.s32.totalorder %s151, 0
    %s154 = sadd.s32 %s153, 1
    %s155 = scalar_select %p152, %s153, %s154
    %p158 = pneg %p152
    %p159 = scmp.eq.s32.totalorder %s12, 1
    %p160 = por %p158, %p159
    %p161 = scmp.ne.s32.totalorder %s153, %s156
    %p162 = scmp.eq.s32.totalorder %s12, 0
    %p163 = por %p161, %p162
    %p164 = scmp.ne.s32.totalorder %s153, %s156
    %p165 = scmp.eq.s32.totalorder %s17, 1
    %p166 = por %p164, %p165
    %p167 = scmp.ne.s32.totalorder %s156, %s157
    %p168 = scmp.eq.s32.totalorder %s17, 0
    %p169 = por %p167, %p168
    %p170 = scmp.ne.s32.totalorder %s156, %s157
    %p171 = scmp.eq.s32.totalorder %s18, 1
    %p172 = por %p170, %p171
    %p174 = scmp.ne.s32.totalorder %s157, %s173
    %p175 = scmp.eq.s32.totalorder %s18, 0
    %p176 = por %p174, %p175
    %p177 = scmp.le.s32.totalorder 1, %s12
    %p178 = scmp.lt.s32.totalorder %s12, 3
    %p179 = pnand %p177, %p178
    %p180 = pneg %p179
    // Predicated region
    $region9: #{decoder_forward.1} parent=5 // pred_check
      _
    $region10: #{decoder_forward.1} parent=5 // pred_check_branch
      %182 = sbr.rel (%p179) target = $region12
    $region11: #{decoder_forward.1} parent=5 // pred_region
      %s183 = ssub.s32 %s12, 1
      // Predicated region
      $region13: #{decoder_forward.1} parent=11 // pred_check
        %p184 = pneg %p59
      $region14: #{decoder_forward.1} parent=11 // pred_check_branch
        %186 = sbr.rel (%p184) target = $region16
      $region15: #{decoder_forward.1} parent=11 // pred_region
        _
      $region16: #{decoder_forward.1} parent=11 // pred_fallthru
        _
      // Predicated region
      $region17: #{decoder_forward.1} parent=11 // pred_check
        %p187 = pneg %p80
      $region18: #{decoder_forward.1} parent=11 // pred_check_branch
        %189 = sbr.rel (%p187) target = $region20
      $region19: #{decoder_forward.1} parent=11 // pred_region
        _
      $region20: #{decoder_forward.1} parent=11 // pred_fallthru
        _
      // Predicated region
      $region21: #{decoder_forward.1} parent=11 // pred_check
        %p190 = pneg %p101
      $region22: #{decoder_forward.1} parent=11 // pred_check_branch
        %192 = sbr.rel (%p190) target = $region24
      $region23: #{decoder_forward.1} parent=11 // pred_region
        _
      $region24: #{decoder_forward.1} parent=11 // pred_fallthru
        _
      // Predicated region
      $region25: #{decoder_forward.1} parent=11 // pred_check
        %p193 = pneg %p122
      $region26: #{decoder_forward.1} parent=11 // pred_check_branch
        %195 = sbr.rel (%p193) target = $region28
      $region27: #{decoder_forward.1} parent=11 // pred_region
        _
      $region28: #{decoder_forward.1} parent=11 // pred_fallthru
        _
      // Predicated region
      $region29: #{decoder_forward.1} parent=11 // pred_check
        %p196 = pneg %p143
      $region30: #{decoder_forward.1} parent=11 // pred_check_branch
        %198 = sbr.rel (%p196) target = $region32
      $region31: #{decoder_forward.1} parent=11 // pred_region
        _
      $region32: #{decoder_forward.1} parent=11 // pred_fallthru
        _
    $region12: #{decoder_forward.1} parent=5 // pred_fallthru
      _
    %p199 = scmp.lt.s32.totalorder %s12, 2
    // Predicated region
    $region33: #{decoder_forward.1} parent=5 // pred_check
      %p200 = pneg %p199
    $region34: #{decoder_forward.1} parent=5 // pred_check_branch
      %202 = sbr.rel (%p200) target = $region36
    $region35: #{decoder_forward.1} parent=5 // pred_region
      // Predicated region
      $region37: #{decoder_forward.1} parent=35 // pred_check
        %p203 = pneg %p32
      $region38: #{decoder_forward.1} parent=35 // pred_check_branch
        %205 = sbr.rel (%p203) target = $region40
      $region39: #{decoder_forward.1} parent=35 // pred_region
        %p206 = scmp.lt.s32.totalorder %s12, 1
        %s207 = scalar_select %p206, %s12, 1
        %s208 = smul.addr %s207, 8
        %s209 = smul.addr %s208, 8
        %s210 = scalar_lea.vmem %s0, %s209
      $region40: #{decoder_forward.1} parent=35 // pred_fallthru
        _
    $region36: #{decoder_forward.1} parent=5 // pred_fallthru
      _
    %p211 = scmp.le.s32.totalorder 1, %s12
    %p212 = scmp.lt.s32.totalorder %s12, 3
    %p213 = pnand %p211, %p212
    %p214 = pneg %p213
    // Predicated region
    $region41: #{decoder_forward.1} parent=5 // pred_check
      _
    $region42: #{decoder_forward.1} parent=5 // pred_check_branch
      %216 = sbr.rel (%p213) target = $region44
    $region43: #{decoder_forward.1} parent=5 // pred_region
      %s217 = ssub.s32 %s12, 1
      %p218 = scmp.lt.s32.totalorder %s17, 1
      %s219 = scalar_select %p218, %s17, 1
      %s220 = smul.addr %s219, 8
      %s221 = smul.addr %s220, 8
      %s222 = scalar_lea.vmem %s0, %s221
      %p223 = pneg %p38
      %p224 = pneg %p35
      %p225 = pneg %p59
      %p226 = pneg %p56
      %p227 = pneg %p80
      %p228 = pneg %p77
      %p229 = pneg %p101
      %p230 = pneg %p98
      %p231 = pneg %p122
      %p232 = pneg %p119
      %p233 = pneg %p143
      %p234 = pneg %p140
      %p235 = pneg %p169
      %p236 = pneg %p166
      %p237 = scmp.lt.s32.totalorder %s17, 1
      %s238 = scalar_select %p237, %s17, 1
      %s239 = smul.addr %s238, 128
      %s240 = smul.addr %s239, 4
      %s241 = scalar_lea.vmem %s6, %s240
      %p242 = scmp.lt.s32.totalorder %s17, 1
      %s243 = scalar_select %p242, %s17, 1
      %s244 = smul.addr %s243, 8
      %s245 = smul.addr %s244, 8
      %s246 = scalar_lea.vmem %s0, %s245
      %p247 = scmp.lt.s32.totalorder %s17, 1
      %s248 = scalar_select %p247, %s17, 1
      %s249 = smul.addr %s248, 128
      %s250 = smul.addr %s249, 4
      %s251 = scalar_lea.vmem %s6, %s250
      %v252 = vlaneseq
      %v253 = vand.u32 %v252, 127
      %v254 = vadd.s32 %v253, 128
      %v255 = vadd.s32 %v253, 256
      %v256 = vadd.s32 %v253, 512
      %v257 = vadd.s32 %v253, 640
      %v258 = vadd.s32 %v253, 1024
      %v259 = vadd.s32 %v253, 1280
      %v260 = vadd.s32 %v253, 2048
      %v261 = vadd.s32 %v253, 2176
      %v262 = vadd.s32 %v253, 2560
      %v263 = vadd.s32 %v253, 2688
      %vm264 = vcmp.lt.s32.totalorder %v253, 0
      %v265 = vsub.s32 0, %v253
      %v266 = vsel %vm264, %v265, %v253
      %v267 = vshrl.u32 %v266, 2
      %v268 = vand.u32 %v266, 3
      %v269 = vsub.s32 0, %v268
      %v270 = vsel %vm264, %v269, %v268
      %vm271 = vcmp.lt.s32.totalorder %v254, 0
      %v272 = vsub.s32 0, %v254
      %v273 = vsel %vm271, %v272, %v254
      %v274 = vshrl.u32 %v273, 2
      %v275 = vand.u32 %v273, 3
      %v276 = vsub.s32 0, %v275
      %v277 = vsel %vm271, %v276, %v275
      %vm278 = vcmp.lt.s32.totalorder %v256, 0
      %v279 = vsub.s32 0, %v256
      %v280 = vsel %vm278, %v279, %v256
      %v281 = vshrl.u32 %v280, 2
      %v282 = vand.u32 %v280, 3
      %v283 = vsub.s32 0, %v282
      %v284 = vsel %vm278, %v283, %v282
      %vm285 = vcmp.lt.s32.totalorder %v257, 0
      %v286 = vsub.s32 0, %v257
      %v287 = vsel %vm285, %v286, %v257
      %v288 = vshrl.u32 %v287, 2
      %v289 = vand.u32 %v287, 3
      %v290 = vsub.s32 0, %v289
      %v291 = vsel %vm285, %v290, %v289
      %vm292 = vcmp.lt.s32.totalorder %v260, 0
      %v293 = vsub.s32 0, %v260
      %v294 = vsel %vm292, %v293, %v260
      %v295 = vshrl.u32 %v294, 2
      %v296 = vand.u32 %v294, 3
      %v297 = vsub.s32 0, %v296
      %v298 = vsel %vm292, %v297, %v296
      %vm299 = vcmp.lt.s32.totalorder %v261, 0
      %v300 = vsub.s32 0, %v261
      %v301 = vsel %vm299, %v300, %v261
      %v302 = vshrl.u32 %v301, 2
      %v303 = vand.u32 %v301, 3
      %v304 = vsub.s32 0, %v303
      %v305 = vsel %vm299, %v304, %v303
      %vm306 = vcmp.lt.s32.totalorder %v262, 0
      %v307 = vsub.s32 0, %v262
      %v308 = vsel %vm306, %v307, %v262
      %v309 = vshrl.u32 %v308, 2
      %v310 = vand.u32 %v308, 3
      %v311 = vsub.s32 0, %v310
      %v312 = vsel %vm306, %v311, %v310
      %vm313 = vcmp.lt.s32.totalorder %v263, 0
      %v314 = vsub.s32 0, %v263
      %v315 = vsel %vm313, %v314, %v263
      %v316 = vshrl.u32 %v315, 2
      %v317 = vand.u32 %v315, 3
      %v318 = vsub.s32 0, %v317
      %v319 = vsel %vm313, %v318, %v317
      %vm320 = vcmp.ne.s32.totalorder %v270, 0
      %vm321 = vcmp.ne.s32.totalorder %v277, 0
      %vm322 = vcmp.ne.s32.totalorder %v284, 0
      %vm323 = vcmp.ne.s32.totalorder %v291, 0
      %vm324 = vcmp.ne.s32.totalorder %v298, 0
      %vm325 = vcmp.ne.s32.totalorder %v305, 0
      %vm326 = vcmp.ne.s32.totalorder %v312, 0
      %vm327 = vcmp.ne.s32.totalorder %v319, 0
      %vm328 = vcmp.lt.s32.totalorder %v270, 0
      %vm329 = vcmp.lt.s32.totalorder %v277, 0
      %vm330 = vcmp.lt.s32.totalorder %v284, 0
      %vm331 = vcmp.lt.s32.totalorder %v291, 0
      %vm332 = vcmp.lt.s32.totalorder %v298, 0
      %vm333 = vcmp.lt.s32.totalorder %v305, 0
      %vm334 = vcmp.lt.s32.totalorder %v312, 0
      %vm335 = vcmp.lt.s32.totalorder %v319, 0
      %vm336 = vmand %vm328, %vm320
      %vm337 = vmand %vm329, %vm321
      %vm338 = vmand %vm330, %vm322
      %vm339 = vmand %vm331, %vm323
      %vm340 = vmand %vm332, %vm324
      %vm341 = vmand %vm333, %vm325
      %vm342 = vmand %vm334, %vm326
      %vm343 = vmand %vm335, %vm327
      %v344 = vadd.s32 %v270, 4
      %v345 = vadd.s32 %v277, 4
      %v346 = vadd.s32 %v284, 4
      %v347 = vadd.s32 %v291, 4
      %v348 = vadd.s32 %v298, 4
      %v349 = vadd.s32 %v305, 4
      %v350 = vadd.s32 %v312, 4
      %v351 = vadd.s32 %v319, 4
      %v352 = vsel %vm336, %v344, %v270
      %v353 = vsel %vm337, %v345, %v277
      %v354 = vsel %vm338, %v346, %v284
      %v355 = vsel %vm339, %v347, %v291
      %v356 = vsel %vm340, %v348, %v298
      %v357 = vsel %vm341, %v349, %v305
      %v358 = vsel %vm342, %v350, %v312
      %v359 = vsel %vm343, %v351, %v319
      %vm360 = vcmp.eq.s32.totalorder %v352, 3
      %vm361 = vcmp.eq.s32.totalorder %v353, 3
      %vm362 = vcmp.eq.s32.totalorder %v354, 3
      %vm363 = vcmp.eq.s32.totalorder %v355, 3
      %vm364 = vcmp.eq.s32.totalorder %v356, 3
      %vm365 = vcmp.eq.s32.totalorder %v357, 3
      %vm366 = vcmp.eq.s32.totalorder %v358, 3
      %vm367 = vcmp.eq.s32.totalorder %v359, 3
      %vm368 = vcmp.lt.s32.totalorder %v253, 0
      %v369 = vsub.s32 0, %v253
      %v370 = vsel %vm368, %v369, %v253
      %v371 = vshrl.u32 %v370, 4
      %v372 = vand.u32 %v370, 15
      %v373 = vsub.s32 0, %v372
      %v374 = vsel %vm368, %v373, %v372
      %vm375 = vcmp.lt.s32.totalorder %v255, 0
      %v376 = vsub.s32 0, %v255
      %v377 = vsel %vm375, %v376, %v255
      %v378 = vshrl.u32 %v377, 4
      %v379 = vand.u32 %v377, 15
      %v380 = vsub.s32 0, %v379
      %v381 = vsel %vm375, %v380, %v379
      %vm382 = vcmp.lt.s32.totalorder %v258, 0
      %v383 = vsub.s32 0, %v258
      %v384 = vsel %vm382, %v383, %v258
      %v385 = vshrl.u32 %v384, 4
      %v386 = vand.u32 %v384, 15
      %v387 = vsub.s32 0, %v386
      %v388 = vsel %vm382, %v387, %v386
      %vm389 = vcmp.lt.s32.totalorder %v259, 0
      %v390 = vsub.s32 0, %v259
      %v391 = vsel %vm389, %v390, %v259
      %v392 = vshrl.u32 %v391, 4
      %v393 = vand.u32 %v391, 15
      %v394 = vsub.s32 0, %v393
      %v395 = vsel %vm389, %v394, %v393
      %vm396 = vcmp.ne.s32.totalorder %v374, 0
      %vm397 = vcmp.ne.s32.totalorder %v381, 0
      %vm398 = vcmp.ne.s32.totalorder %v388, 0
      %vm399 = vcmp.ne.s32.totalorder %v395, 0
      %vm400 = vcmp.lt.s32.totalorder %v374, 0
      %vm401 = vcmp.lt.s32.totalorder %v381, 0
      %vm402 = vcmp.lt.s32.totalorder %v388, 0
      %vm403 = vcmp.lt.s32.totalorder %v395, 0
      %vm404 = vmand %vm400, %vm396
      %vm405 = vmand %vm401, %vm397
      %vm406 = vmand %vm402, %vm398
      %vm407 = vmand %vm403, %vm399
      %v408 = vadd.s32 %v374, 16
      %v409 = vadd.s32 %v381, 16
      %v410 = vadd.s32 %v388, 16
      %v411 = vadd.s32 %v395, 16
      %v412 = vsel %vm404, %v408, %v374
      %v413 = vsel %vm405, %v409, %v381
      %v414 = vsel %vm406, %v410, %v388
      %v415 = vsel %vm407, %v411, %v395
      %vm416 = vcmp.ge.s32.totalorder %v412, 12
      %vm417 = vcmp.ge.s32.totalorder %v413, 12
      %vm418 = vcmp.ge.s32.totalorder %v414, 12
      %vm419 = vcmp.ge.s32.totalorder %v415, 12
      %v420 = vld [vmem:[%s246] sm:$0xff]
      %v421 = vld [vmem:[%s246 + $0x8] sm:$0xff]
      %v422 = vld [vmem:[%s246 + $0x10] sm:$0xff]
      %v423 = vld [vmem:[%s246 + $0x18] sm:$0xff]
      %v424 = vld [vmem:[%s246 + $0x20] sm:$0xff]
      %v425 = vld [vmem:[%s246 + $0x28] sm:$0xff]
      %v426 = vld [vmem:[%s246 + $0x30] sm:$0xff]
      %v427 = vld [vmem:[%s246 + $0x38] sm:$0xff]
      %436 = vrot.lane.b32.xlu0 %v420, 127
      %v437 = vpop.permute.xlu0 %436
      %438 = vrot.lane.b32.xlu0 %v421, 127
      %v439 = vpop.permute.xlu0 %438
      %440 = vrot.lane.b32.xlu0 %v422, 127
      %v441 = vpop.permute.xlu0 %440
      %442 = vrot.lane.b32.xlu0 %v423, 127
      %v443 = vpop.permute.xlu0 %442
      %444 = vrot.lane.b32.xlu0 %v424, 127
      %v445 = vpop.permute.xlu0 %444
      %446 = vrot.lane.b32.xlu0 %v425, 127
      %v447 = vpop.permute.xlu0 %446
      %448 = vrot.lane.b32.xlu0 %v426, 127
      %v449 = vpop.permute.xlu0 %448
      %450 = vrot.lane.b32.xlu0 %v427, 127
      %v451 = vpop.permute.xlu0 %450
      %vm460 = vcmask 121856
      %v461 = vsel %vm460, %v437, 0.0
      %v462 = vsel %vm460, %v439, 0.0
      %v463 = vsel %vm460, %v441, 0.0
      %v464 = vsel %vm460, %v443, 0.0
      %v465 = vsel %vm460, %v445, 0.0
      %v466 = vsel %vm460, %v447, 0.0
      %v467 = vsel %vm460, %v449, 0.0
      %v468 = vsel %vm460, %v451, 0.0
      %v469 = vsel %vm360, 1, 0
      %vm470 = vcmp.eq.s32.totalorder %v469, 1
      %v471 = vsel %vm470, 0.0, %v461
      %v472 = vsel %vm470, 0.0, %v462
      %v473 = vsel %vm470, 0.0, %v463
      %v474 = vsel %vm470, 0.0, %v464
      %v475 = vsel %vm470, 0.0, %v465
      %v476 = vsel %vm470, 0.0, %v466
      %v477 = vsel %vm470, 0.0, %v467
      %v478 = vsel %vm470, 0.0, %v468
      %479 = vrot.lane.b32.xlu0 %v420, 124
      %v480 = vpop.permute.xlu0 %479
      %481 = vrot.lane.b32.xlu0 %v421, 124
      %v482 = vpop.permute.xlu0 %481
      %483 = vrot.lane.b32.xlu0 %v422, 124
      %v484 = vpop.permute.xlu0 %483
      %485 = vrot.lane.b32.xlu0 %v423, 124
      %v486 = vpop.permute.xlu0 %485
      %487 = vrot.lane.b32.xlu0 %v424, 124
      %v488 = vpop.permute.xlu0 %487
      %489 = vrot.lane.b32.xlu0 %v425, 124
      %v490 = vpop.permute.xlu0 %489
      %491 = vrot.lane.b32.xlu0 %v426, 124
      %v492 = vpop.permute.xlu0 %491
      %493 = vrot.lane.b32.xlu0 %v427, 124
      %v494 = vpop.permute.xlu0 %493
      %vm503 = vcmask 97280
      %v504 = vsel %vm503, %v480, 0.0
      %v505 = vsel %vm503, %v482, 0.0
      %v506 = vsel %vm503, %v484, 0.0
      %v507 = vsel %vm503, %v486, 0.0
      %v508 = vsel %vm503, %v488, 0.0
      %v509 = vsel %vm503, %v490, 0.0
      %v510 = vsel %vm503, %v492, 0.0
      %v511 = vsel %vm503, %v494, 0.0
      %v512 = vsel %vm416, 1, 0
      %vm513 = vcmp.eq.s32.totalorder %v512, 1
      %v514 = vsel %vm513, 0.0, %v504
      %v515 = vsel %vm513, 0.0, %v505
      %v516 = vsel %vm513, 0.0, %v506
      %v517 = vsel %vm513, 0.0, %v507
      %v518 = vsel %vm513, 0.0, %v508
      %v519 = vsel %vm513, 0.0, %v509
      %v520 = vsel %vm513, 0.0, %v510
      %v521 = vsel %vm513, 0.0, %v511
      %530 = vrot.lane.b32.xlu0 %v514, 127
      %v531 = vpop.permute.xlu0 %530
      %532 = vrot.lane.b32.xlu0 %v515, 127
      %v533 = vpop.permute.xlu0 %532
      %534 = vrot.lane.b32.xlu0 %v516, 127
      %v535 = vpop.permute.xlu0 %534
      %536 = vrot.lane.b32.xlu0 %v517, 127
      %v537 = vpop.permute.xlu0 %536
      %538 = vrot.lane.b32.xlu0 %v518, 127
      %v539 = vpop.permute.xlu0 %538
      %540 = vrot.lane.b32.xlu0 %v519, 127
      %v541 = vpop.permute.xlu0 %540
      %542 = vrot.lane.b32.xlu0 %v520, 127
      %v543 = vpop.permute.xlu0 %542
      %544 = vrot.lane.b32.xlu0 %v521, 127
      %v545 = vpop.permute.xlu0 %544
      %v554 = vsel %vm460, %v531, 0.0
      %v555 = vsel %vm460, %v533, 0.0
      %v556 = vsel %vm460, %v535, 0.0
      %v557 = vsel %vm460, %v537, 0.0
      %v558 = vsel %vm460, %v539, 0.0
      %v559 = vsel %vm460, %v541, 0.0
      %v560 = vsel %vm460, %v543, 0.0
      %v561 = vsel %vm460, %v545, 0.0
      %v562 = vsel %vm470, 0.0, %v554
      %v563 = vsel %vm470, 0.0, %v555
      %v564 = vsel %vm470, 0.0, %v556
      %v565 = vsel %vm470, 0.0, %v557
      %v566 = vsel %vm470, 0.0, %v558
      %v567 = vsel %vm470, 0.0, %v559
      %v568 = vsel %vm470, 0.0, %v560
      %v569 = vsel %vm470, 0.0, %v561
      %v570 = vld [vmem:[%s1] sm:$0xff]
      %v571 = vld [vmem:[%s1 + $0x8] sm:$0xff]
      %v572 = vld [vmem:[%s1 + $0x10] sm:$0xff]
      %v573 = vld [vmem:[%s1 + $0x18] sm:$0xff]
      %v574 = vld [vmem:[%s1 + $0x20] sm:$0xff]
      %v575 = vld [vmem:[%s1 + $0x28] sm:$0xff]
      %v576 = vld [vmem:[%s1 + $0x30] sm:$0xff]
      %v577 = vld [vmem:[%s1 + $0x38] sm:$0xff]
      %v578 = vld [vmem:[%s1 + $0x40] sm:$0xff]
      %v579 = vld [vmem:[%s1 + $0x48] sm:$0xff]
      %v580 = vld [vmem:[%s1 + $0x50] sm:$0xff]
      %v581 = vld [vmem:[%s1 + $0x58] sm:$0xff]
      %v582 = vld [vmem:[%s1 + $0x60] sm:$0xff]
      %v583 = vld [vmem:[%s1 + $0x68] sm:$0xff]
      %v584 = vld [vmem:[%s1 + $0x70] sm:$0xff]
      %v585 = vld [vmem:[%s1 + $0x78] sm:$0xff]
      %v586 = vld [vmem:[%s1 + $0x80] sm:$0xff]
      %v587 = vld [vmem:[%s1 + $0x88] sm:$0xff]
      %v588 = vld [vmem:[%s1 + $0x90] sm:$0xff]
      %v589 = vld [vmem:[%s1 + $0x98] sm:$0xff]
      %v590 = vld [vmem:[%s1 + $0xa0] sm:$0xff]
      %v591 = vld [vmem:[%s1 + $0xa8] sm:$0xff]
      %v592 = vld [vmem:[%s1 + $0xb0] sm:$0xff]
      %v593 = vld [vmem:[%s1 + $0xb8] sm:$0xff]
      %v594 = vld [vmem:[%s1 + $0xc0] sm:$0xff]
      %v595 = vld [vmem:[%s1 + $0xc8] sm:$0xff]
      %v596 = vld [vmem:[%s1 + $0xd0] sm:$0xff]
      %v597 = vld [vmem:[%s1 + $0xd8] sm:$0xff]
      %v598 = vld [vmem:[%s1 + $0xe0] sm:$0xff]
      %v599 = vld [vmem:[%s1 + $0xe8] sm:$0xff]
      %v600 = vld [vmem:[%s1 + $0xf0] sm:$0xff]
      %v601 = vld [vmem:[%s1 + $0xf8] sm:$0xff]
      %v602 = vld [vmem:[%s1 + $0x100] sm:$0xff]
      %v603 = vld [vmem:[%s1 + $0x108] sm:$0xff]
      %v604 = vld [vmem:[%s1 + $0x110] sm:$0xff]
      %v605 = vld [vmem:[%s1 + $0x118] sm:$0xff]
      %v606 = vld [vmem:[%s1 + $0x120] sm:$0xff]
      %v607 = vld [vmem:[%s1 + $0x128] sm:$0xff]
      %v608 = vld [vmem:[%s1 + $0x130] sm:$0xff]
      %v609 = vld [vmem:[%s1 + $0x138] sm:$0xff]
      %v610 = vld [vmem:[%s1 + $0x140] sm:$0xff]
      %v611 = vld [vmem:[%s1 + $0x148] sm:$0xff]
      %v612 = vld [vmem:[%s1 + $0x150] sm:$0xff]
      %v613 = vld [vmem:[%s1 + $0x158] sm:$0xff]
      %v614 = vld [vmem:[%s1 + $0x160] sm:$0xff]
      %v615 = vld [vmem:[%s1 + $0x168] sm:$0xff]
      %v616 = vld [vmem:[%s1 + $0x170] sm:$0xff]
      %v617 = vld [vmem:[%s1 + $0x178] sm:$0xff]
      %vm618 = vcmask 7168
      %v620 = vsel %vm618, %v572, 0
      %v623 = vsel %vm618, %v575, 0
      %v626 = vsel %vm618, %v578, 0
      %v629 = vsel %vm618, %v581, 0
      %v632 = vsel %vm618, %v584, 0
      %v635 = vsel %vm618, %v587, 0
      %v638 = vsel %vm618, %v590, 0
      %v641 = vsel %vm618, %v593, 0
      %v644 = vsel %vm618, %v596, 0
      %v647 = vsel %vm618, %v599, 0
      %v650 = vsel %vm618, %v602, 0
      %v653 = vsel %vm618, %v605, 0
      %v656 = vsel %vm618, %v608, 0
      %v659 = vsel %vm618, %v611, 0
      %v662 = vsel %vm618, %v614, 0
      %v665 = vsel %vm618, %v617, 0
      %vm667 = vcmask 1040384
      %v669 = vsel %vm667, 1.0, 0
      %671 = vmatprep.subr.mxu0 0.0
      %672 = vmatpush1.msra.mxu0 %v420
      %673 = vmatprep.subr.mxu0 0.0
      %674 = vmatpush1.msra.mxu0 %v421
      %675 = vmatprep.subr.mxu0 0.0
      %676 = vmatpush1.msra.mxu0 %v422
      %677 = vmatprep.subr.mxu0 0.0
      %678 = vmatpush1.msra.mxu0 %v423
      %679 = vmatprep.subr.mxu0 0.0
      %680 = vmatpush1.msra.mxu0 %v424
      %681 = vmatprep.subr.mxu0 0.0
      %682 = vmatpush1.msra.mxu0 %v425
      %683 = vmatprep.subr.mxu0 0.0
      %684 = vmatpush1.msra.mxu0 %v426
      %685 = vmatprep.subr.mxu0 0.0
      %686 = vmatpush1.msra.mxu0 %v427
      %687 = vmatprep.subr.mxu0 0.0
      %688 = vmatpush1.msra.mxu0 %v471
      %689 = vmatprep.subr.mxu0 0.0
      %690 = vmatpush1.msra.mxu0 %v472
      %691 = vmatprep.subr.mxu0 0.0
      %692 = vmatpush1.msra.mxu0 %v473
      %693 = vmatprep.subr.mxu0 0.0
      %694 = vmatpush1.msra.mxu0 %v474
      %695 = vmatprep.subr.mxu0 0.0
      %696 = vmatpush1.msra.mxu0 %v475
      %697 = vmatprep.subr.mxu0 0.0
      %698 = vmatpush1.msra.mxu0 %v476
      %699 = vmatprep.subr.mxu0 0.0
      %700 = vmatpush1.msra.mxu0 %v477
      %701 = vmatprep.subr.mxu0 0.0
      %702 = vmatpush1.msra.mxu0 %v478
      %703 = vmatprep.subr.mxu0 0.0
      %704 = vmatpush1.msra.mxu0 %v514
      %705 = vmatprep.subr.mxu0 0.0
      %706 = vmatpush1.msra.mxu0 %v515
      %707 = vmatprep.subr.mxu0 0.0
      %708 = vmatpush1.msra.mxu0 %v516
      %709 = vmatprep.subr.mxu0 0.0
      %710 = vmatpush1.msra.mxu0 %v517
      %711 = vmatprep.subr.mxu0 0.0
      %712 = vmatpush1.msra.mxu0 %v518
      %713 = vmatprep.subr.mxu0 0.0
      %714 = vmatpush1.msra.mxu0 %v519
      %715 = vmatprep.subr.mxu0 0.0
      %716 = vmatpush1.msra.mxu0 %v520
      %717 = vmatprep.subr.mxu0 0.0
      %718 = vmatpush1.msra.mxu0 %v521
      %719 = vmatprep.subr.mxu0 0.0
      %720 = vmatpush1.msra.mxu0 %v562
      %721 = vmatprep.subr.mxu0 0.0
      %722 = vmatpush1.msra.mxu0 %v563
      %723 = vmatprep.subr.mxu0 0.0
      %724 = vmatpush1.msra.mxu0 %v564
      %725 = vmatprep.subr.mxu0 0.0
      %726 = vmatpush1.msra.mxu0 %v565
      %727 = vmatprep.subr.mxu0 0.0
      %728 = vmatpush1.msra.mxu0 %v566
      %729 = vmatprep.subr.mxu0 0.0
      %730 = vmatpush1.msra.mxu0 %v567
      %731 = vmatprep.subr.mxu0 0.0
      %732 = vmatpush1.msra.mxu0 %v568
      %733 = vmatprep.subr.mxu0 0.0
      %734 = vmatpush1.msra.mxu0 %v569
      %735 = vmatprep.mubr.f32.mxu0 %v571
      %736 = vmatmul.mubr.f32.gmra.mrb[0].mxu0 %v570
      %v737 = vpop.f32.mrb[0].mxu0
      %v738 = vadd.f32 0.0, %v737
      %v739 = vpop.f32.mrb[0].mxu0
      %740 = vmatprep.mubr.f32.mxu0 %v574
      %741 = vmatmul.mubr.f32.gmra.mrb[0].mxu0 %v573
      %v742 = vpop.f32.mrb[0].mxu0
      %v743 = vadd.f32 0.0, %v742
      %v744 = vpop.f32.mrb[0].mxu0
      %745 = vmatprep.mubr.f32.mxu0 %v577
      %746 = vmatmul.mubr.f32.gmra.mrb[0].mxu0 %v576
      %v747 = vpop.f32.mrb[0].mxu0
      %v748 = vadd.f32 0.0, %v747
      %v749 = vpop.f32.mrb[0].mxu0
      %750 = vmatprep.mubr.f32.mxu0 %v580
      %751 = vmatmul.mubr.f32.gmra.mrb[0].mxu0 %v579
      %v752 = vpop.f32.mrb[0].mxu0
      %v753 = vadd.f32 0.0, %v752
      %v754 = vpop.f32.mrb[0].mxu0
      %755 = vmatprep.mubr.f32.mxu0 %v583
      %756 = vmatmul.mubr.f32.gmra.mrb[0].mxu0 %v582
      %v757 = vpop.f32.mrb[0].mxu0
      %v758 = vadd.f32 0.0, %v757
      %v759 = vpop.f32.mrb[0].mxu0
      %760 = vmatprep.mubr.f32.mxu0 %v586
      %761 = vmatmul.mubr.f32.gmra.mrb[0].mxu0 %v585
      %v762 = vpop.f32.mrb[0].mxu0
      %v763 = vadd.f32 0.0, %v762
      %v764 = vpop.f32.mrb[0].mxu0
      %765 = vmatprep.mubr.f32.mxu0 %v589
      %766 = vmatmul.mubr.f32.gmra.mrb[0].mxu0 %v588
      %v767 = vpop.f32.mrb[0].mxu0
      %v768 = vadd.f32 0.0, %v767
      %v769 = vpop.f32.mrb[0].mxu0
      %770 = vmatprep.mubr.f32.mxu0 %v592
      %771 = vmatmul.mubr.f32.gmra.mrb[0].mxu0 %v591
      %v772 = vpop.f32.mrb[0].mxu0
      %v773 = vadd.f32 0.0, %v772
      %v774 = vpop.f32.mrb[0].mxu0
      %775 = vmatprep.mubr.f32.mxu0 %v595
      %776 = vmatmul.mubr.f32.gmra.mrb[0].mxu0 %v594
      %v777 = vpop.f32.mrb[0].mxu0
      %v778 = vadd.f32 0.0, %v777
      %v779 = vpop.f32.mrb[0].mxu0
      %780 = vmatprep.mubr.f32.mxu0 %v598
      %781 = vmatmul.mubr.f32.gmra.mrb[0].mxu0 %v597
      %v782 = vpop.f32.mrb[0].mxu0
      %v783 = vadd.f32 0.0, %v782
      %v784 = vpop.f32.mrb[0].mxu0
      %785 = vmatprep.mubr.f32.mxu0 %v601
      %786 = vmatmul.mubr.f32.gmra.mrb[0].mxu0 %v600
      %v787 = vpop.f32.mrb[0].mxu0
      %v788 = vadd.f32 0.0, %v787
      %v789 = vpop.f32.mrb[0].mxu0
      %790 = vmatprep.mubr.f32.mxu0 %v604
      %791 = vmatmul.mubr.f32.gmra.mrb[0].mxu0 %v603
      %v792 = vpop.f32.mrb[0].mxu0
      %v793 = vadd.f32 0.0, %v792
      %v794 = vpop.f32.mrb[0].mxu0
      %795 = vmatprep.mubr.f32.mxu0 %v607
      %796 = vmatmul.mubr.f32.gmra.mrb[0].mxu0 %v606
      %v797 = vpop.f32.mrb[0].mxu0
      %v798 = vadd.f32 0.0, %v797
      %v799 = vpop.f32.mrb[0].mxu0
      %800 = vmatprep.mubr.f32.mxu0 %v610
      %801 = vmatmul.mubr.f32.gmra.mrb[0].mxu0 %v609
      %v802 = vpop.f32.mrb[0].mxu0
      %v803 = vadd.f32 0.0, %v802
      %v804 = vpop.f32.mrb[0].mxu0
      %805 = vmatprep.mubr.f32.mxu0 %v613
      %806 = vmatmul.mubr.f32.gmra.mrb[0].mxu0 %v612
      %v807 = vpop.f32.mrb[0].mxu0
      %v808 = vadd.f32 0.0, %v807
      %v809 = vpop.f32.mrb[0].mxu0
      %810 = vmatprep.mubr.f32.mxu0 %v616
      %811 = vmatmul.mubr.f32.gmra.mrb[0].mxu0 %v615
      %v812 = vpop.f32.mrb[0].mxu0
      %v813 = vadd.f32 0.0, %v812
      %v814 = vpop.f32.mrb[0].mxu0
      %815 = vdwg.mxu0
      %816 = vmatprep.subr.mxu0 0.0
      %817 = vmatpush1.msra.mxu0 %v669
      %818 = vmatprep.subr.mxu0 0.0
      %819 = vmatpush1.msra.mxu0 0.0
      %820 = vmatprep.subr.mxu0 0.0
      %821 = vmatpush1.msra.mxu0 0.0
      %822 = vmatprep.subr.mxu0 0.0
      %823 = vmatpush1.msra.mxu0 0.0
      %824 = vmatprep.subr.mxu0 0.0
      %825 = vmatpush1.msra.mxu0 0.0
      %826 = vmatprep.subr.mxu0 0.0
      %827 = vmatpush1.msra.mxu0 0.0
      %828 = vmatprep.subr.mxu0 0.0
      %829 = vmatpush1.msra.mxu0 0.0
      %830 = vmatprep.subr.mxu0 0.0
      %831 = vmatpush1.msra.mxu0 0.0
      %832 = vmatprep.subr.mxu0 0.0
      %833 = vmatpush1.msra.mxu0 0.0
      %834 = vmatprep.subr.mxu0 0.0
      %835 = vmatpush1.msra.mxu0 0.0
      %836 = vmatprep.subr.mxu0 0.0
      %837 = vmatpush1.msra.mxu0 0.0
      %838 = vmatprep.subr.mxu0 0.0
      %839 = vmatpush1.msra.mxu0 0.0
      %840 = vmatprep.subr.mxu0 0.0
      %841 = vmatpush1.msra.mxu0 0.0
      %842 = vmatprep.subr.mxu0 0.0
      %843 = vmatpush1.msra.mxu0 0.0
      %844 = vmatprep.subr.mxu0 0.0
      %845 = vmatpush1.msra.mxu0 0.0
      %846 = vmatprep.subr.mxu0 0.0
      %847 = vmatpush1.msra.mxu0 0.0
      %848 = vmatprep.subr.mxu0 0.0
      %849 = vmatpush1.msra.mxu0 0.0
      %850 = vmatprep.subr.mxu0 0.0
      %851 = vmatpush1.msra.mxu0 0.0
      %852 = vmatprep.subr.mxu0 0.0
      %853 = vmatpush1.msra.mxu0 0.0
      %854 = vmatprep.subr.mxu0 0.0
      %855 = vmatpush1.msra.mxu0 0.0
      %856 = vmatprep.subr.mxu0 0.0
      %857 = vmatpush1.msra.mxu0 0.0
      %858 = vmatprep.subr.mxu0 0.0
      %859 = vmatpush1.msra.mxu0 0.0
      %860 = vmatprep.subr.mxu0 0.0
      %861 = vmatpush1.msra.mxu0 0.0
      %862 = vmatprep.subr.mxu0 0.0
      %863 = vmatpush1.msra.mxu0 0.0
      %864 = vmatprep.subr.mxu0 0.0
      %865 = vmatpush1.msra.mxu0 0.0
      %866 = vmatprep.subr.mxu0 0.0
      %867 = vmatpush1.msra.mxu0 0.0
      %868 = vmatprep.subr.mxu0 0.0
      %869 = vmatpush1.msra.mxu0 0.0
      %870 = vmatprep.subr.mxu0 0.0
      %871 = vmatpush1.msra.mxu0 0.0
      %872 = vmatprep.subr.mxu0 0.0
      %873 = vmatpush1.msra.mxu0 0.0
      %874 = vmatprep.subr.mxu0 0.0
      %875 = vmatpush1.msra.mxu0 0.0
      %876 = vmatprep.subr.mxu0 0.0
      %877 = vmatpush1.msra.mxu0 0.0
      %878 = vmatprep.subr.mxu0 0.0
      %879 = vmatpush1.msra.mxu0 0.0
      %880 = vmatprep.mubr.f32.mxu0 0.0
      %881 = vmatmul.mubr.f32.gmra.mrb[0].mxu0 %v620
      %v882 = vpop.f32.mrb[0].mxu0
      %v883 = vadd.f32 %v738, %v882
      %v884 = vpop.f32.mrb[0].mxu0
      %885 = vmatprep.mubr.f32.mxu0 0.0
      %886 = vmatmul.mubr.f32.gmra.mrb[0].mxu0 %v623
      %v887 = vpop.f32.mrb[0].mxu0
      %v888 = vadd.f32 %v743, %v887
      %v889 = vpop.f32.mrb[0].mxu0
      %890 = vmatprep.mubr.f32.mxu0 0.0
      %891 = vmatmul.mubr.f32.gmra.mrb[0].mxu0 %v626
      %v892 = vpop.f32.mrb[0].mxu0
      %v893 = vadd.f32 %v748, %v892
      %v894 = vpop.f32.mrb[0].mxu0
      %895 = vmatprep.mubr.f32.mxu0 0.0
      %896 = vmatmul.mubr.f32.gmra.mrb[0].mxu0 %v629
      %v897 = vpop.f32.mrb[0].mxu0
      %v898 = vadd.f32 %v753, %v897
      %v899 = vpop.f32.mrb[0].mxu0
      %900 = vmatprep.mubr.f32.mxu0 0.0
      %901 = vmatmul.mubr.f32.gmra.mrb[0].mxu0 %v632
      %v902 = vpop.f32.mrb[0].mxu0
      %v903 = vadd.f32 %v758, %v902
      %v904 = vpop.f32.mrb[0].mxu0
      %905 = vmatprep.mubr.f32.mxu0 0.0
      %906 = vmatmul.mubr.f32.gmra.mrb[0].mxu0 %v635
      %v907 = vpop.f32.mrb[0].mxu0
      %v908 = vadd.f32 %v763, %v907
      %v909 = vpop.f32.mrb[0].mxu0
      %910 = vmatprep.mubr.f32.mxu0 0.0
      %911 = vmatmul.mubr.f32.gmra.mrb[0].mxu0 %v638
      %v912 = vpop.f32.mrb[0].mxu0
      %v913 = vadd.f32 %v768, %v912
      %v914 = vpop.f32.mrb[0].mxu0
      %915 = vmatprep.mubr.f32.mxu0 0.0
      %916 = vmatmul.mubr.f32.gmra.mrb[0].mxu0 %v641
      %v917 = vpop.f32.mrb[0].mxu0
      %v918 = vadd.f32 %v773, %v917
      %v919 = vpop.f32.mrb[0].mxu0
      %920 = vmatprep.mubr.f32.mxu0 0.0
      %921 = vmatmul.mubr.f32.gmra.mrb[0].mxu0 %v644
      %v922 = vpop.f32.mrb[0].mxu0
      %v923 = vadd.f32 %v778, %v922
      %v924 = vpop.f32.mrb[0].mxu0
      %925 = vmatprep.mubr.f32.mxu0 0.0
      %926 = vmatmul.mubr.f32.gmra.mrb[0].mxu0 %v647
      %v927 = vpop.f32.mrb[0].mxu0
      %v928 = vadd.f32 %v783, %v927
      %v929 = vpop.f32.mrb[0].mxu0
      %930 = vmatprep.mubr.f32.mxu0 0.0
      %931 = vmatmul.mubr.f32.gmra.mrb[0].mxu0 %v650
      %v932 = vpop.f32.mrb[0].mxu0
      %v933 = vadd.f32 %v788, %v932
      %v934 = vpop.f32.mrb[0].mxu0
      %935 = vmatprep.mubr.f32.mxu0 0.0
      %936 = vmatmul.mubr.f32.gmra.mrb[0].mxu0 %v653
      %v937 = vpop.f32.mrb[0].mxu0
      %v938 = vadd.f32 %v793, %v937
      %v939 = vpop.f32.mrb[0].mxu0
      %940 = vmatprep.mubr.f32.mxu0 0.0
      %941 = vmatmul.mubr.f32.gmra.mrb[0].mxu0 %v656
      %v942 = vpop.f32.mrb[0].mxu0
      %v943 = vadd.f32 %v798, %v942
      %v944 = vpop.f32.mrb[0].mxu0
      %945 = vmatprep.mubr.f32.mxu0 0.0
      %946 = vmatmul.mubr.f32.gmra.mrb[0].mxu0 %v659
      %v947 = vpop.f32.mrb[0].mxu0
      %v948 = vadd.f32 %v803, %v947
      %v949 = vpop.f32.mrb[0].mxu0
      %950 = vmatprep.mubr.f32.mxu0 0.0
      %951 = vmatmul.mubr.f32.gmra.mrb[0].mxu0 %v662
      %v952 = vpop.f32.mrb[0].mxu0
      %v953 = vadd.f32 %v808, %v952
      %v954 = vpop.f32.mrb[0].mxu0
      %955 = vmatprep.mubr.f32.mxu0 0.0
      %956 = vmatmul.mubr.f32.gmra.mrb[0].mxu0 %v665
      %v957 = vpop.f32.mrb[0].mxu0
      %v958 = vadd.f32 %v813, %v957
      %v959 = vpop.f32.mrb[0].mxu0
      %960 = vdwg.mxu0
      %965 = vrot.lane.b32.xlu0 %v903, 16
      %v966 = vpop.permute.xlu0 %965
      %967 = vrot.lane.b32.xlu0 %v908, 16
      %v968 = vpop.permute.xlu0 %967
      %969 = vrot.lane.b32.xlu0 %v913, 16
      %v970 = vpop.permute.xlu0 %969
      %971 = vrot.lane.b32.xlu0 %v918, 16
      %v972 = vpop.permute.xlu0 %971
      %981 = vrot.lane.b32.xlu0 %v923, 32
      %v982 = vpop.permute.xlu0 %981
      %983 = vrot.lane.b32.xlu0 %v928, 32
      %v984 = vpop.permute.xlu0 %983
      %985 = vrot.lane.b32.xlu0 %v933, 32
      %v986 = vpop.permute.xlu0 %985
      %987 = vrot.lane.b32.xlu0 %v938, 32
      %v988 = vpop.permute.xlu0 %987
      %997 = vrot.lane.b32.xlu0 %v943, 48
      %v998 = vpop.permute.xlu0 %997
      %999 = vrot.lane.b32.xlu0 %v948, 48
      %v1000 = vpop.permute.xlu0 %999
      %1001 = vrot.lane.b32.xlu0 %v953, 48
      %v1002 = vpop.permute.xlu0 %1001
      %1003 = vrot.lane.b32.xlu0 %v958, 48
      %v1004 = vpop.permute.xlu0 %1003
      %vm1009 = vcmask 130048
      %v1010 = vsel %vm1009, %v883, %v966
      %v1011 = vsel %vm1009, %v888, %v968
      %v1012 = vsel %vm1009, %v893, %v970
      %v1013 = vsel %vm1009, %v898, %v972
      %vm1014 = vcmask 261120
      %v1015 = vsel %vm1014, %v1010, %v982
      %v1016 = vsel %vm1014, %v1011, %v984
      %v1017 = vsel %vm1014, %v1012, %v986
      %v1018 = vsel %vm1014, %v1013, %v988
      %vm1019 = vcmask 392192
      %v1020 = vsel %vm1019, %v1015, %v998
      %v1021 = vsel %vm1019, %v1016, %v1000
      %v1022 = vsel %vm1019, %v1017, %v1002
      %v1023 = vsel %vm1019, %v1018, %v1004
      %1028 = vrot.lane.b32.xlu0 %v1020, 127
      %v1029 = vpop.permute.xlu0 %1028
      %1030 = vrot.lane.b32.xlu0 %v1021, 127
      %v1031 = vpop.permute.xlu0 %1030
      %1032 = vrot.lane.b32.xlu0 %v1022, 127
      %v1033 = vpop.permute.xlu0 %1032
      %1034 = vrot.lane.b32.xlu0 %v1023, 127
      %v1035 = vpop.permute.xlu0 %1034
      %vm1040 = vcmask 515072
      %v1041 = vsel %vm1040, %v1029, 0.0
      %v1042 = vsel %vm1040, %v1031, 0.0
      %v1043 = vsel %vm1040, %v1033, 0.0
      %v1044 = vsel %vm1040, %v1035, 0.0
      %v1045 = vsel %vm470, 0.0, %v1041
      %v1046 = vsel %vm470, 0.0, %v1042
      %v1047 = vsel %vm470, 0.0, %v1043
      %v1048 = vsel %vm470, 0.0, %v1044
      %1049 = vrot.lane.b32.xlu0 %v1020, 112
      %v1050 = vpop.permute.xlu0 %1049
      %1051 = vrot.lane.b32.xlu0 %v1021, 112
      %v1052 = vpop.permute.xlu0 %1051
      %1053 = vrot.lane.b32.xlu0 %v1022, 112
      %v1054 = vpop.permute.xlu0 %1053
      %1055 = vrot.lane.b32.xlu0 %v1023, 112
      %v1056 = vpop.permute.xlu0 %1055
      %1065 = vrot.lane.b32.xlu0 %v1045, 16
      %v1066 = vpop.permute.xlu0 %1065
      %1067 = vrot.lane.b32.xlu0 %v1046, 16
      %v1068 = vpop.permute.xlu0 %1067
      %1069 = vrot.lane.b32.xlu0 %v1047, 16
      %v1070 = vpop.permute.xlu0 %1069
      %1071 = vrot.lane.b32.xlu0 %v1048, 16
      %v1072 = vpop.permute.xlu0 %1071
      %v1077 = vsel %vm1009, %v1050, %v1066
      %v1078 = vsel %vm1009, %v1052, %v1068
      %v1079 = vsel %vm1009, %v1054, %v1070
      %v1080 = vsel %vm1009, %v1056, %v1072
      %v1081 = vsel %vm1014, %v1077, %v1050
      %v1082 = vsel %vm1014, %v1078, %v1052
      %v1083 = vsel %vm1014, %v1079, %v1054
      %v1084 = vsel %vm1014, %v1080, %v1056
      %v1085 = vsel %vm1019, %v1081, %v1066
      %v1086 = vsel %vm1019, %v1082, %v1068
      %v1087 = vsel %vm1019, %v1083, %v1070
      %v1088 = vsel %vm1019, %v1084, %v1072
      %1089 = vrot.lane.b32.xlu0 %v1020, 124
      %v1090 = vpop.permute.xlu0 %1089
      %1091 = vrot.lane.b32.xlu0 %v1021, 124
      %v1092 = vpop.permute.xlu0 %1091
      %1093 = vrot.lane.b32.xlu0 %v1022, 124
      %v1094 = vpop.permute.xlu0 %1093
      %1095 = vrot.lane.b32.xlu0 %v1023, 124
      %v1096 = vpop.permute.xlu0 %1095
      %vm1101 = vcmask 490496
      %v1102 = vsel %vm1101, %v1090, 0.0
      %v1103 = vsel %vm1101, %v1092, 0.0
      %v1104 = vsel %vm1101, %v1094, 0.0
      %v1105 = vsel %vm1101, %v1096, 0.0
      %v1106 = vsel %vm513, 0.0, %v1102
      %v1107 = vsel %vm513, 0.0, %v1103
      %v1108 = vsel %vm513, 0.0, %v1104
      %v1109 = vsel %vm513, 0.0, %v1105
      %1110 = vrot.lane.b32.xlu0 %v1020, 96
      %v1111 = vpop.permute.xlu0 %1110
      %1112 = vrot.lane.b32.xlu0 %v1021, 96
      %v1113 = vpop.permute.xlu0 %1112
      %1114 = vrot.lane.b32.xlu0 %v1022, 96
      %v1115 = vpop.permute.xlu0 %1114
      %1116 = vrot.lane.b32.xlu0 %v1023, 96
      %v1117 = vpop.permute.xlu0 %1116
      %1126 = vrot.lane.b32.xlu0 %v1106, 32
      %v1127 = vpop.permute.xlu0 %1126
      %1128 = vrot.lane.b32.xlu0 %v1107, 32
      %v1129 = vpop.permute.xlu0 %1128
      %1130 = vrot.lane.b32.xlu0 %v1108, 32
      %v1131 = vpop.permute.xlu0 %1130
      %1132 = vrot.lane.b32.xlu0 %v1109, 32
      %v1133 = vpop.permute.xlu0 %1132
      %v1138 = vsel %vm1014, %v1111, %v1127
      %v1139 = vsel %vm1014, %v1113, %v1129
      %v1140 = vsel %vm1014, %v1115, %v1131
      %v1141 = vsel %vm1014, %v1117, %v1133
      %v1142 = vsel %vm1019, %v1138, %v1127
      %v1143 = vsel %vm1019, %v1139, %v1129
      %v1144 = vsel %vm1019, %v1140, %v1131
      %v1145 = vsel %vm1019, %v1141, %v1133
      %1150 = vrot.lane.b32.xlu0 %v1142, 127
      %v1151 = vpop.permute.xlu0 %1150
      %1152 = vrot.lane.b32.xlu0 %v1143, 127
      %v1153 = vpop.permute.xlu0 %1152
      %1154 = vrot.lane.b32.xlu0 %v1144, 127
      %v1155 = vpop.permute.xlu0 %1154
      %1156 = vrot.lane.b32.xlu0 %v1145, 127
      %v1157 = vpop.permute.xlu0 %1156
      %v1162 = vsel %vm1040, %v1151, 0.0
      %v1163 = vsel %vm1040, %v1153, 0.0
      %v1164 = vsel %vm1040, %v1155, 0.0
      %v1165 = vsel %vm1040, %v1157, 0.0
      %v1166 = vsel %vm470, 0.0, %v1162
      %v1167 = vsel %vm470, 0.0, %v1163
      %v1168 = vsel %vm470, 0.0, %v1164
      %v1169 = vsel %vm470, 0.0, %v1165
      %1170 = vrot.lane.b32.xlu0 %v1142, 112
      %v1171 = vpop.permute.xlu0 %1170
      %1172 = vrot.lane.b32.xlu0 %v1143, 112
      %v1173 = vpop.permute.xlu0 %1172
      %1174 = vrot.lane.b32.xlu0 %v1144, 112
      %v1175 = vpop.permute.xlu0 %1174
      %1176 = vrot.lane.b32.xlu0 %v1145, 112
      %v1177 = vpop.permute.xlu0 %1176
      %1186 = vrot.lane.b32.xlu0 %v1166, 16
      %v1187 = vpop.permute.xlu0 %1186
      %1188 = vrot.lane.b32.xlu0 %v1167, 16
      %v1189 = vpop.permute.xlu0 %1188
      %1190 = vrot.lane.b32.xlu0 %v1168, 16
      %v1191 = vpop.permute.xlu0 %1190
      %1192 = vrot.lane.b32.xlu0 %v1169, 16
      %v1193 = vpop.permute.xlu0 %1192
      %v1198 = vsel %vm1009, %v1171, %v1187
      %v1199 = vsel %vm1009, %v1173, %v1189
      %v1200 = vsel %vm1009, %v1175, %v1191
      %v1201 = vsel %vm1009, %v1177, %v1193
      %v1202 = vsel %vm1014, %v1198, %v1171
      %v1203 = vsel %vm1014, %v1199, %v1173
      %v1204 = vsel %vm1014, %v1200, %v1175
      %v1205 = vsel %vm1014, %v1201, %v1177
      %v1206 = vsel %vm1019, %v1202, %v1187
      %v1207 = vsel %vm1019, %v1203, %v1189
      %v1208 = vsel %vm1019, %v1204, %v1191
      %v1209 = vsel %vm1019, %v1205, %v1193
      %v1210 = vld [vmem:[%s2] sm:$0xff]
      %v1211 = vld [vmem:[%s2 + $0x8] sm:$0xff]
      %v1212 = vld [vmem:[%s2 + $0x10] sm:$0xff]
      %v1213 = vld [vmem:[%s2 + $0x18] sm:$0xff]
      %v1214 = vld [vmem:[%s2 + $0x20] sm:$0xff]
      %v1215 = vld [vmem:[%s2 + $0x28] sm:$0xff]
      %v1216 = vld [vmem:[%s2 + $0x30] sm:$0xff]
      %v1217 = vld [vmem:[%s2 + $0x38] sm:$0xff]
      %v1218 = vld [vmem:[%s2 + $0x40] sm:$0xff]
      %v1219 = vld [vmem:[%s2 + $0x48] sm:$0xff]
      %v1220 = vld [vmem:[%s2 + $0x50] sm:$0xff]
      %v1221 = vld [vmem:[%s2 + $0x58] sm:$0xff]
      %v1222 = vld [vmem:[%s2 + $0x60] sm:$0xff]
      %v1223 = vld [vmem:[%s2 + $0x68] sm:$0xff]
      %v1224 = vld [vmem:[%s2 + $0x70] sm:$0xff]
      %v1225 = vld [vmem:[%s2 + $0x78] sm:$0xff]
      %v1227 = vsel %vm618, %v1211, 0
      %v1230 = vsel %vm618, %v1213, 0
      %v1233 = vsel %vm618, %v1215, 0
      %v1236 = vsel %vm618, %v1217, 0
      %v1239 = vsel %vm618, %v1219, 0
      %v1242 = vsel %vm618, %v1221, 0
      %v1245 = vsel %vm618, %v1223, 0
      %v1248 = vsel %vm618, %v1225, 0
      %1250 = vmatprep.subr.mxu0 0.0
      %1251 = vmatpush1.msra.mxu0 %v1020
      %1252 = vmatprep.subr.mxu0 0.0
      %1253 = vmatpush1.msra.mxu0 %v1021
      %1254 = vmatprep.subr.mxu0 0.0
      %1255 = vmatpush1.msra.mxu0 %v1022
      %1256 = vmatprep.subr.mxu0 0.0
      %1257 = vmatpush1.msra.mxu0 %v1023
      %1258 = vmatprep.subr.mxu0 0.0
      %1259 = vmatpush1.msra.mxu0 %v1085
      %1260 = vmatprep.subr.mxu0 0.0
      %1261 = vmatpush1.msra.mxu0 %v1086
      %1262 = vmatprep.subr.mxu0 0.0
      %1263 = vmatpush1.msra.mxu0 %v1087
      %1264 = vmatprep.subr.mxu0 0.0
      %1265 = vmatpush1.msra.mxu0 %v1088
      %1266 = vmatprep.subr.mxu0 0.0
      %1267 = vmatpush1.msra.mxu0 %v1142
      %1268 = vmatprep.subr.mxu0 0.0
      %1269 = vmatpush1.msra.mxu0 %v1143
      %1270 = vmatprep.subr.mxu0 0.0
      %1271 = vmatpush1.msra.mxu0 %v1144
      %1272 = vmatprep.subr.mxu0 0.0
      %1273 = vmatpush1.msra.mxu0 %v1145
      %1274 = vmatprep.subr.mxu0 0.0
      %1275 = vmatpush1.msra.mxu0 %v1206
      %1276 = vmatprep.subr.mxu0 0.0
      %1277 = vmatpush1.msra.mxu0 %v1207
      %1278 = vmatprep.subr.mxu0 0.0
      %1279 = vmatpush1.msra.mxu0 %v1208
      %1280 = vmatprep.subr.mxu0 0.0
      %1281 = vmatpush1.msra.mxu0 %v1209
      %1282 = vmatprep.subr.mxu0 0.0
      %1283 = vmatpush1.msra.mxu0 %v669
      %1284 = vmatprep.subr.mxu0 0.0
      %1285 = vmatpush1.msra.mxu0 0.0
      %1286 = vmatprep.subr.mxu0 0.0
      %1287 = vmatpush1.msra.mxu0 0.0
      %1288 = vmatprep.subr.mxu0 0.0
      %1289 = vmatpush1.msra.mxu0 0.0
      %1290 = vmatprep.subr.mxu0 0.0
      %1291 = vmatpush1.msra.mxu0 0.0
      %1292 = vmatprep.subr.mxu0 0.0
      %1293 = vmatpush1.msra.mxu0 0.0
      %1294 = vmatprep.subr.mxu0 0.0
      %1295 = vmatpush1.msra.mxu0 0.0
      %1296 = vmatprep.subr.mxu0 0.0
      %1297 = vmatpush1.msra.mxu0 0.0
      %1298 = vmatprep.subr.mxu0 0.0
      %1299 = vmatpush1.msra.mxu0 0.0
      %1300 = vmatprep.subr.mxu0 0.0
      %1301 = vmatpush1.msra.mxu0 0.0
      %1302 = vmatprep.subr.mxu0 0.0
      %1303 = vmatpush1.msra.mxu0 0.0
      %1304 = vmatprep.subr.mxu0 0.0
      %1305 = vmatpush1.msra.mxu0 0.0
      %1306 = vmatprep.subr.mxu0 0.0
      %1307 = vmatpush1.msra.mxu0 0.0
      %1308 = vmatprep.subr.mxu0 0.0
      %1309 = vmatpush1.msra.mxu0 0.0
      %1310 = vmatprep.subr.mxu0 0.0
      %1311 = vmatpush1.msra.mxu0 0.0
      %1312 = vmatprep.subr.mxu0 0.0
      %1313 = vmatpush1.msra.mxu0 0.0
      %1314 = vmatprep.mubr.f32.mxu0 %v1227
      %1315 = vmatmul.mubr.f32.gmra.mrb[0].mxu0 %v1210
      %v1316 = vpop.f32.mrb[0].mxu0
      %v1317 = vadd.f32 0.0, %v1316
      %v1318 = vpop.f32.mrb[0].mxu0
      %1319 = vmatprep.mubr.f32.mxu0 %v1230
      %1320 = vmatmul.mubr.f32.gmra.mrb[0].mxu0 %v1212
      %v1321 = vpop.f32.mrb[0].mxu0
      %v1322 = vadd.f32 0.0, %v1321
      %v1323 = vpop.f32.mrb[0].mxu0
      %1324 = vmatprep.mubr.f32.mxu0 %v1233
      %1325 = vmatmul.mubr.f32.gmra.mrb[0].mxu0 %v1214
      %v1326 = vpop.f32.mrb[0].mxu0
      %v1327 = vadd.f32 0.0, %v1326
      %v1328 = vpop.f32.mrb[0].mxu0
      %1329 = vmatprep.mubr.f32.mxu0 %v1236
      %1330 = vmatmul.mubr.f32.gmra.mrb[0].mxu0 %v1216
      %v1331 = vpop.f32.mrb[0].mxu0
      %v1332 = vadd.f32 0.0, %v1331
      %v1333 = vpop.f32.mrb[0].mxu0
      %1334 = vmatprep.mubr.f32.mxu0 %v1239
      %1335 = vmatmul.mubr.f32.gmra.mrb[0].mxu0 %v1218
      %v1336 = vpop.f32.mrb[0].mxu0
      %v1337 = vadd.f32 0.0, %v1336
      %v1338 = vpop.f32.mrb[0].mxu0
      %1339 = vmatprep.mubr.f32.mxu0 %v1242
      %1340 = vmatmul.mubr.f32.gmra.mrb[0].mxu0 %v1220
      %v1341 = vpop.f32.mrb[0].mxu0
      %v1342 = vadd.f32 0.0, %v1341
      %v1343 = vpop.f32.mrb[0].mxu0
      %1344 = vmatprep.mubr.f32.mxu0 %v1245
      %1345 = vmatmul.mubr.f32.gmra.mrb[0].mxu0 %v1222
      %v1346 = vpop.f32.mrb[0].mxu0
      %v1347 = vadd.f32 0.0, %v1346
      %v1348 = vpop.f32.mrb[0].mxu0
      %1349 = vmatprep.mubr.f32.mxu0 %v1248
      %1350 = vmatmul.mubr.f32.gmra.mrb[0].mxu0 %v1224
      %v1351 = vpop.f32.mrb[0].mxu0
      %v1352 = vadd.f32 0.0, %v1351
      %v1353 = vpop.f32.mrb[0].mxu0
      %1354 = vdwg.mxu0
      %1357 = vrot.lane.b32.xlu0 %v1327, 64
      %v1358 = vpop.permute.xlu0 %1357
      %1359 = vrot.lane.b32.xlu0 %v1332, 64
      %v1360 = vpop.permute.xlu0 %1359
      %1365 = vrot.lane.b32.xlu0 %v1347, 64
      %v1366 = vpop.permute.xlu0 %1365
      %1367 = vrot.lane.b32.xlu0 %v1352, 64
      %v1368 = vpop.permute.xlu0 %1367
      %vm1371 = vcmask 523264
      %v1372 = vsel %vm1371, %v1317, %v1358
      %v1373 = vsel %vm1371, %v1322, %v1360
      %v1374 = vsel %vm1371, %v1337, %v1366
      %v1375 = vsel %vm1371, %v1342, %v1368
      %1380 = vrot.lane.b32.xlu0 %v1372, 127
      %v1381 = vpop.permute.xlu0 %1380
      %1382 = vrot.lane.b32.xlu0 %v1374, 127
      %v1383 = vpop.permute.xlu0 %1382
      %1384 = vrot.lane.b32.xlu0 %v1373, 127
      %v1385 = vpop.permute.xlu0 %1384
      %1386 = vrot.lane.b32.xlu0 %v1375, 127
      %v1387 = vpop.permute.xlu0 %1386
      %vm1388 = vcmask 1039360
      %v1389 = vsel %vm1388, %v1381, %v1383
      %v1390 = vsel %vm1388, %v1385, %v1387
      %v1395 = vsel %vm1388, %v1383, 0.0
      %v1396 = vsel %vm1388, %v1387, 0.0
      %v1397 = vsel %vm361, 1, 0
      %vm1398 = vcmp.eq.s32.totalorder %v1397, 1
      %v1399 = vsel %vm470, 0.0, %v1389
      %v1400 = vsel %vm1398, 0.0, %v1395
      %v1401 = vsel %vm470, 0.0, %v1390
      %v1402 = vsel %vm1398, 0.0, %v1396
      %1403 = vrot.lane.b32.xlu0 %v1372, 112
      %v1404 = vpop.permute.xlu0 %1403
      %1405 = vrot.lane.b32.xlu0 %v1373, 112
      %v1406 = vpop.permute.xlu0 %1405
      %1411 = vrot.lane.b32.xlu0 %v1399, 16
      %v1412 = vpop.permute.xlu0 %1411
      %1413 = vrot.lane.b32.xlu0 %v1401, 16
      %v1414 = vpop.permute.xlu0 %1413
      %v1417 = vsel %vm1009, %v1404, %v1412
      %v1418 = vsel %vm1009, %v1406, %v1414
      %v1419 = vsel %vm1014, %v1417, %v1404
      %v1420 = vsel %vm1014, %v1418, %v1406
      %v1421 = vsel %vm1019, %v1419, %v1412
      %v1422 = vsel %vm1019, %v1420, %v1414
      %1423 = vrot.lane.b32.xlu0 %v1374, 112
      %v1424 = vpop.permute.xlu0 %1423
      %1425 = vrot.lane.b32.xlu0 %v1375, 112
      %v1426 = vpop.permute.xlu0 %1425
      %1431 = vrot.lane.b32.xlu0 %v1400, 16
      %v1432 = vpop.permute.xlu0 %1431
      %1433 = vrot.lane.b32.xlu0 %v1402, 16
      %v1434 = vpop.permute.xlu0 %1433
      %v1437 = vsel %vm1009, %v1424, %v1432
      %v1438 = vsel %vm1009, %v1426, %v1434
      %v1439 = vsel %vm1014, %v1437, %v1424
      %v1440 = vsel %vm1014, %v1438, %v1426
      %v1441 = vsel %vm1019, %v1439, %v1432
      %v1442 = vsel %vm1019, %v1440, %v1434
      %1443 = vrot.lane.b32.xlu0 %v1372, 64
      %v1444 = vpop.permute.xlu0 %1443
      %1445 = vrot.lane.b32.xlu0 %v1373, 64
      %v1446 = vpop.permute.xlu0 %1445
      %1451 = vrot.lane.b32.xlu0 %v1421, 64
      %v1452 = vpop.permute.xlu0 %1451
      %1453 = vrot.lane.b32.xlu0 %v1422, 64
      %v1454 = vpop.permute.xlu0 %1453
      %1457 = vrot.lane.b32.xlu0 %v1374, 64
      %v1458 = vpop.permute.xlu0 %1457
      %1459 = vrot.lane.b32.xlu0 %v1375, 64
      %v1460 = vpop.permute.xlu0 %1459
      %1465 = vrot.lane.b32.xlu0 %v1441, 64
      %v1466 = vpop.permute.xlu0 %1465
      %1467 = vrot.lane.b32.xlu0 %v1442, 64
      %v1468 = vpop.permute.xlu0 %1467
      %v1471 = vsel %vm1371, %v1444, %v1452
      %v1472 = vsel %vm1371, %v1446, %v1454
      %v1473 = vsel %vm1371, %v1458, %v1466
      %v1474 = vsel %vm1371, %v1460, %v1468
      %1475 = vrot.lane.b32.xlu0 %v1372, 124
      %v1476 = vpop.permute.xlu0 %1475
      %1477 = vrot.lane.b32.xlu0 %v1374, 124
      %v1478 = vpop.permute.xlu0 %1477
      %1479 = vrot.lane.b32.xlu0 %v1373, 124
      %v1480 = vpop.permute.xlu0 %1479
      %1481 = vrot.lane.b32.xlu0 %v1375, 124
      %v1482 = vpop.permute.xlu0 %1481
      %vm1483 = vcmask 1014784
      %v1484 = vsel %vm1483, %v1476, %v1478
      %v1485 = vsel %vm1483, %v1480, %v1482
      %v1488 = vsel %vm513, 0.0, %v1484
      %v1489 = vsel %vm513, 0.0, %v1485
      %1490 = vrot.lane.b32.xlu0 %v1372, 96
      %v1491 = vpop.permute.xlu0 %1490
      %1492 = vrot.lane.b32.xlu0 %v1373, 96
      %v1493 = vpop.permute.xlu0 %1492
      %1498 = vrot.lane.b32.xlu0 %v1488, 32
      %v1499 = vpop.permute.xlu0 %1498
      %1500 = vrot.lane.b32.xlu0 %v1489, 32
      %v1501 = vpop.permute.xlu0 %1500
      %v1504 = vsel %vm1014, %v1491, %v1499
      %v1505 = vsel %vm1014, %v1493, %v1501
      %v1506 = vsel %vm1019, %v1504, %v1499
      %v1507 = vsel %vm1019, %v1505, %v1501
      %1508 = vrot.lane.b32.xlu0 %v1372, 32
      %v1509 = vpop.permute.xlu0 %1508
      %1510 = vrot.lane.b32.xlu0 %v1373, 32
      %v1511 = vpop.permute.xlu0 %1510
      %1514 = vrot.lane.b32.xlu0 %v1488, 96
      %v1515 = vpop.permute.xlu0 %1514
      %1516 = vrot.lane.b32.xlu0 %v1489, 96
      %v1517 = vpop.permute.xlu0 %1516
      %v1520 = vsel %vm1014, %v1509, %v1515
      %v1521 = vsel %vm1014, %v1511, %v1517
      %v1522 = vsel %vm1019, %v1520, %v1515
      %v1523 = vsel %vm1019, %v1521, %v1517
      %1526 = vrot.lane.b32.xlu0 %v1522, 64
      %v1527 = vpop.permute.xlu0 %1526
      %1528 = vrot.lane.b32.xlu0 %v1523, 64
      %v1529 = vpop.permute.xlu0 %1528
      %v1532 = vsel %vm1371, %v1506, %v1527
      %v1533 = vsel %vm1371, %v1507, %v1529
      %1536 = vrot.lane.b32.xlu0 %v1532, 127
      %v1537 = vpop.permute.xlu0 %1536
      %1538 = vrot.lane.b32.xlu0 %v1533, 127
      %v1539 = vpop.permute.xlu0 %1538
      %v1540 = vsel %vm1388, %v1383, %v1537
      %v1541 = vsel %vm1388, %v1387, %v1539
      %v1546 = vsel %vm1388, %v1537, 0.0
      %v1547 = vsel %vm1388, %v1539, 0.0
      %v1548 = vsel %vm470, 0.0, %v1540
      %v1549 = vsel %vm1398, 0.0, %v1546
      %v1550 = vsel %vm470, 0.0, %v1541
      %v1551 = vsel %vm1398, 0.0, %v1547
      %1554 = vrot.lane.b32.xlu0 %v1548, 16
      %v1555 = vpop.permute.xlu0 %1554
      %1556 = vrot.lane.b32.xlu0 %v1550, 16
      %v1557 = vpop.permute.xlu0 %1556
      %v1560 = vsel %vm1009, %v1424, %v1555
      %v1561 = vsel %vm1009, %v1426, %v1557
      %v1562 = vsel %vm1014, %v1560, %v1424
      %v1563 = vsel %vm1014, %v1561, %v1426
      %v1564 = vsel %vm1019, %v1562, %v1555
      %v1565 = vsel %vm1019, %v1563, %v1557
      %1566 = vrot.lane.b32.xlu0 %v1532, 112
      %v1567 = vpop.permute.xlu0 %1566
      %1568 = vrot.lane.b32.xlu0 %v1533, 112
      %v1569 = vpop.permute.xlu0 %1568
      %1574 = vrot.lane.b32.xlu0 %v1549, 16
      %v1575 = vpop.permute.xlu0 %1574
      %1576 = vrot.lane.b32.xlu0 %v1551, 16
      %v1577 = vpop.permute.xlu0 %1576
      %v1580 = vsel %vm1009, %v1567, %v1575
      %v1581 = vsel %vm1009, %v1569, %v1577
      %v1582 = vsel %vm1014, %v1580, %v1567
      %v1583 = vsel %vm1014, %v1581, %v1569
      %v1584 = vsel %vm1019, %v1582, %v1575
      %v1585 = vsel %vm1019, %v1583, %v1577
      %1588 = vrot.lane.b32.xlu0 %v1564, 64
      %v1589 = vpop.permute.xlu0 %1588
      %1590 = vrot.lane.b32.xlu0 %v1565, 64
      %v1591 = vpop.permute.xlu0 %1590
      %1594 = vrot.lane.b32.xlu0 %v1532, 64
      %v1595 = vpop.permute.xlu0 %1594
      %1596 = vrot.lane.b32.xlu0 %v1533, 64
      %v1597 = vpop.permute.xlu0 %1596
      %1602 = vrot.lane.b32.xlu0 %v1584, 64
      %v1603 = vpop.permute.xlu0 %1602
      %1604 = vrot.lane.b32.xlu0 %v1585, 64
      %v1605 = vpop.permute.xlu0 %1604
      %v1608 = vsel %vm1371, %v1458, %v1589
      %v1609 = vsel %vm1371, %v1460, %v1591
      %v1610 = vsel %vm1371, %v1595, %v1603
      %v1611 = vsel %vm1371, %v1597, %v1605
      %v1612 = vld [vmem:[%s3] sm:$0xff]
      %v1613 = vld [vmem:[%s3 + $0x8] sm:$0xff]
      %v1614 = vld [vmem:[%s3 + $0x10] sm:$0xff]
      %v1615 = vld [vmem:[%s3 + $0x18] sm:$0xff]
      %vm1616 = vcmask 531456
      %v1618 = vsel %vm1616, %v1612, 0
      %v1621 = vsel %vm1616, %v1613, 0
      %v1624 = vsel %vm1616, %v1614, 0
      %v1627 = vsel %vm1616, %v1615, 0
      %1629 = vmatprep.subr.mxu0 %v1374
      %1630 = vmatpush1.msra.mxu0 %v1372
      %1631 = vmatprep.subr.mxu0 %v1375
      %1632 = vmatpush1.msra.mxu0 %v1373
      %1633 = vmatprep.subr.mxu0 %v1473
      %1634 = vmatpush1.msra.mxu0 %v1471
      %1635 = vmatprep.subr.mxu0 %v1474
      %1636 = vmatpush1.msra.mxu0 %v1472
      %1637 = vmatprep.subr.mxu0 %v1532
      %1638 = vmatpush1.msra.mxu0 %v1374
      %1639 = vmatprep.subr.mxu0 %v1533
      %1640 = vmatpush1.msra.mxu0 %v1375
      %1641 = vmatprep.subr.mxu0 %v1610
      %1642 = vmatpush1.msra.mxu0 %v1608
      %1643 = vmatprep.subr.mxu0 %v1611
      %1644 = vmatpush1.msra.mxu0 %v1609
      %1645 = vmatprep.subr.mxu0 %v669
      %1646 = vmatpush1.msra.mxu0 %v669
      %1647 = vmatprep.subr.mxu0 0.0
      %1648 = vmatpush1.msra.mxu0 0.0
      %1649 = vmatprep.subr.mxu0 0.0
      %1650 = vmatpush1.msra.mxu0 0.0
      %1651 = vmatprep.subr.mxu0 0.0
      %1652 = vmatpush1.msra.mxu0 0.0
      %1653 = vmatprep.subr.mxu0 0.0
      %1654 = vmatpush1.msra.mxu0 0.0
      %1655 = vmatprep.subr.mxu0 0.0
      %1656 = vmatpush1.msra.mxu0 0.0
      %1657 = vmatprep.subr.mxu0 0.0
      %1658 = vmatpush1.msra.mxu0 0.0
      %1659 = vmatprep.subr.mxu0 0.0
      %1660 = vmatpush1.msra.mxu0 0.0
      %1661 = vmatprep.subr.mxu0 0.0
      %1662 = vmatpush1.msra.mxu0 0.0
      %1663 = vmatprep.subr.mxu0 0.0
      %1664 = vmatpush1.msra.mxu0 0.0
      %1665 = vmatprep.subr.mxu0 0.0
      %1666 = vmatpush1.msra.mxu0 0.0
      %1667 = vmatprep.subr.mxu0 0.0
      %1668 = vmatpush1.msra.mxu0 0.0
      %1669 = vmatprep.subr.mxu0 0.0
      %1670 = vmatpush1.msra.mxu0 0.0
      %1671 = vmatprep.subr.mxu0 0.0
      %1672 = vmatpush1.msra.mxu0 0.0
      %1673 = vmatprep.subr.mxu0 0.0
      %1674 = vmatpush1.msra.mxu0 0.0
      %1675 = vmatprep.subr.mxu0 0.0
      %1676 = vmatpush1.msra.mxu0 0.0
      %1677 = vmatprep.subr.mxu0 0.0
      %1678 = vmatpush1.msra.mxu0 0.0
      %1679 = vmatprep.subr.mxu0 0.0
      %1680 = vmatpush1.msra.mxu0 0.0
      %1681 = vmatprep.subr.mxu0 0.0
      %1682 = vmatpush1.msra.mxu0 0.0
      %1683 = vmatprep.subr.mxu0 0.0
      %1684 = vmatpush1.msra.mxu0 0.0
      %1685 = vmatprep.subr.mxu0 0.0
      %1686 = vmatpush1.msra.mxu0 0.0
      %1687 = vmatprep.subr.mxu0 0.0
      %1688 = vmatpush1.msra.mxu0 0.0
      %1689 = vmatprep.subr.mxu0 0.0
      %1690 = vmatpush1.msra.mxu0 0.0
      %1691 = vmatprep.subr.mxu0 0.0
      %1692 = vmatpush1.msra.mxu0 0.0
      %1693 = vmatprep.mubr.f32.mxu0 0.0
      %1694 = vmatmul.mubr.f32.gmra.mrb[0].mxu0 %v1618
      %v1695 = vpop.f32.mrb[0].mxu0
      %v1696 = vadd.f32 0.0, %v1695
      %v1697 = vpop.f32.mrb[0].mxu0
      %v1698 = vadd.f32 0.0, %v1697
      %1699 = vmatprep.mubr.f32.mxu0 0.0
      %1700 = vmatmul.mubr.f32.gmra.mrb[0].mxu0 %v1621
      %v1701 = vpop.f32.mrb[0].mxu0
      %v1702 = vadd.f32 0.0, %v1701
      %v1703 = vpop.f32.mrb[0].mxu0
      %v1704 = vadd.f32 0.0, %v1703
      %1705 = vmatprep.mubr.f32.mxu0 0.0
      %1706 = vmatmul.mubr.f32.gmra.mrb[0].mxu0 %v1624
      %v1707 = vpop.f32.mrb[0].mxu0
      %v1708 = vadd.f32 0.0, %v1707
      %v1709 = vpop.f32.mrb[0].mxu0
      %v1710 = vadd.f32 0.0, %v1709
      %1711 = vmatprep.mubr.f32.mxu0 0.0
      %1712 = vmatmul.mubr.f32.gmra.mrb[0].mxu0 %v1627
      %v1713 = vpop.f32.mrb[0].mxu0
      %v1714 = vadd.f32 0.0, %v1713
      %v1715 = vpop.f32.mrb[0].mxu0
      %v1716 = vadd.f32 0.0, %v1715
      %1717 = vdwg.mxu0
      %1724 = vrot.lane.b32.xlu0 %v1696, 127
      %v1725 = vpop.permute.xlu0 %1724
      %1726 = vrot.lane.b32.xlu0 %v1698, 127
      %v1727 = vpop.permute.xlu0 %1726
      %1728 = vrot.lane.b32.xlu0 %v1702, 127
      %v1729 = vpop.permute.xlu0 %1728
      %1730 = vrot.lane.b32.xlu0 %v1708, 127
      %v1731 = vpop.permute.xlu0 %1730
      %1732 = vrot.lane.b32.xlu0 %v1710, 127
      %v1733 = vpop.permute.xlu0 %1732
      %1734 = vrot.lane.b32.xlu0 %v1714, 127
      %v1735 = vpop.permute.xlu0 %1734
      %v1736 = vsel %vm1388, %v1725, %v1727
      %v1737 = vsel %vm1388, %v1727, %v1729
      %v1738 = vsel %vm1388, %v1731, %v1733
      %v1739 = vsel %vm1388, %v1733, %v1735
      %v1744 = vsel %vm362, 1, 0
      %v1745 = vsel %vm363, 1, 0
      %vm1746 = vcmp.eq.s32.totalorder %v1744, 1
      %vm1747 = vcmp.eq.s32.totalorder %v1745, 1
      %v1748 = vsel %vm470, 0.0, %v1736
      %v1749 = vsel %vm1398, 0.0, %v1737
      %v1750 = vsel %vm1746, 0.0, %v1738
      %v1751 = vsel %vm1747, 0.0, %v1739
      %1752 = vrot.lane.b32.xlu0 %v1696, 112
      %v1753 = vpop.permute.xlu0 %1752
      %1756 = vrot.lane.b32.xlu0 %v1748, 16
      %v1757 = vpop.permute.xlu0 %1756
      %v1759 = vsel %vm1009, %v1753, %v1757
      %v1760 = vsel %vm1014, %v1759, %v1753
      %v1761 = vsel %vm1019, %v1760, %v1757
      %1762 = vrot.lane.b32.xlu0 %v1698, 112
      %v1763 = vpop.permute.xlu0 %1762
      %1766 = vrot.lane.b32.xlu0 %v1749, 16
      %v1767 = vpop.permute.xlu0 %1766
      %v1769 = vsel %vm1009, %v1763, %v1767
      %v1770 = vsel %vm1014, %v1769, %v1763
      %v1771 = vsel %vm1019, %v1770, %v1767
      %1772 = vrot.lane.b32.xlu0 %v1696, 64
      %v1773 = vpop.permute.xlu0 %1772
      %1776 = vrot.lane.b32.xlu0 %v1761, 64
      %v1777 = vpop.permute.xlu0 %1776
      %1779 = vrot.lane.b32.xlu0 %v1698, 64
      %v1780 = vpop.permute.xlu0 %1779
      %1783 = vrot.lane.b32.xlu0 %v1771, 64
      %v1784 = vpop.permute.xlu0 %1783
      %v1786 = vsel %vm1371, %v1773, %v1777
      %v1787 = vsel %vm1371, %v1780, %v1784
      %1788 = vrot.lane.b32.xlu0 %v1708, 112
      %v1789 = vpop.permute.xlu0 %1788
      %1792 = vrot.lane.b32.xlu0 %v1750, 16
      %v1793 = vpop.permute.xlu0 %1792
      %v1795 = vsel %vm1009, %v1789, %v1793
      %v1796 = vsel %vm1014, %v1795, %v1789
      %v1797 = vsel %vm1019, %v1796, %v1793
      %1798 = vrot.lane.b32.xlu0 %v1710, 112
      %v1799 = vpop.permute.xlu0 %1798
      %1802 = vrot.lane.b32.xlu0 %v1751, 16
      %v1803 = vpop.permute.xlu0 %1802
      %v1805 = vsel %vm1009, %v1799, %v1803
      %v1806 = vsel %vm1014, %v1805, %v1799
      %v1807 = vsel %vm1019, %v1806, %v1803
      %1808 = vrot.lane.b32.xlu0 %v1708, 64
      %v1809 = vpop.permute.xlu0 %1808
      %1812 = vrot.lane.b32.xlu0 %v1797, 64
      %v1813 = vpop.permute.xlu0 %1812
      %1815 = vrot.lane.b32.xlu0 %v1710, 64
      %v1816 = vpop.permute.xlu0 %1815
      %1819 = vrot.lane.b32.xlu0 %v1807, 64
      %v1820 = vpop.permute.xlu0 %1819
      %v1822 = vsel %vm1371, %v1809, %v1813
      %v1823 = vsel %vm1371, %v1816, %v1820
      %1825 = vrot.lane.b32.xlu0 %v1696, 124
      %v1826 = vpop.permute.xlu0 %1825
      %1827 = vrot.lane.b32.xlu0 %v1698, 124
      %v1828 = vpop.permute.xlu0 %1827
      %1829 = vrot.lane.b32.xlu0 %v1702, 124
      %v1830 = vpop.permute.xlu0 %1829
      %1831 = vrot.lane.b32.xlu0 %v1704, 124
      %v1832 = vpop.permute.xlu0 %1831
      %v1833 = vsel %vm1483, %v1826, %v1828
      %v1834 = vsel %vm1483, %v1830, %v1832
      %v1837 = vsel %vm417, 1, 0
      %vm1838 = vcmp.eq.s32.totalorder %v1837, 1
      %v1839 = vsel %vm513, 0.0, %v1833
      %v1840 = vsel %vm1838, 0.0, %v1834
      %1841 = vrot.lane.b32.xlu0 %v1696, 96
      %v1842 = vpop.permute.xlu0 %1841
      %1845 = vrot.lane.b32.xlu0 %v1839, 32
      %v1846 = vpop.permute.xlu0 %1845
      %v1848 = vsel %vm1014, %v1842, %v1846
      %v1849 = vsel %vm1019, %v1848, %v1846
      %1850 = vrot.lane.b32.xlu0 %v1696, 32
      %v1851 = vpop.permute.xlu0 %1850
      %1853 = vrot.lane.b32.xlu0 %v1839, 96
      %v1854 = vpop.permute.xlu0 %1853
      %v1856 = vsel %vm1014, %v1851, %v1854
      %v1857 = vsel %vm1019, %v1856, %v1854
      %1859 = vrot.lane.b32.xlu0 %v1857, 64
      %v1860 = vpop.permute.xlu0 %1859
      %v1862 = vsel %vm1371, %v1849, %v1860
      %1863 = vrot.lane.b32.xlu0 %v1702, 96
      %v1864 = vpop.permute.xlu0 %1863
      %1867 = vrot.lane.b32.xlu0 %v1840, 32
      %v1868 = vpop.permute.xlu0 %1867
      %v1870 = vsel %vm1014, %v1864, %v1868
      %v1871 = vsel %vm1019, %v1870, %v1868
      %1872 = vrot.lane.b32.xlu0 %v1702, 32
      %v1873 = vpop.permute.xlu0 %1872
      %1875 = vrot.lane.b32.xlu0 %v1840, 96
      %v1876 = vpop.permute.xlu0 %1875
      %v1878 = vsel %vm1014, %v1873, %v1876
      %v1879 = vsel %vm1019, %v1878, %v1876
      %1881 = vrot.lane.b32.xlu0 %v1879, 64
      %v1882 = vpop.permute.xlu0 %1881
      %v1884 = vsel %vm1371, %v1871, %v1882
      %1886 = vrot.lane.b32.xlu0 %v1862, 127
      %v1887 = vpop.permute.xlu0 %1886
      %1888 = vrot.lane.b32.xlu0 %v1704, 127
      %v1889 = vpop.permute.xlu0 %1888
      %v1890 = vsel %vm1388, %v1727, %v1887
      %v1891 = vsel %vm1388, %v1887, %v1889
      %v1894 = vsel %vm470, 0.0, %v1738
      %v1895 = vsel %vm1398, 0.0, %v1739
      %v1896 = vsel %vm1746, 0.0, %v1890
      %v1897 = vsel %vm1747, 0.0, %v1891
      %1899 = vrot.lane.b32.xlu0 %v1894, 16
      %v1900 = vpop.permute.xlu0 %1899
      %v1902 = vsel %vm1009, %v1789, %v1900
      %v1903 = vsel %vm1014, %v1902, %v1789
      %v1904 = vsel %vm1019, %v1903, %v1900
      %1906 = vrot.lane.b32.xlu0 %v1895, 16
      %v1907 = vpop.permute.xlu0 %1906
      %v1909 = vsel %vm1009, %v1799, %v1907
      %v1910 = vsel %vm1014, %v1909, %v1799
      %v1911 = vsel %vm1019, %v1910, %v1907
      %1913 = vrot.lane.b32.xlu0 %v1904, 64
      %v1914 = vpop.permute.xlu0 %1913
      %1917 = vrot.lane.b32.xlu0 %v1911, 64
      %v1918 = vpop.permute.xlu0 %1917
      %v1920 = vsel %vm1371, %v1809, %v1914
      %v1921 = vsel %vm1371, %v1816, %v1918
      %1923 = vrot.lane.b32.xlu0 %v1896, 16
      %v1924 = vpop.permute.xlu0 %1923
      %v1926 = vsel %vm1009, %v1763, %v1924
      %v1927 = vsel %vm1014, %v1926, %v1763
      %v1928 = vsel %vm1019, %v1927, %v1924
      %1929 = vrot.lane.b32.xlu0 %v1862, 112
      %v1930 = vpop.permute.xlu0 %1929
      %1933 = vrot.lane.b32.xlu0 %v1897, 16
      %v1934 = vpop.permute.xlu0 %1933
      %v1936 = vsel %vm1009, %v1930, %v1934
      %v1937 = vsel %vm1014, %v1936, %v1930
      %v1938 = vsel %vm1019, %v1937, %v1934
      %1940 = vrot.lane.b32.xlu0 %v1928, 64
      %v1941 = vpop.permute.xlu0 %1940
      %1943 = vrot.lane.b32.xlu0 %v1862, 64
      %v1944 = vpop.permute.xlu0 %1943
      %1947 = vrot.lane.b32.xlu0 %v1938, 64
      %v1948 = vpop.permute.xlu0 %1947
      %v1950 = vsel %vm1371, %v1780, %v1941
      %v1951 = vsel %vm1371, %v1944, %v1948
      %v1952 = vld [vmem:[%s4] sm:$0xff]
      %v1953 = vld [vmem:[%s4 + $0x8] sm:$0xff]
      %v1954 = vld [vmem:[%s4 + $0x10] sm:$0xff]
      %v1955 = vld [vmem:[%s4 + $0x18] sm:$0xff]
      %vm1956 = vcmask 269312
      %v1958 = vsel %vm1956, %v1952, 0
      %v1961 = vsel %vm1956, %v1953, 0
      %v1964 = vsel %vm1956, %v1954, 0
      %v1967 = vsel %vm1956, %v1955, 0
      %1969 = vmatprep.subr.mxu0 %v1698
      %1970 = vmatpush1.msra.mxu0 %v1696
      %1971 = vmatprep.subr.mxu0 %v1704
      %1972 = vmatpush1.msra.mxu0 %v1702
      %1973 = vmatprep.subr.mxu0 %v1710
      %1974 = vmatpush1.msra.mxu0 %v1708
      %1975 = vmatprep.subr.mxu0 %v1716
      %1976 = vmatpush1.msra.mxu0 %v1714
      %1977 = vmatprep.subr.mxu0 %v669
      %1978 = vmatpush1.msra.mxu0 %v669
      %1979 = vmatprep.subr.mxu0 0.0
      %1980 = vmatpush1.msra.mxu0 0.0
      %1981 = vmatprep.subr.mxu0 0.0
      %1982 = vmatpush1.msra.mxu0 0.0
      %1983 = vmatprep.subr.mxu0 0.0
      %1984 = vmatpush1.msra.mxu0 0.0
      %1985 = vmatprep.subr.mxu0 0.0
      %1986 = vmatpush1.msra.mxu0 0.0
      %1987 = vmatprep.subr.mxu0 0.0
      %1988 = vmatpush1.msra.mxu0 0.0
      %1989 = vmatprep.subr.mxu0 0.0
      %1990 = vmatpush1.msra.mxu0 0.0
      %1991 = vmatprep.subr.mxu0 0.0
      %1992 = vmatpush1.msra.mxu0 0.0
      %1993 = vmatprep.subr.mxu0 0.0
      %1994 = vmatpush1.msra.mxu0 0.0
      %1995 = vmatprep.subr.mxu0 0.0
      %1996 = vmatpush1.msra.mxu0 0.0
      %1997 = vmatprep.subr.mxu0 0.0
      %1998 = vmatpush1.msra.mxu0 0.0
      %1999 = vmatprep.subr.mxu0 0.0
      %2000 = vmatpush1.msra.mxu0 0.0
      %2001 = vmatprep.subr.mxu0 0.0
      %2002 = vmatpush1.msra.mxu0 0.0
      %2003 = vmatprep.subr.mxu0 0.0
      %2004 = vmatpush1.msra.mxu0 0.0
      %2005 = vmatprep.subr.mxu0 0.0
      %2006 = vmatpush1.msra.mxu0 0.0
      %2007 = vmatprep.subr.mxu0 0.0
      %2008 = vmatpush1.msra.mxu0 0.0
      %2009 = vmatprep.subr.mxu0 0.0
      %2010 = vmatpush1.msra.mxu0 0.0
      %2011 = vmatprep.subr.mxu0 0.0
      %2012 = vmatpush1.msra.mxu0 0.0
      %2013 = vmatprep.subr.mxu0 0.0
      %2014 = vmatpush1.msra.mxu0 0.0
      %2015 = vmatprep.subr.mxu0 0.0
      %2016 = vmatpush1.msra.mxu0 0.0
      %2017 = vmatprep.subr.mxu0 0.0
      %2018 = vmatpush1.msra.mxu0 0.0
      %2019 = vmatprep.subr.mxu0 0.0
      %2020 = vmatpush1.msra.mxu0 0.0
      %2021 = vmatprep.subr.mxu0 0.0
      %2022 = vmatpush1.msra.mxu0 0.0
      %2023 = vmatprep.subr.mxu0 0.0
      %2024 = vmatpush1.msra.mxu0 0.0
      %2025 = vmatprep.subr.mxu0 0.0
      %2026 = vmatpush1.msra.mxu0 0.0
      %2027 = vmatprep.subr.mxu0 0.0
      %2028 = vmatpush1.msra.mxu0 0.0
      %2029 = vmatprep.subr.mxu0 0.0
      %2030 = vmatpush1.msra.mxu0 0.0
      %2031 = vmatprep.subr.mxu0 0.0
      %2032 = vmatpush1.msra.mxu0 0.0
      %2033 = vmatprep.mubr.f32.mxu0 0.0
      %2034 = vmatmul.mubr.f32.gmra.mrb[0].mxu0 %v1958
      %v2035 = vpop.f32.mrb[0].mxu0
      %v2036 = vadd.f32 0.0, %v2035
      %v2037 = vpop.f32.mrb[0].mxu0
      %v2038 = vadd.f32 0.0, %v2037
      %2039 = vmatprep.mubr.f32.mxu0 0.0
      %2040 = vmatmul.mubr.f32.gmra.mrb[0].mxu0 %v1961
      %v2041 = vpop.f32.mrb[0].mxu0
      %v2042 = vadd.f32 0.0, %v2041
      %v2043 = vpop.f32.mrb[0].mxu0
      %v2044 = vadd.f32 0.0, %v2043
      %2045 = vmatprep.mubr.f32.mxu0 0.0
      %2046 = vmatmul.mubr.f32.gmra.mrb[0].mxu0 %v1964
      %v2047 = vpop.f32.mrb[0].mxu0
      %v2048 = vadd.f32 0.0, %v2047
      %v2049 = vpop.f32.mrb[0].mxu0
      %v2050 = vadd.f32 0.0, %v2049
      %2051 = vmatprep.mubr.f32.mxu0 0.0
      %2052 = vmatmul.mubr.f32.gmra.mrb[0].mxu0 %v1967
      %v2053 = vpop.f32.mrb[0].mxu0
      %v2054 = vadd.f32 0.0, %v2053
      %v2055 = vpop.f32.mrb[0].mxu0
      %v2056 = vadd.f32 0.0, %v2055
      %2057 = vdwg.mxu0
      %2058 = vmatprep.subr.mxu0 %v1704
      %2059 = vmatpush1.msra.mxu0 %v1702
      %2060 = vmatprep.subr.mxu0 %v1787
      %2061 = vmatpush1.msra.mxu0 %v1786
      %2062 = vmatprep.subr.mxu0 %v1716
      %2063 = vmatpush1.msra.mxu0 %v1714
      %2064 = vmatprep.subr.mxu0 %v1921
      %2065 = vmatpush1.msra.mxu0 %v1920
      %2066 = vmatprep.subr.mxu0 %v669
      %2067 = vmatpush1.msra.mxu0 %v669
      %2068 = vmatprep.subr.mxu0 0.0
      %2069 = vmatpush1.msra.mxu0 0.0
      %2070 = vmatprep.subr.mxu0 0.0
      %2071 = vmatpush1.msra.mxu0 0.0
      %2072 = vmatprep.subr.mxu0 0.0
      %2073 = vmatpush1.msra.mxu0 0.0
      %2074 = vmatprep.subr.mxu0 0.0
      %2075 = vmatpush1.msra.mxu0 0.0
      %2076 = vmatprep.subr.mxu0 0.0
      %2077 = vmatpush1.msra.mxu0 0.0
      %2078 = vmatprep.subr.mxu0 0.0
      %2079 = vmatpush1.msra.mxu0 0.0
      %2080 = vmatprep.subr.mxu0 0.0
      %2081 = vmatpush1.msra.mxu0 0.0
      %2082 = vmatprep.subr.mxu0 0.0
      %2083 = vmatpush1.msra.mxu0 0.0
      %2084 = vmatprep.subr.mxu0 0.0
      %2085 = vmatpush1.msra.mxu0 0.0
      %2086 = vmatprep.subr.mxu0 0.0
      %2087 = vmatpush1.msra.mxu0 0.0
      %2088 = vmatprep.subr.mxu0 0.0
      %2089 = vmatpush1.msra.mxu0 0.0
      %2090 = vmatprep.subr.mxu0 0.0
      %2091 = vmatpush1.msra.mxu0 0.0
      %2092 = vmatprep.subr.mxu0 0.0
      %2093 = vmatpush1.msra.mxu0 0.0
      %2094 = vmatprep.subr.mxu0 0.0
      %2095 = vmatpush1.msra.mxu0 0.0
      %2096 = vmatprep.subr.mxu0 0.0
      %2097 = vmatpush1.msra.mxu0 0.0
      %2098 = vmatprep.subr.mxu0 0.0
      %2099 = vmatpush1.msra.mxu0 0.0
      %2100 = vmatprep.subr.mxu0 0.0
      %2101 = vmatpush1.msra.mxu0 0.0
      %2102 = vmatprep.subr.mxu0 0.0
      %2103 = vmatpush1.msra.mxu0 0.0
      %2104 = vmatprep.subr.mxu0 0.0
      %2105 = vmatpush1.msra.mxu0 0.0
      %2106 = vmatprep.subr.mxu0 0.0
      %2107 = vmatpush1.msra.mxu0 0.0
      %2108 = vmatprep.subr.mxu0 0.0
      %2109 = vmatpush1.msra.mxu0 0.0
      %2110 = vmatprep.subr.mxu0 0.0
      %2111 = vmatpush1.msra.mxu0 0.0
      %2112 = vmatprep.subr.mxu0 0.0
      %2113 = vmatpush1.msra.mxu0 0.0
      %2114 = vmatprep.subr.mxu0 0.0
      %2115 = vmatpush1.msra.mxu0 0.0
      %2116 = vmatprep.subr.mxu0 0.0
      %2117 = vmatpush1.msra.mxu0 0.0
      %2118 = vmatprep.subr.mxu0 0.0
      %2119 = vmatpush1.msra.mxu0 0.0
      %2120 = vmatprep.subr.mxu0 0.0
      %2121 = vmatpush1.msra.mxu0 0.0
      %2122 = vmatprep.mubr.f32.mxu0 0.0
      %2123 = vmatmul.mubr.f32.gmra.mrb[0].mxu0 %v1958
      %v2124 = vpop.f32.mrb[0].mxu0
      %v2125 = vadd.f32 0.0, %v2124
      %v2126 = vpop.f32.mrb[0].mxu0
      %v2127 = vadd.f32 0.0, %v2126
      %2128 = vmatprep.mubr.f32.mxu0 0.0
      %2129 = vmatmul.mubr.f32.gmra.mrb[0].mxu0 %v1961
      %v2130 = vpop.f32.mrb[0].mxu0
      %v2131 = vadd.f32 0.0, %v2130
      %v2132 = vpop.f32.mrb[0].mxu0
      %v2133 = vadd.f32 0.0, %v2132
      %2134 = vmatprep.mubr.f32.mxu0 0.0
      %2135 = vmatmul.mubr.f32.gmra.mrb[0].mxu0 %v1964
      %v2136 = vpop.f32.mrb[0].mxu0
      %v2137 = vadd.f32 0.0, %v2136
      %v2138 = vpop.f32.mrb[0].mxu0
      %v2139 = vadd.f32 0.0, %v2138
      %2140 = vmatprep.mubr.f32.mxu0 0.0
      %2141 = vmatmul.mubr.f32.gmra.mrb[0].mxu0 %v1967
      %v2142 = vpop.f32.mrb[0].mxu0
      %v2143 = vadd.f32 0.0, %v2142
      %v2144 = vpop.f32.mrb[0].mxu0
      %v2145 = vadd.f32 0.0, %v2144
      %2146 = vdwg.mxu0
      %2147 = vmatprep.subr.mxu0 %v1710
      %2148 = vmatpush1.msra.mxu0 %v1708
      %2149 = vmatprep.subr.mxu0 %v1716
      %2150 = vmatpush1.msra.mxu0 %v1714
      %2151 = vmatprep.subr.mxu0 %v1862
      %2152 = vmatpush1.msra.mxu0 %v1698
      %2153 = vmatprep.subr.mxu0 %v1884
      %2154 = vmatpush1.msra.mxu0 %v1704
      %2155 = vmatprep.subr.mxu0 %v669
      %2156 = vmatpush1.msra.mxu0 %v669
      %2157 = vmatprep.subr.mxu0 0.0
      %2158 = vmatpush1.msra.mxu0 0.0
      %2159 = vmatprep.subr.mxu0 0.0
      %2160 = vmatpush1.msra.mxu0 0.0
      %2161 = vmatprep.subr.mxu0 0.0
      %2162 = vmatpush1.msra.mxu0 0.0
      %2163 = vmatprep.subr.mxu0 0.0
      %2164 = vmatpush1.msra.mxu0 0.0
      %2165 = vmatprep.subr.mxu0 0.0
      %2166 = vmatpush1.msra.mxu0 0.0
      %2167 = vmatprep.subr.mxu0 0.0
      %2168 = vmatpush1.msra.mxu0 0.0
      %2169 = vmatprep.subr.mxu0 0.0
      %2170 = vmatpush1.msra.mxu0 0.0
      %2171 = vmatprep.subr.mxu0 0.0
      %2172 = vmatpush1.msra.mxu0 0.0
      %2173 = vmatprep.subr.mxu0 0.0
      %2174 = vmatpush1.msra.mxu0 0.0
      %2175 = vmatprep.subr.mxu0 0.0
      %2176 = vmatpush1.msra.mxu0 0.0
      %2177 = vmatprep.subr.mxu0 0.0
      %2178 = vmatpush1.msra.mxu0 0.0
      %2179 = vmatprep.subr.mxu0 0.0
      %2180 = vmatpush1.msra.mxu0 0.0
      %2181 = vmatprep.subr.mxu0 0.0
      %2182 = vmatpush1.msra.mxu0 0.0
      %2183 = vmatprep.subr.mxu0 0.0
      %2184 = vmatpush1.msra.mxu0 0.0
      %2185 = vmatprep.subr.mxu0 0.0
      %2186 = vmatpush1.msra.mxu0 0.0
      %2187 = vmatprep.subr.mxu0 0.0
      %2188 = vmatpush1.msra.mxu0 0.0
      %2189 = vmatprep.subr.mxu0 0.0
      %2190 = vmatpush1.msra.mxu0 0.0
      %2191 = vmatprep.subr.mxu0 0.0
      %2192 = vmatpush1.msra.mxu0 0.0
      %2193 = vmatprep.subr.mxu0 0.0
      %2194 = vmatpush1.msra.mxu0 0.0
      %2195 = vmatprep.subr.mxu0 0.0
      %2196 = vmatpush1.msra.mxu0 0.0
      %2197 = vmatprep.subr.mxu0 0.0
      %2198 = vmatpush1.msra.mxu0 0.0
      %2199 = vmatprep.subr.mxu0 0.0
      %2200 = vmatpush1.msra.mxu0 0.0
      %2201 = vmatprep.subr.mxu0 0.0
      %2202 = vmatpush1.msra.mxu0 0.0
      %2203 = vmatprep.subr.mxu0 0.0
      %2204 = vmatpush1.msra.mxu0 0.0
      %2205 = vmatprep.subr.mxu0 0.0
      %2206 = vmatpush1.msra.mxu0 0.0
      %2207 = vmatprep.subr.mxu0 0.0
      %2208 = vmatpush1.msra.mxu0 0.0
      %2209 = vmatprep.subr.mxu0 0.0
      %2210 = vmatpush1.msra.mxu0 0.0
      %2211 = vmatprep.mubr.f32.mxu0 0.0
      %2212 = vmatmul.mubr.f32.gmra.mrb[0].mxu0 %v1958
      %v2213 = vpop.f32.mrb[0].mxu0
      %v2214 = vadd.f32 0.0, %v2213
      %v2215 = vpop.f32.mrb[0].mxu0
      %v2216 = vadd.f32 0.0, %v2215
      %2217 = vmatprep.mubr.f32.mxu0 0.0
      %2218 = vmatmul.mubr.f32.gmra.mrb[0].mxu0 %v1961
      %v2219 = vpop.f32.mrb[0].mxu0
      %v2220 = vadd.f32 0.0, %v2219
      %v2221 = vpop.f32.mrb[0].mxu0
      %v2222 = vadd.f32 0.0, %v2221
      %2223 = vmatprep.mubr.f32.mxu0 0.0
      %2224 = vmatmul.mubr.f32.gmra.mrb[0].mxu0 %v1964
      %v2225 = vpop.f32.mrb[0].mxu0
      %v2226 = vadd.f32 0.0, %v2225
      %v2227 = vpop.f32.mrb[0].mxu0
      %v2228 = vadd.f32 0.0, %v2227
      %2229 = vmatprep.mubr.f32.mxu0 0.0
      %2230 = vmatmul.mubr.f32.gmra.mrb[0].mxu0 %v1967
      %v2231 = vpop.f32.mrb[0].mxu0
      %v2232 = vadd.f32 0.0, %v2231
      %v2233 = vpop.f32.mrb[0].mxu0
      %v2234 = vadd.f32 0.0, %v2233
      %2235 = vdwg.mxu0
      %2236 = vmatprep.subr.mxu0 %v1716
      %2237 = vmatpush1.msra.mxu0 %v1714
      %2238 = vmatprep.subr.mxu0 %v1823
      %2239 = vmatpush1.msra.mxu0 %v1822
      %2240 = vmatprep.subr.mxu0 %v1884
      %2241 = vmatpush1.msra.mxu0 %v1704
      %2242 = vmatprep.subr.mxu0 %v1951
      %2243 = vmatpush1.msra.mxu0 %v1950
      %2244 = vmatprep.subr.mxu0 %v669
      %2245 = vmatpush1.msra.mxu0 %v669
      %2246 = vmatprep.subr.mxu0 0.0
      %2247 = vmatpush1.msra.mxu0 0.0
      %2248 = vmatprep.subr.mxu0 0.0
      %2249 = vmatpush1.msra.mxu0 0.0
      %2250 = vmatprep.subr.mxu0 0.0
      %2251 = vmatpush1.msra.mxu0 0.0
      %2252 = vmatprep.subr.mxu0 0.0
      %2253 = vmatpush1.msra.mxu0 0.0
      %2254 = vmatprep.subr.mxu0 0.0
      %2255 = vmatpush1.msra.mxu0 0.0
      %2256 = vmatprep.subr.mxu0 0.0
      %2257 = vmatpush1.msra.mxu0 0.0
      %2258 = vmatprep.subr.mxu0 0.0
      %2259 = vmatpush1.msra.mxu0 0.0
      %2260 = vmatprep.subr.mxu0 0.0
      %2261 = vmatpush1.msra.mxu0 0.0
      %2262 = vmatprep.subr.mxu0 0.0
      %2263 = vmatpush1.msra.mxu0 0.0
      %2264 = vmatprep.subr.mxu0 0.0
      %2265 = vmatpush1.msra.mxu0 0.0
      %2266 = vmatprep.subr.mxu0 0.0
      %2267 = vmatpush1.msra.mxu0 0.0
      %2268 = vmatprep.subr.mxu0 0.0
      %2269 = vmatpush1.msra.mxu0 0.0
      %2270 = vmatprep.subr.mxu0 0.0
      %2271 = vmatpush1.msra.mxu0 0.0
      %2272 = vmatprep.subr.mxu0 0.0
      %2273 = vmatpush1.msra.mxu0 0.0
      %2274 = vmatprep.subr.mxu0 0.0
      %2275 = vmatpush1.msra.mxu0 0.0
      %2276 = vmatprep.subr.mxu0 0.0
      %2277 = vmatpush1.msra.mxu0 0.0
      %2278 = vmatprep.subr.mxu0 0.0
      %2279 = vmatpush1.msra.mxu0 0.0
      %2280 = vmatprep.subr.mxu0 0.0
      %2281 = vmatpush1.msra.mxu0 0.0
      %2282 = vmatprep.subr.mxu0 0.0
      %2283 = vmatpush1.msra.mxu0 0.0
      %2284 = vmatprep.subr.mxu0 0.0
      %2285 = vmatpush1.msra.mxu0 0.0
      %2286 = vmatprep.subr.mxu0 0.0
      %2287 = vmatpush1.msra.mxu0 0.0
      %2288 = vmatprep.subr.mxu0 0.0
      %2289 = vmatpush1.msra.mxu0 0.0
      %2290 = vmatprep.subr.mxu0 0.0
      %2291 = vmatpush1.msra.mxu0 0.0
      %2292 = vmatprep.subr.mxu0 0.0
      %2293 = vmatpush1.msra.mxu0 0.0
      %2294 = vmatprep.subr.mxu0 0.0
      %2295 = vmatpush1.msra.mxu0 0.0
      %2296 = vmatprep.subr.mxu0 0.0
      %2297 = vmatpush1.msra.mxu0 0.0
      %2298 = vmatprep.subr.mxu0 0.0
      %2299 = vmatpush1.msra.mxu0 0.0
      %2300 = vmatprep.mubr.f32.mxu0 0.0
      %2301 = vmatmul.mubr.f32.gmra.mrb[0].mxu0 %v1958
      %v2302 = vpop.f32.mrb[0].mxu0
      %v2303 = vadd.f32 0.0, %v2302
      %v2304 = vpop.f32.mrb[0].mxu0
      %v2305 = vadd.f32 0.0, %v2304
      %2306 = vmatprep.mubr.f32.mxu0 0.0
      %2307 = vmatmul.mubr.f32.gmra.mrb[0].mxu0 %v1961
      %v2308 = vpop.f32.mrb[0].mxu0
      %v2309 = vadd.f32 0.0, %v2308
      %v2310 = vpop.f32.mrb[0].mxu0
      %v2311 = vadd.f32 0.0, %v2310
      %2312 = vmatprep.mubr.f32.mxu0 0.0
      %2313 = vmatmul.mubr.f32.gmra.mrb[0].mxu0 %v1964
      %v2314 = vpop.f32.mrb[0].mxu0
      %v2315 = vadd.f32 0.0, %v2314
      %v2316 = vpop.f32.mrb[0].mxu0
      %v2317 = vadd.f32 0.0, %v2316
      %2318 = vmatprep.mubr.f32.mxu0 0.0
      %2319 = vmatmul.mubr.f32.gmra.mrb[0].mxu0 %v1967
      %v2320 = vpop.f32.mrb[0].mxu0
      %v2321 = vadd.f32 0.0, %v2320
      %v2322 = vpop.f32.mrb[0].mxu0
      %v2323 = vadd.f32 0.0, %v2322
      %2324 = vdwg.mxu0
      %2337 = vrot.lane.b32.xlu0 %v2036, 127
      %v2338 = vpop.permute.xlu0 %2337
      %2339 = vrot.lane.b32.xlu0 %v2038, 127
      %v2340 = vpop.permute.xlu0 %2339
      %2341 = vrot.lane.b32.xlu0 %v2125, 127
      %v2342 = vpop.permute.xlu0 %2341
      %2343 = vrot.lane.b32.xlu0 %v2214, 127
      %v2344 = vpop.permute.xlu0 %2343
      %2345 = vrot.lane.b32.xlu0 %v2216, 127
      %v2346 = vpop.permute.xlu0 %2345
      %2347 = vrot.lane.b32.xlu0 %v2303, 127
      %v2348 = vpop.permute.xlu0 %2347
      %2349 = vrot.lane.b32.xlu0 %v2048, 127
      %v2350 = vpop.permute.xlu0 %2349
      %2351 = vrot.lane.b32.xlu0 %v2050, 127
      %v2352 = vpop.permute.xlu0 %2351
      %2353 = vrot.lane.b32.xlu0 %v2137, 127
      %v2354 = vpop.permute.xlu0 %2353
      %2355 = vrot.lane.b32.xlu0 %v2226, 127
      %v2356 = vpop.permute.xlu0 %2355
      %2357 = vrot.lane.b32.xlu0 %v2228, 127
      %v2358 = vpop.permute.xlu0 %2357
      %2359 = vrot.lane.b32.xlu0 %v2315, 127
      %v2360 = vpop.permute.xlu0 %2359
      %v2361 = vsel %vm1388, %v2338, %v2340
      %v2362 = vsel %vm1388, %v2340, %v2342
      %v2363 = vsel %vm1388, %v2344, %v2346
      %v2364 = vsel %vm1388, %v2346, %v2348
      %v2365 = vsel %vm1388, %v2350, %v2352
      %v2366 = vsel %vm1388, %v2352, %v2354
      %v2367 = vsel %vm1388, %v2356, %v2358
      %v2368 = vsel %vm1388, %v2358, %v2360
      %v2377 = vsel %vm364, 1, 0
      %v2378 = vsel %vm365, 1, 0
      %v2379 = vsel %vm366, 1, 0
      %v2380 = vsel %vm367, 1, 0
      %vm2381 = vcmp.eq.s32.totalorder %v2377, 1
      %vm2382 = vcmp.eq.s32.totalorder %v2378, 1
      %vm2383 = vcmp.eq.s32.totalorder %v2379, 1
      %vm2384 = vcmp.eq.s32.totalorder %v2380, 1
      %v2385 = vsel %vm470, 0.0, %v2361
      %v2386 = vsel %vm1398, 0.0, %v2362
      %v2387 = vsel %vm1746, 0.0, %v2363
      %v2388 = vsel %vm1747, 0.0, %v2364
      %v2389 = vsel %vm2381, 0.0, %v2365
      %v2390 = vsel %vm2382, 0.0, %v2366
      %v2391 = vsel %vm2383, 0.0, %v2367
      %v2392 = vsel %vm2384, 0.0, %v2368
      %2393 = vrot.lane.b32.xlu0 %v2036, 112
      %v2394 = vpop.permute.xlu0 %2393
      %2397 = vrot.lane.b32.xlu0 %v2385, 16
      %v2398 = vpop.permute.xlu0 %2397
      %v2400 = vsel %vm1009, %v2394, %v2398
      %v2401 = vsel %vm1014, %v2400, %v2394
      %v2402 = vsel %vm1019, %v2401, %v2398
      %2403 = vrot.lane.b32.xlu0 %v2038, 112
      %v2404 = vpop.permute.xlu0 %2403
      %2407 = vrot.lane.b32.xlu0 %v2386, 16
      %v2408 = vpop.permute.xlu0 %2407
      %v2410 = vsel %vm1009, %v2404, %v2408
      %v2411 = vsel %vm1014, %v2410, %v2404
      %v2412 = vsel %vm1019, %v2411, %v2408
      %2413 = vrot.lane.b32.xlu0 %v2036, 64
      %v2414 = vpop.permute.xlu0 %2413
      %2417 = vrot.lane.b32.xlu0 %v2402, 64
      %v2418 = vpop.permute.xlu0 %2417
      %2420 = vrot.lane.b32.xlu0 %v2038, 64
      %v2421 = vpop.permute.xlu0 %2420
      %2424 = vrot.lane.b32.xlu0 %v2412, 64
      %v2425 = vpop.permute.xlu0 %2424
      %v2427 = vsel %vm1371, %v2414, %v2418
      %v2428 = vsel %vm1371, %v2421, %v2425
      %2429 = vrot.lane.b32.xlu0 %v2214, 112
      %v2430 = vpop.permute.xlu0 %2429
      %2433 = vrot.lane.b32.xlu0 %v2387, 16
      %v2434 = vpop.permute.xlu0 %2433
      %v2436 = vsel %vm1009, %v2430, %v2434
      %v2437 = vsel %vm1014, %v2436, %v2430
      %v2438 = vsel %vm1019, %v2437, %v2434
      %2439 = vrot.lane.b32.xlu0 %v2216, 112
      %v2440 = vpop.permute.xlu0 %2439
      %2443 = vrot.lane.b32.xlu0 %v2388, 16
      %v2444 = vpop.permute.xlu0 %2443
      %v2446 = vsel %vm1009, %v2440, %v2444
      %v2447 = vsel %vm1014, %v2446, %v2440
      %v2448 = vsel %vm1019, %v2447, %v2444
      %2449 = vrot.lane.b32.xlu0 %v2214, 64
      %v2450 = vpop.permute.xlu0 %2449
      %2453 = vrot.lane.b32.xlu0 %v2438, 64
      %v2454 = vpop.permute.xlu0 %2453
      %2456 = vrot.lane.b32.xlu0 %v2216, 64
      %v2457 = vpop.permute.xlu0 %2456
      %2460 = vrot.lane.b32.xlu0 %v2448, 64
      %v2461 = vpop.permute.xlu0 %2460
      %v2463 = vsel %vm1371, %v2450, %v2454
      %v2464 = vsel %vm1371, %v2457, %v2461
      %2465 = vrot.lane.b32.xlu0 %v2048, 112
      %v2466 = vpop.permute.xlu0 %2465
      %2469 = vrot.lane.b32.xlu0 %v2389, 16
      %v2470 = vpop.permute.xlu0 %2469
      %v2472 = vsel %vm1009, %v2466, %v2470
      %v2473 = vsel %vm1014, %v2472, %v2466
      %v2474 = vsel %vm1019, %v2473, %v2470
      %2475 = vrot.lane.b32.xlu0 %v2050, 112
      %v2476 = vpop.permute.xlu0 %2475
      %2479 = vrot.lane.b32.xlu0 %v2390, 16
      %v2480 = vpop.permute.xlu0 %2479
      %v2482 = vsel %vm1009, %v2476, %v2480
      %v2483 = vsel %vm1014, %v2482, %v2476
      %v2484 = vsel %vm1019, %v2483, %v2480
      %2485 = vrot.lane.b32.xlu0 %v2048, 64
      %v2486 = vpop.permute.xlu0 %2485
      %2489 = vrot.lane.b32.xlu0 %v2474, 64
      %v2490 = vpop.permute.xlu0 %2489
      %2492 = vrot.lane.b32.xlu0 %v2050, 64
      %v2493 = vpop.permute.xlu0 %2492
      %2496 = vrot.lane.b32.xlu0 %v2484, 64
      %v2497 = vpop.permute.xlu0 %2496
      %v2499 = vsel %vm1371, %v2486, %v2490
      %v2500 = vsel %vm1371, %v2493, %v2497
      %2501 = vrot.lane.b32.xlu0 %v2226, 112
      %v2502 = vpop.permute.xlu0 %2501
      %2505 = vrot.lane.b32.xlu0 %v2391, 16
      %v2506 = vpop.permute.xlu0 %2505
      %v2508 = vsel %vm1009, %v2502, %v2506
      %v2509 = vsel %vm1014, %v2508, %v2502
      %v2510 = vsel %vm1019, %v2509, %v2506
      %2511 = vrot.lane.b32.xlu0 %v2228, 112
      %v2512 = vpop.permute.xlu0 %2511
      %2515 = vrot.lane.b32.xlu0 %v2392, 16
      %v2516 = vpop.permute.xlu0 %2515
      %v2518 = vsel %vm1009, %v2512, %v2516
      %v2519 = vsel %vm1014, %v2518, %v2512
      %v2520 = vsel %vm1019, %v2519, %v2516
      %2521 = vrot.lane.b32.xlu0 %v2226, 64
      %v2522 = vpop.permute.xlu0 %2521
      %2525 = vrot.lane.b32.xlu0 %v2510, 64
      %v2526 = vpop.permute.xlu0 %2525
      %2528 = vrot.lane.b32.xlu0 %v2228, 64
      %v2529 = vpop.permute.xlu0 %2528
      %2532 = vrot.lane.b32.xlu0 %v2520, 64
      %v2533 = vpop.permute.xlu0 %2532
      %v2535 = vsel %vm1371, %v2522, %v2526
      %v2536 = vsel %vm1371, %v2529, %v2533
      %2542 = vrot.lane.b32.xlu0 %v2036, 124
      %v2543 = vpop.permute.xlu0 %2542
      %2544 = vrot.lane.b32.xlu0 %v2038, 124
      %v2545 = vpop.permute.xlu0 %2544
      %2546 = vrot.lane.b32.xlu0 %v2125, 124
      %v2547 = vpop.permute.xlu0 %2546
      %2548 = vrot.lane.b32.xlu0 %v2127, 124
      %v2549 = vpop.permute.xlu0 %2548
      %2550 = vrot.lane.b32.xlu0 %v2042, 124
      %v2551 = vpop.permute.xlu0 %2550
      %2552 = vrot.lane.b32.xlu0 %v2044, 124
      %v2553 = vpop.permute.xlu0 %2552
      %2554 = vrot.lane.b32.xlu0 %v2131, 124
      %v2555 = vpop.permute.xlu0 %2554
      %2556 = vrot.lane.b32.xlu0 %v2133, 124
      %v2557 = vpop.permute.xlu0 %2556
      %v2558 = vsel %vm1483, %v2543, %v2545
      %v2559 = vsel %vm1483, %v2547, %v2549
      %v2560 = vsel %vm1483, %v2551, %v2553
      %v2561 = vsel %vm1483, %v2555, %v2557
      %v2566 = vsel %vm418, 1, 0
      %v2567 = vsel %vm419, 1, 0
      %vm2568 = vcmp.eq.s32.totalorder %v2566, 1
      %vm2569 = vcmp.eq.s32.totalorder %v2567, 1
      %v2570 = vsel %vm513, 0.0, %v2558
      %v2571 = vsel %vm1838, 0.0, %v2559
      %v2572 = vsel %vm2568, 0.0, %v2560
      %v2573 = vsel %vm2569, 0.0, %v2561
      %2574 = vrot.lane.b32.xlu0 %v2036, 96
      %v2575 = vpop.permute.xlu0 %2574
      %2578 = vrot.lane.b32.xlu0 %v2570, 32
      %v2579 = vpop.permute.xlu0 %2578
      %v2581 = vsel %vm1014, %v2575, %v2579
      %v2582 = vsel %vm1019, %v2581, %v2579
      %2583 = vrot.lane.b32.xlu0 %v2036, 32
      %v2584 = vpop.permute.xlu0 %2583
      %2586 = vrot.lane.b32.xlu0 %v2570, 96
      %v2587 = vpop.permute.xlu0 %2586
      %v2589 = vsel %vm1014, %v2584, %v2587
      %v2590 = vsel %vm1019, %v2589, %v2587
      %2592 = vrot.lane.b32.xlu0 %v2590, 64
      %v2593 = vpop.permute.xlu0 %2592
      %v2595 = vsel %vm1371, %v2582, %v2593
      %2596 = vrot.lane.b32.xlu0 %v2125, 96
      %v2597 = vpop.permute.xlu0 %2596
      %2600 = vrot.lane.b32.xlu0 %v2571, 32
      %v2601 = vpop.permute.xlu0 %2600
      %v2603 = vsel %vm1014, %v2597, %v2601
      %v2604 = vsel %vm1019, %v2603, %v2601
      %2605 = vrot.lane.b32.xlu0 %v2125, 32
      %v2606 = vpop.permute.xlu0 %2605
      %2608 = vrot.lane.b32.xlu0 %v2571, 96
      %v2609 = vpop.permute.xlu0 %2608
      %v2611 = vsel %vm1014, %v2606, %v2609
      %v2612 = vsel %vm1019, %v2611, %v2609
      %2614 = vrot.lane.b32.xlu0 %v2612, 64
      %v2615 = vpop.permute.xlu0 %2614
      %v2617 = vsel %vm1371, %v2604, %v2615
      %2618 = vrot.lane.b32.xlu0 %v2042, 96
      %v2619 = vpop.permute.xlu0 %2618
      %2622 = vrot.lane.b32.xlu0 %v2572, 32
      %v2623 = vpop.permute.xlu0 %2622
      %v2625 = vsel %vm1014, %v2619, %v2623
      %v2626 = vsel %vm1019, %v2625, %v2623
      %2627 = vrot.lane.b32.xlu0 %v2042, 32
      %v2628 = vpop.permute.xlu0 %2627
      %2630 = vrot.lane.b32.xlu0 %v2572, 96
      %v2631 = vpop.permute.xlu0 %2630
      %v2633 = vsel %vm1014, %v2628, %v2631
      %v2634 = vsel %vm1019, %v2633, %v2631
      %2636 = vrot.lane.b32.xlu0 %v2634, 64
      %v2637 = vpop.permute.xlu0 %2636
      %v2639 = vsel %vm1371, %v2626, %v2637
      %2640 = vrot.lane.b32.xlu0 %v2131, 96
      %v2641 = vpop.permute.xlu0 %2640
      %2644 = vrot.lane.b32.xlu0 %v2573, 32
      %v2645 = vpop.permute.xlu0 %2644
      %v2647 = vsel %vm1014, %v2641, %v2645
      %v2648 = vsel %vm1019, %v2647, %v2645
      %2649 = vrot.lane.b32.xlu0 %v2131, 32
      %v2650 = vpop.permute.xlu0 %2649
      %2652 = vrot.lane.b32.xlu0 %v2573, 96
      %v2653 = vpop.permute.xlu0 %2652
      %v2655 = vsel %vm1014, %v2650, %v2653
      %v2656 = vsel %vm1019, %v2655, %v2653
      %2658 = vrot.lane.b32.xlu0 %v2656, 64
      %v2659 = vpop.permute.xlu0 %2658
      %v2661 = vsel %vm1371, %v2648, %v2659
      %2663 = vrot.lane.b32.xlu0 %v2595, 127
      %v2664 = vpop.permute.xlu0 %2663
      %2665 = vrot.lane.b32.xlu0 %v2127, 127
      %v2666 = vpop.permute.xlu0 %2665
      %v2667 = vsel %vm1388, %v2340, %v2664
      %v2668 = vsel %vm1388, %v2664, %v2666
      %v2671 = vsel %vm470, 0.0, %v2365
      %v2672 = vsel %vm1398, 0.0, %v2366
      %v2673 = vsel %vm1746, 0.0, %v2367
      %v2674 = vsel %vm1747, 0.0, %v2368
      %v2675 = vsel %vm2381, 0.0, %v2363
      %v2676 = vsel %vm2382, 0.0, %v2364
      %v2677 = vsel %vm2383, 0.0, %v2667
      %v2678 = vsel %vm2384, 0.0, %v2668
      %2680 = vrot.lane.b32.xlu0 %v2671, 16
      %v2681 = vpop.permute.xlu0 %2680
      %v2683 = vsel %vm1009, %v2466, %v2681
      %v2684 = vsel %vm1014, %v2683, %v2466
      %v2685 = vsel %vm1019, %v2684, %v2681
      %2687 = vrot.lane.b32.xlu0 %v2672, 16
      %v2688 = vpop.permute.xlu0 %2687
      %v2690 = vsel %vm1009, %v2476, %v2688
      %v2691 = vsel %vm1014, %v2690, %v2476
      %v2692 = vsel %vm1019, %v2691, %v2688
      %2694 = vrot.lane.b32.xlu0 %v2685, 64
      %v2695 = vpop.permute.xlu0 %2694
      %2698 = vrot.lane.b32.xlu0 %v2692, 64
      %v2699 = vpop.permute.xlu0 %2698
      %v2701 = vsel %vm1371, %v2486, %v2695
      %v2702 = vsel %vm1371, %v2493, %v2699
      %2704 = vrot.lane.b32.xlu0 %v2673, 16
      %v2705 = vpop.permute.xlu0 %2704
      %v2707 = vsel %vm1009, %v2502, %v2705
      %v2708 = vsel %vm1014, %v2707, %v2502
      %v2709 = vsel %vm1019, %v2708, %v2705
      %2711 = vrot.lane.b32.xlu0 %v2674, 16
      %v2712 = vpop.permute.xlu0 %2711
      %v2714 = vsel %vm1009, %v2512, %v2712
      %v2715 = vsel %vm1014, %v2714, %v2512
      %v2716 = vsel %vm1019, %v2715, %v2712
      %2718 = vrot.lane.b32.xlu0 %v2709, 64
      %v2719 = vpop.permute.xlu0 %2718
      %2722 = vrot.lane.b32.xlu0 %v2716, 64
      %v2723 = vpop.permute.xlu0 %2722
      %v2725 = vsel %vm1371, %v2522, %v2719
      %v2726 = vsel %vm1371, %v2529, %v2723
      %2728 = vrot.lane.b32.xlu0 %v2675, 16
      %v2729 = vpop.permute.xlu0 %2728
      %v2731 = vsel %vm1009, %v2430, %v2729
      %v2732 = vsel %vm1014, %v2731, %v2430
      %v2733 = vsel %vm1019, %v2732, %v2729
      %2735 = vrot.lane.b32.xlu0 %v2676, 16
      %v2736 = vpop.permute.xlu0 %2735
      %v2738 = vsel %vm1009, %v2440, %v2736
      %v2739 = vsel %vm1014, %v2738, %v2440
      %v2740 = vsel %vm1019, %v2739, %v2736
      %2742 = vrot.lane.b32.xlu0 %v2733, 64
      %v2743 = vpop.permute.xlu0 %2742
      %2746 = vrot.lane.b32.xlu0 %v2740, 64
      %v2747 = vpop.permute.xlu0 %2746
      %v2749 = vsel %vm1371, %v2450, %v2743
      %v2750 = vsel %vm1371, %v2457, %v2747
      %2752 = vrot.lane.b32.xlu0 %v2677, 16
      %v2753 = vpop.permute.xlu0 %2752
      %v2755 = vsel %vm1009, %v2404, %v2753
      %v2756 = vsel %vm1014, %v2755, %v2404
      %v2757 = vsel %vm1019, %v2756, %v2753
      %2758 = vrot.lane.b32.xlu0 %v2595, 112
      %v2759 = vpop.permute.xlu0 %2758
      %2762 = vrot.lane.b32.xlu0 %v2678, 16
      %v2763 = vpop.permute.xlu0 %2762
      %v2765 = vsel %vm1009, %v2759, %v2763
      %v2766 = vsel %vm1014, %v2765, %v2759
      %v2767 = vsel %vm1019, %v2766, %v2763
      %2769 = vrot.lane.b32.xlu0 %v2757, 64
      %v2770 = vpop.permute.xlu0 %2769
      %2772 = vrot.lane.b32.xlu0 %v2595, 64
      %v2773 = vpop.permute.xlu0 %2772
      %2776 = vrot.lane.b32.xlu0 %v2767, 64
      %v2777 = vpop.permute.xlu0 %2776
      %v2779 = vsel %vm1371, %v2421, %v2770
      %v2780 = vsel %vm1371, %v2773, %v2777
      %v2804 = vrot.slane %v2042, 4
      %v2805 = vrot.slane %v2044, 4
      %v2806 = vrot.slane %v2131, 4
      %v2807 = vrot.slane %v2133, 4
      %v2808 = vrot.slane %v2220, 4
      %v2809 = vrot.slane %v2222, 4
      %v2810 = vrot.slane %v2309, 4
      %v2811 = vrot.slane %v2311, 4
      %v2812 = vrot.slane %v2125, 4
      %v2813 = vrot.slane %v2127, 4
      %v2814 = vrot.slane %v2427, 4
      %v2815 = vrot.slane %v2428, 4
      %v2816 = vrot.slane %v2303, 4
      %v2817 = vrot.slane %v2305, 4
      %v2818 = vrot.slane %v2463, 4
      %v2819 = vrot.slane %v2464, 4
      %v2820 = vrot.slane %v2054, 4
      %v2821 = vrot.slane %v2056, 4
      %v2822 = vrot.slane %v2143, 4
      %v2823 = vrot.slane %v2145, 4
      %v2824 = vrot.slane %v2232, 4
      %v2825 = vrot.slane %v2234, 4
      %v2826 = vrot.slane %v2321, 4
      %v2827 = vrot.slane %v2323, 4
      %v2828 = vrot.slane %v2137, 4
      %v2829 = vrot.slane %v2139, 4
      %v2830 = vrot.slane %v2499, 4
      %v2831 = vrot.slane %v2500, 4
      %v2832 = vrot.slane %v2315, 4
      %v2833 = vrot.slane %v2317, 4
      %v2834 = vrot.slane %v2535, 4
      %v2835 = vrot.slane %v2536, 4
      %v2879 = vrot.slane %v2701, 4
      %v2880 = vrot.slane %v2702, 4
      %v2881 = vrot.slane %v2725, 4
      %v2882 = vrot.slane %v2726, 4
      %v2883 = vrot.slane %v2639, 4
      %v2884 = vrot.slane %v2661, 4
      %v2885 = vrot.slane %v2749, 4
      %v2886 = vrot.slane %v2750, 4
      %v2887 = vrot.slane %v2617, 4
      %v2888 = vrot.slane %v2779, 4
      %v2889 = vrot.slane %v2780, 4
      %vm2901 = vcmask 1043456
      %v2902 = vsel %vm2901, %v2036, %v2804
      %v2903 = vsel %vm2901, %v2038, %v2805
      %v2904 = vsel %vm2901, %v2125, %v2806
      %v2905 = vsel %vm2901, %v2127, %v2807
      %v2906 = vsel %vm2901, %v2214, %v2808
      %v2907 = vsel %vm2901, %v2216, %v2809
      %v2908 = vsel %vm2901, %v2303, %v2810
      %v2909 = vsel %vm2901, %v2305, %v2811
      %v2910 = vsel %vm2901, %v2042, %v2812
      %v2911 = vsel %vm2901, %v2044, %v2813
      %v2912 = vsel %vm2901, %v2131, %v2814
      %v2913 = vsel %vm2901, %v2133, %v2815
      %v2914 = vsel %vm2901, %v2220, %v2816
      %v2915 = vsel %vm2901, %v2222, %v2817
      %v2916 = vsel %vm2901, %v2309, %v2818
      %v2917 = vsel %vm2901, %v2311, %v2819
      %v2918 = vsel %vm2901, %v2048, %v2820
      %v2919 = vsel %vm2901, %v2050, %v2821
      %v2920 = vsel %vm2901, %v2137, %v2822
      %v2921 = vsel %vm2901, %v2139, %v2823
      %v2922 = vsel %vm2901, %v2226, %v2824
      %v2923 = vsel %vm2901, %v2228, %v2825
      %v2924 = vsel %vm2901, %v2315, %v2826
      %v2925 = vsel %vm2901, %v2317, %v2827
      %v2926 = vsel %vm2901, %v2054, %v2828
      %v2927 = vsel %vm2901, %v2056, %v2829
      %v2928 = vsel %vm2901, %v2143, %v2830
      %v2929 = vsel %vm2901, %v2145, %v2831
      %v2930 = vsel %vm2901, %v2232, %v2832
      %v2931 = vsel %vm2901, %v2234, %v2833
      %v2932 = vsel %vm2901, %v2321, %v2834
      %v2933 = vsel %vm2901, %v2323, %v2835
      %v2934 = vsel %vm2901, %v2143, %v2879
      %v2935 = vsel %vm2901, %v2145, %v2880
      %v2936 = vsel %vm2901, %v2321, %v2881
      %v2937 = vsel %vm2901, %v2323, %v2882
      %v2938 = vsel %vm2901, %v2595, %v2883
      %v2939 = vsel %vm2901, %v2617, %v2884
      %v2940 = vsel %vm2901, %v2309, %v2885
      %v2941 = vsel %vm2901, %v2311, %v2886
      %v2942 = vsel %vm2901, %v2639, %v2887
      %v2943 = vsel %vm2901, %v2133, %v2888
      %v2944 = vsel %vm2901, %v2661, %v2889
      %v2945 = vld [vmem:[%s5] sm:$0xff]
      %v2946 = vld [vmem:[%s5 + $0x8] sm:$0xff]
      %v2947 = vld [vmem:[%s5 + $0x10] sm:$0xff]
      %v2948 = vld [vmem:[%s5 + $0x18] sm:$0xff]
      %vm2949 = vcmask 138240
      %v2951 = vsel %vm2949, %v2945, 0
      %v2954 = vsel %vm2949, %v2946, 0
      %v2957 = vsel %vm2949, %v2947, 0
      %v2960 = vsel %vm2949, %v2948, 0
      %2962 = vmatprep.subr.mxu0 %v2903
      %2963 = vmatpush1.msra.mxu0 %v2902
      %2964 = vmatprep.subr.mxu0 %v2919
      %2965 = vmatpush1.msra.mxu0 %v2918
      %2966 = vmatprep.subr.mxu0 %v669
      %2967 = vmatpush1.msra.mxu0 %v669
      %2968 = vmatprep.subr.mxu0 0.0
      %2969 = vmatpush1.msra.mxu0 0.0
      %2970 = vmatprep.subr.mxu0 0.0
      %2971 = vmatpush1.msra.mxu0 0.0
      %2972 = vmatprep.subr.mxu0 0.0
      %2973 = vmatpush1.msra.mxu0 0.0
      %2974 = vmatprep.subr.mxu0 0.0
      %2975 = vmatpush1.msra.mxu0 0.0
      %2976 = vmatprep.subr.mxu0 0.0
      %2977 = vmatpush1.msra.mxu0 0.0
      %2978 = vmatprep.subr.mxu0 0.0
      %2979 = vmatpush1.msra.mxu0 0.0
      %2980 = vmatprep.subr.mxu0 0.0
      %2981 = vmatpush1.msra.mxu0 0.0
      %2982 = vmatprep.subr.mxu0 0.0
      %2983 = vmatpush1.msra.mxu0 0.0
      %2984 = vmatprep.subr.mxu0 0.0
      %2985 = vmatpush1.msra.mxu0 0.0
      %2986 = vmatprep.subr.mxu0 0.0
      %2987 = vmatpush1.msra.mxu0 0.0
      %2988 = vmatprep.subr.mxu0 0.0
      %2989 = vmatpush1.msra.mxu0 0.0
      %2990 = vmatprep.subr.mxu0 0.0
      %2991 = vmatpush1.msra.mxu0 0.0
      %2992 = vmatprep.subr.mxu0 0.0
      %2993 = vmatpush1.msra.mxu0 0.0
      %2994 = vmatprep.subr.mxu0 0.0
      %2995 = vmatpush1.msra.mxu0 0.0
      %2996 = vmatprep.subr.mxu0 0.0
      %2997 = vmatpush1.msra.mxu0 0.0
      %2998 = vmatprep.subr.mxu0 0.0
      %2999 = vmatpush1.msra.mxu0 0.0
      %3000 = vmatprep.subr.mxu0 0.0
      %3001 = vmatpush1.msra.mxu0 0.0
      %3002 = vmatprep.subr.mxu0 0.0
      %3003 = vmatpush1.msra.mxu0 0.0
      %3004 = vmatprep.subr.mxu0 0.0
      %3005 = vmatpush1.msra.mxu0 0.0
      %3006 = vmatprep.subr.mxu0 0.0
      %3007 = vmatpush1.msra.mxu0 0.0
      %3008 = vmatprep.subr.mxu0 0.0
      %3009 = vmatpush1.msra.mxu0 0.0
      %3010 = vmatprep.subr.mxu0 0.0
      %3011 = vmatpush1.msra.mxu0 0.0
      %3012 = vmatprep.subr.mxu0 0.0
      %3013 = vmatpush1.msra.mxu0 0.0
      %3014 = vmatprep.subr.mxu0 0.0
      %3015 = vmatpush1.msra.mxu0 0.0
      %3016 = vmatprep.subr.mxu0 0.0
      %3017 = vmatpush1.msra.mxu0 0.0
      %3018 = vmatprep.subr.mxu0 0.0
      %3019 = vmatpush1.msra.mxu0 0.0
      %3020 = vmatprep.subr.mxu0 0.0
      %3021 = vmatpush1.msra.mxu0 0.0
      %3022 = vmatprep.subr.mxu0 0.0
      %3023 = vmatpush1.msra.mxu0 0.0
      %3024 = vmatprep.subr.mxu0 0.0
      %3025 = vmatpush1.msra.mxu0 0.0
      %3026 = vmatprep.mubr.f32.mxu0 0.0
      %3027 = vmatmul.mubr.f32.gmra.mrb[0].mxu0 %v2951
      %v3028 = vpop.f32.mrb[0].mxu0
      %v3029 = vadd.f32 0.0, %v3028
      %v3030 = vpop.f32.mrb[0].mxu0
      %v3031 = vadd.f32 0.0, %v3030
      %3032 = vmatprep.mubr.f32.mxu0 0.0
      %3033 = vmatmul.mubr.f32.gmra.mrb[0].mxu0 %v2954
      %v3034 = vpop.f32.mrb[0].mxu0
      %v3035 = vadd.f32 0.0, %v3034
      %v3036 = vpop.f32.mrb[0].mxu0
      %v3037 = vadd.f32 0.0, %v3036
      %3038 = vmatprep.mubr.f32.mxu0 0.0
      %3039 = vmatmul.mubr.f32.gmra.mrb[0].mxu0 %v2957
      %v3040 = vpop.f32.mrb[0].mxu0
      %v3041 = vadd.f32 0.0, %v3040
      %v3042 = vpop.f32.mrb[0].mxu0
      %v3043 = vadd.f32 0.0, %v3042
      %3044 = vmatprep.mubr.f32.mxu0 0.0
      %3045 = vmatmul.mubr.f32.gmra.mrb[0].mxu0 %v2960
      %v3046 = vpop.f32.mrb[0].mxu0
      %v3047 = vadd.f32 0.0, %v3046
      %v3048 = vpop.f32.mrb[0].mxu0
      %v3049 = vadd.f32 0.0, %v3048
      %3050 = vdwg.mxu0
      %3051 = vmatprep.subr.mxu0 %v2905
      %3052 = vmatpush1.msra.mxu0 %v2904
      %3053 = vmatprep.subr.mxu0 %v2921
      %3054 = vmatpush1.msra.mxu0 %v2920
      %3055 = vmatprep.subr.mxu0 %v669
      %3056 = vmatpush1.msra.mxu0 %v669
      %3057 = vmatprep.subr.mxu0 0.0
      %3058 = vmatpush1.msra.mxu0 0.0
      %3059 = vmatprep.subr.mxu0 0.0
      %3060 = vmatpush1.msra.mxu0 0.0
      %3061 = vmatprep.subr.mxu0 0.0
      %3062 = vmatpush1.msra.mxu0 0.0
      %3063 = vmatprep.subr.mxu0 0.0
      %3064 = vmatpush1.msra.mxu0 0.0
      %3065 = vmatprep.subr.mxu0 0.0
      %3066 = vmatpush1.msra.mxu0 0.0
      %3067 = vmatprep.subr.mxu0 0.0
      %3068 = vmatpush1.msra.mxu0 0.0
      %3069 = vmatprep.subr.mxu0 0.0
      %3070 = vmatpush1.msra.mxu0 0.0
      %3071 = vmatprep.subr.mxu0 0.0
      %3072 = vmatpush1.msra.mxu0 0.0
      %3073 = vmatprep.subr.mxu0 0.0
      %3074 = vmatpush1.msra.mxu0 0.0
      %3075 = vmatprep.subr.mxu0 0.0
      %3076 = vmatpush1.msra.mxu0 0.0
      %3077 = vmatprep.subr.mxu0 0.0
      %3078 = vmatpush1.msra.mxu0 0.0
      %3079 = vmatprep.subr.mxu0 0.0
      %3080 = vmatpush1.msra.mxu0 0.0
      %3081 = vmatprep.subr.mxu0 0.0
      %3082 = vmatpush1.msra.mxu0 0.0
      %3083 = vmatprep.subr.mxu0 0.0
      %3084 = vmatpush1.msra.mxu0 0.0
      %3085 = vmatprep.subr.mxu0 0.0
      %3086 = vmatpush1.msra.mxu0 0.0
      %3087 = vmatprep.subr.mxu0 0.0
      %3088 = vmatpush1.msra.mxu0 0.0
      %3089 = vmatprep.subr.mxu0 0.0
      %3090 = vmatpush1.msra.mxu0 0.0
      %3091 = vmatprep.subr.mxu0 0.0
      %3092 = vmatpush1.msra.mxu0 0.0
      %3093 = vmatprep.subr.mxu0 0.0
      %3094 = vmatpush1.msra.mxu0 0.0
      %3095 = vmatprep.subr.mxu0 0.0
      %3096 = vmatpush1.msra.mxu0 0.0
      %3097 = vmatprep.subr.mxu0 0.0
      %3098 = vmatpush1.msra.mxu0 0.0
      %3099 = vmatprep.subr.mxu0 0.0
      %3100 = vmatpush1.msra.mxu0 0.0
      %3101 = vmatprep.subr.mxu0 0.0
      %3102 = vmatpush1.msra.mxu0 0.0
      %3103 = vmatprep.subr.mxu0 0.0
      %3104 = vmatpush1.msra.mxu0 0.0
      %3105 = vmatprep.subr.mxu0 0.0
      %3106 = vmatpush1.msra.mxu0 0.0
      %3107 = vmatprep.subr.mxu0 0.0
      %3108 = vmatpush1.msra.mxu0 0.0
      %3109 = vmatprep.subr.mxu0 0.0
      %3110 = vmatpush1.msra.mxu0 0.0
      %3111 = vmatprep.subr.mxu0 0.0
      %3112 = vmatpush1.msra.mxu0 0.0
      %3113 = vmatprep.subr.mxu0 0.0
      %3114 = vmatpush1.msra.mxu0 0.0
      %3115 = vmatprep.mubr.f32.mxu0 0.0
      %3116 = vmatmul.mubr.f32.gmra.mrb[0].mxu0 %v2951
      %v3117 = vpop.f32.mrb[0].mxu0
      %v3118 = vadd.f32 0.0, %v3117
      %v3119 = vpop.f32.mrb[0].mxu0
      %v3120 = vadd.f32 0.0, %v3119
      %3121 = vmatprep.mubr.f32.mxu0 0.0
      %3122 = vmatmul.mubr.f32.gmra.mrb[0].mxu0 %v2954
      %v3123 = vpop.f32.mrb[0].mxu0
      %v3124 = vadd.f32 0.0, %v3123
      %v3125 = vpop.f32.mrb[0].mxu0
      %v3126 = vadd.f32 0.0, %v3125
      %3127 = vmatprep.mubr.f32.mxu0 0.0
      %3128 = vmatmul.mubr.f32.gmra.mrb[0].mxu0 %v2957
      %v3129 = vpop.f32.mrb[0].mxu0
      %v3130 = vadd.f32 0.0, %v3129
      %v3131 = vpop.f32.mrb[0].mxu0
      %v3132 = vadd.f32 0.0, %v3131
      %3133 = vmatprep.mubr.f32.mxu0 0.0
      %3134 = vmatmul.mubr.f32.gmra.mrb[0].mxu0 %v2960
      %v3135 = vpop.f32.mrb[0].mxu0
      %v3136 = vadd.f32 0.0, %v3135
      %v3137 = vpop.f32.mrb[0].mxu0
      %v3138 = vadd.f32 0.0, %v3137
      %3139 = vdwg.mxu0
      %3140 = vmatprep.subr.mxu0 %v2907
      %3141 = vmatpush1.msra.mxu0 %v2906
      %3142 = vmatprep.subr.mxu0 %v2923
      %3143 = vmatpush1.msra.mxu0 %v2922
      %3144 = vmatprep.subr.mxu0 %v669
      %3145 = vmatpush1.msra.mxu0 %v669
      %3146 = vmatprep.subr.mxu0 0.0
      %3147 = vmatpush1.msra.mxu0 0.0
      %3148 = vmatprep.subr.mxu0 0.0
      %3149 = vmatpush1.msra.mxu0 0.0
      %3150 = vmatprep.subr.mxu0 0.0
      %3151 = vmatpush1.msra.mxu0 0.0
      %3152 = vmatprep.subr.mxu0 0.0
      %3153 = vmatpush1.msra.mxu0 0.0
      %3154 = vmatprep.subr.mxu0 0.0
      %3155 = vmatpush1.msra.mxu0 0.0
      %3156 = vmatprep.subr.mxu0 0.0
      %3157 = vmatpush1.msra.mxu0 0.0
      %3158 = vmatprep.subr.mxu0 0.0
      %3159 = vmatpush1.msra.mxu0 0.0
      %3160 = vmatprep.subr.mxu0 0.0
      %3161 = vmatpush1.msra.mxu0 0.0
      %3162 = vmatprep.subr.mxu0 0.0
      %3163 = vmatpush1.msra.mxu0 0.0
      %3164 = vmatprep.subr.mxu0 0.0
      %3165 = vmatpush1.msra.mxu0 0.0
      %3166 = vmatprep.subr.mxu0 0.0
      %3167 = vmatpush1.msra.mxu0 0.0
      %3168 = vmatprep.subr.mxu0 0.0
      %3169 = vmatpush1.msra.mxu0 0.0
      %3170 = vmatprep.subr.mxu0 0.0
      %3171 = vmatpush1.msra.mxu0 0.0
      %3172 = vmatprep.subr.mxu0 0.0
      %3173 = vmatpush1.msra.mxu0 0.0
      %3174 = vmatprep.subr.mxu0 0.0
      %3175 = vmatpush1.msra.mxu0 0.0
      %3176 = vmatprep.subr.mxu0 0.0
      %3177 = vmatpush1.msra.mxu0 0.0
      %3178 = vmatprep.subr.mxu0 0.0
      %3179 = vmatpush1.msra.mxu0 0.0
      %3180 = vmatprep.subr.mxu0 0.0
      %3181 = vmatpush1.msra.mxu0 0.0
      %3182 = vmatprep.subr.mxu0 0.0
      %3183 = vmatpush1.msra.mxu0 0.0
      %3184 = vmatprep.subr.mxu0 0.0
      %3185 = vmatpush1.msra.mxu0 0.0
      %3186 = vmatprep.subr.mxu0 0.0
      %3187 = vmatpush1.msra.mxu0 0.0
      %3188 = vmatprep.subr.mxu0 0.0
      %3189 = vmatpush1.msra.mxu0 0.0
      %3190 = vmatprep.subr.mxu0 0.0
      %3191 = vmatpush1.msra.mxu0 0.0
      %3192 = vmatprep.subr.mxu0 0.0
      %3193 = vmatpush1.msra.mxu0 0.0
      %3194 = vmatprep.subr.mxu0 0.0
      %3195 = vmatpush1.msra.mxu0 0.0
      %3196 = vmatprep.subr.mxu0 0.0
      %3197 = vmatpush1.msra.mxu0 0.0
      %3198 = vmatprep.subr.mxu0 0.0
      %3199 = vmatpush1.msra.mxu0 0.0
      %3200 = vmatprep.subr.mxu0 0.0
      %3201 = vmatpush1.msra.mxu0 0.0
      %3202 = vmatprep.subr.mxu0 0.0
      %3203 = vmatpush1.msra.mxu0 0.0
      %3204 = vmatprep.mubr.f32.mxu0 0.0
      %3205 = vmatmul.mubr.f32.gmra.mrb[0].mxu0 %v2951
      %v3206 = vpop.f32.mrb[0].mxu0
      %v3207 = vadd.f32 0.0, %v3206
      %v3208 = vpop.f32.mrb[0].mxu0
      %v3209 = vadd.f32 0.0, %v3208
      %3210 = vmatprep.mubr.f32.mxu0 0.0
      %3211 = vmatmul.mubr.f32.gmra.mrb[0].mxu0 %v2954
      %v3212 = vpop.f32.mrb[0].mxu0
      %v3213 = vadd.f32 0.0, %v3212
      %v3214 = vpop.f32.mrb[0].mxu0
      %v3215 = vadd.f32 0.0, %v3214
      %3216 = vmatprep.mubr.f32.mxu0 0.0
      %3217 = vmatmul.mubr.f32.gmra.mrb[0].mxu0 %v2957
      %v3218 = vpop.f32.mrb[0].mxu0
      %v3219 = vadd.f32 0.0, %v3218
      %v3220 = vpop.f32.mrb[0].mxu0
      %v3221 = vadd.f32 0.0, %v3220
      %3222 = vmatprep.mubr.f32.mxu0 0.0
      %3223 = vmatmul.mubr.f32.gmra.mrb[0].mxu0 %v2960
      %v3224 = vpop.f32.mrb[0].mxu0
      %v3225 = vadd.f32 0.0, %v3224
      %v3226 = vpop.f32.mrb[0].mxu0
      %v3227 = vadd.f32 0.0, %v3226
      %3228 = vdwg.mxu0
      %3229 = vmatprep.subr.mxu0 %v2909
      %3230 = vmatpush1.msra.mxu0 %v2908
      %3231 = vmatprep.subr.mxu0 %v2925
      %3232 = vmatpush1.msra.mxu0 %v2924
      %3233 = vmatprep.subr.mxu0 %v669
      %3234 = vmatpush1.msra.mxu0 %v669
      %3235 = vmatprep.subr.mxu0 0.0
      %3236 = vmatpush1.msra.mxu0 0.0
      %3237 = vmatprep.subr.mxu0 0.0
      %3238 = vmatpush1.msra.mxu0 0.0
      %3239 = vmatprep.subr.mxu0 0.0
      %3240 = vmatpush1.msra.mxu0 0.0
      %3241 = vmatprep.subr.mxu0 0.0
      %3242 = vmatpush1.msra.mxu0 0.0
      %3243 = vmatprep.subr.mxu0 0.0
      %3244 = vmatpush1.msra.mxu0 0.0
      %3245 = vmatprep.subr.mxu0 0.0
      %3246 = vmatpush1.msra.mxu0 0.0
      %3247 = vmatprep.subr.mxu0 0.0
      %3248 = vmatpush1.msra.mxu0 0.0
      %3249 = vmatprep.subr.mxu0 0.0
      %3250 = vmatpush1.msra.mxu0 0.0
      %3251 = vmatprep.subr.mxu0 0.0
      %3252 = vmatpush1.msra.mxu0 0.0
      %3253 = vmatprep.subr.mxu0 0.0
      %3254 = vmatpush1.msra.mxu0 0.0
      %3255 = vmatprep.subr.mxu0 0.0
      %3256 = vmatpush1.msra.mxu0 0.0
      %3257 = vmatprep.subr.mxu0 0.0
      %3258 = vmatpush1.msra.mxu0 0.0
      %3259 = vmatprep.subr.mxu0 0.0
      %3260 = vmatpush1.msra.mxu0 0.0
      %3261 = vmatprep.subr.mxu0 0.0
      %3262 = vmatpush1.msra.mxu0 0.0
      %3263 = vmatprep.subr.mxu0 0.0
      %3264 = vmatpush1.msra.mxu0 0.0
      %3265 = vmatprep.subr.mxu0 0.0
      %3266 = vmatpush1.msra.mxu0 0.0
      %3267 = vmatprep.subr.mxu0 0.0
      %3268 = vmatpush1.msra.mxu0 0.0
      %3269 = vmatprep.subr.mxu0 0.0
      %3270 = vmatpush1.msra.mxu0 0.0
      %3271 = vmatprep.subr.mxu0 0.0
      %3272 = vmatpush1.msra.mxu0 0.0
      %3273 = vmatprep.subr.mxu0 0.0
      %3274 = vmatpush1.msra.mxu0 0.0
      %3275 = vmatprep.subr.mxu0 0.0
      %3276 = vmatpush1.msra.mxu0 0.0
      %3277 = vmatprep.subr.mxu0 0.0
      %3278 = vmatpush1.msra.mxu0 0.0
      %3279 = vmatprep.subr.mxu0 0.0
      %3280 = vmatpush1.msra.mxu0 0.0
      %3281 = vmatprep.subr.mxu0 0.0
      %3282 = vmatpush1.msra.mxu0 0.0
      %3283 = vmatprep.subr.mxu0 0.0
      %3284 = vmatpush1.msra.mxu0 0.0
      %3285 = vmatprep.subr.mxu0 0.0
      %3286 = vmatpush1.msra.mxu0 0.0
      %3287 = vmatprep.subr.mxu0 0.0
      %3288 = vmatpush1.msra.mxu0 0.0
      %3289 = vmatprep.subr.mxu0 0.0
      %3290 = vmatpush1.msra.mxu0 0.0
      %3291 = vmatprep.subr.mxu0 0.0
      %3292 = vmatpush1.msra.mxu0 0.0
      %3293 = vmatprep.mubr.f32.mxu0 0.0
      %3294 = vmatmul.mubr.f32.gmra.mrb[0].mxu0 %v2951
      %v3295 = vpop.f32.mrb[0].mxu0
      %v3296 = vadd.f32 0.0, %v3295
      %v3297 = vpop.f32.mrb[0].mxu0
      %v3298 = vadd.f32 0.0, %v3297
      %3299 = vmatprep.mubr.f32.mxu0 0.0
      %3300 = vmatmul.mubr.f32.gmra.mrb[0].mxu0 %v2954
      %v3301 = vpop.f32.mrb[0].mxu0
      %v3302 = vadd.f32 0.0, %v3301
      %v3303 = vpop.f32.mrb[0].mxu0
      %v3304 = vadd.f32 0.0, %v3303
      %3305 = vmatprep.mubr.f32.mxu0 0.0
      %3306 = vmatmul.mubr.f32.gmra.mrb[0].mxu0 %v2957
      %v3307 = vpop.f32.mrb[0].mxu0
      %v3308 = vadd.f32 0.0, %v3307
      %v3309 = vpop.f32.mrb[0].mxu0
      %v3310 = vadd.f32 0.0, %v3309
      %3311 = vmatprep.mubr.f32.mxu0 0.0
      %3312 = vmatmul.mubr.f32.gmra.mrb[0].mxu0 %v2960
      %v3313 = vpop.f32.mrb[0].mxu0
      %v3314 = vadd.f32 0.0, %v3313
      %v3315 = vpop.f32.mrb[0].mxu0
      %v3316 = vadd.f32 0.0, %v3315
      %3317 = vdwg.mxu0
      %3318 = vmatprep.subr.mxu0 %v2911
      %3319 = vmatpush1.msra.mxu0 %v2910
      %3320 = vmatprep.subr.mxu0 %v2927
      %3321 = vmatpush1.msra.mxu0 %v2926
      %3322 = vmatprep.subr.mxu0 %v669
      %3323 = vmatpush1.msra.mxu0 %v669
      %3324 = vmatprep.subr.mxu0 0.0
      %3325 = vmatpush1.msra.mxu0 0.0
      %3326 = vmatprep.subr.mxu0 0.0
      %3327 = vmatpush1.msra.mxu0 0.0
      %3328 = vmatprep.subr.mxu0 0.0
      %3329 = vmatpush1.msra.mxu0 0.0
      %3330 = vmatprep.subr.mxu0 0.0
      %3331 = vmatpush1.msra.mxu0 0.0
      %3332 = vmatprep.subr.mxu0 0.0
      %3333 = vmatpush1.msra.mxu0 0.0
      %3334 = vmatprep.subr.mxu0 0.0
      %3335 = vmatpush1.msra.mxu0 0.0
      %3336 = vmatprep.subr.mxu0 0.0
      %3337 = vmatpush1.msra.mxu0 0.0
      %3338 = vmatprep.subr.mxu0 0.0
      %3339 = vmatpush1.msra.mxu0 0.0
      %3340 = vmatprep.subr.mxu0 0.0
      %3341 = vmatpush1.msra.mxu0 0.0
      %3342 = vmatprep.subr.mxu0 0.0
      %3343 = vmatpush1.msra.mxu0 0.0
      %3344 = vmatprep.subr.mxu0 0.0
      %3345 = vmatpush1.msra.mxu0 0.0
      %3346 = vmatprep.subr.mxu0 0.0
      %3347 = vmatpush1.msra.mxu0 0.0
      %3348 = vmatprep.subr.mxu0 0.0
      %3349 = vmatpush1.msra.mxu0 0.0
      %3350 = vmatprep.subr.mxu0 0.0
      %3351 = vmatpush1.msra.mxu0 0.0
      %3352 = vmatprep.subr.mxu0 0.0
      %3353 = vmatpush1.msra.mxu0 0.0
      %3354 = vmatprep.subr.mxu0 0.0
      %3355 = vmatpush1.msra.mxu0 0.0
      %3356 = vmatprep.subr.mxu0 0.0
      %3357 = vmatpush1.msra.mxu0 0.0
      %3358 = vmatprep.subr.mxu0 0.0
      %3359 = vmatpush1.msra.mxu0 0.0
      %3360 = vmatprep.subr.mxu0 0.0
      %3361 = vmatpush1.msra.mxu0 0.0
      %3362 = vmatprep.subr.mxu0 0.0
      %3363 = vmatpush1.msra.mxu0 0.0
      %3364 = vmatprep.subr.mxu0 0.0
      %3365 = vmatpush1.msra.mxu0 0.0
      %3366 = vmatprep.subr.mxu0 0.0
      %3367 = vmatpush1.msra.mxu0 0.0
      %3368 = vmatprep.subr.mxu0 0.0
      %3369 = vmatpush1.msra.mxu0 0.0
      %3370 = vmatprep.subr.mxu0 0.0
      %3371 = vmatpush1.msra.mxu0 0.0
      %3372 = vmatprep.subr.mxu0 0.0
      %3373 = vmatpush1.msra.mxu0 0.0
      %3374 = vmatprep.subr.mxu0 0.0
      %3375 = vmatpush1.msra.mxu0 0.0
      %3376 = vmatprep.subr.mxu0 0.0
      %3377 = vmatpush1.msra.mxu0 0.0
      %3378 = vmatprep.subr.mxu0 0.0
      %3379 = vmatpush1.msra.mxu0 0.0
      %3380 = vmatprep.subr.mxu0 0.0
      %3381 = vmatpush1.msra.mxu0 0.0
      %3382 = vmatprep.mubr.f32.mxu0 0.0
      %3383 = vmatmul.mubr.f32.gmra.mrb[0].mxu0 %v2951
      %v3384 = vpop.f32.mrb[0].mxu0
      %v3385 = vadd.f32 0.0, %v3384
      %v3386 = vpop.f32.mrb[0].mxu0
      %v3387 = vadd.f32 0.0, %v3386
      %3388 = vmatprep.mubr.f32.mxu0 0.0
      %3389 = vmatmul.mubr.f32.gmra.mrb[0].mxu0 %v2954
      %v3390 = vpop.f32.mrb[0].mxu0
      %v3391 = vadd.f32 0.0, %v3390
      %v3392 = vpop.f32.mrb[0].mxu0
      %v3393 = vadd.f32 0.0, %v3392
      %3394 = vmatprep.mubr.f32.mxu0 0.0
      %3395 = vmatmul.mubr.f32.gmra.mrb[0].mxu0 %v2957
      %v3396 = vpop.f32.mrb[0].mxu0
      %v3397 = vadd.f32 0.0, %v3396
      %v3398 = vpop.f32.mrb[0].mxu0
      %v3399 = vadd.f32 0.0, %v3398
      %3400 = vmatprep.mubr.f32.mxu0 0.0
      %3401 = vmatmul.mubr.f32.gmra.mrb[0].mxu0 %v2960
      %v3402 = vpop.f32.mrb[0].mxu0
      %v3403 = vadd.f32 0.0, %v3402
      %v3404 = vpop.f32.mrb[0].mxu0
      %v3405 = vadd.f32 0.0, %v3404
      %3406 = vdwg.mxu0
      %3407 = vmatprep.subr.mxu0 %v2913
      %3408 = vmatpush1.msra.mxu0 %v2912
      %3409 = vmatprep.subr.mxu0 %v2935
      %3410 = vmatpush1.msra.mxu0 %v2934
      %3411 = vmatprep.subr.mxu0 %v669
      %3412 = vmatpush1.msra.mxu0 %v669
      %3413 = vmatprep.subr.mxu0 0.0
      %3414 = vmatpush1.msra.mxu0 0.0
      %3415 = vmatprep.subr.mxu0 0.0
      %3416 = vmatpush1.msra.mxu0 0.0
      %3417 = vmatprep.subr.mxu0 0.0
      %3418 = vmatpush1.msra.mxu0 0.0
      %3419 = vmatprep.subr.mxu0 0.0
      %3420 = vmatpush1.msra.mxu0 0.0
      %3421 = vmatprep.subr.mxu0 0.0
      %3422 = vmatpush1.msra.mxu0 0.0
      %3423 = vmatprep.subr.mxu0 0.0
      %3424 = vmatpush1.msra.mxu0 0.0
      %3425 = vmatprep.subr.mxu0 0.0
      %3426 = vmatpush1.msra.mxu0 0.0
      %3427 = vmatprep.subr.mxu0 0.0
      %3428 = vmatpush1.msra.mxu0 0.0
      %3429 = vmatprep.subr.mxu0 0.0
      %3430 = vmatpush1.msra.mxu0 0.0
      %3431 = vmatprep.subr.mxu0 0.0
      %3432 = vmatpush1.msra.mxu0 0.0
      %3433 = vmatprep.subr.mxu0 0.0
      %3434 = vmatpush1.msra.mxu0 0.0
      %3435 = vmatprep.subr.mxu0 0.0
      %3436 = vmatpush1.msra.mxu0 0.0
      %3437 = vmatprep.subr.mxu0 0.0
      %3438 = vmatpush1.msra.mxu0 0.0
      %3439 = vmatprep.subr.mxu0 0.0
      %3440 = vmatpush1.msra.mxu0 0.0
      %3441 = vmatprep.subr.mxu0 0.0
      %3442 = vmatpush1.msra.mxu0 0.0
      %3443 = vmatprep.subr.mxu0 0.0
      %3444 = vmatpush1.msra.mxu0 0.0
      %3445 = vmatprep.subr.mxu0 0.0
      %3446 = vmatpush1.msra.mxu0 0.0
      %3447 = vmatprep.subr.mxu0 0.0
      %3448 = vmatpush1.msra.mxu0 0.0
      %3449 = vmatprep.subr.mxu0 0.0
      %3450 = vmatpush1.msra.mxu0 0.0
      %3451 = vmatprep.subr.mxu0 0.0
      %3452 = vmatpush1.msra.mxu0 0.0
      %3453 = vmatprep.subr.mxu0 0.0
      %3454 = vmatpush1.msra.mxu0 0.0
      %3455 = vmatprep.subr.mxu0 0.0
      %3456 = vmatpush1.msra.mxu0 0.0
      %3457 = vmatprep.subr.mxu0 0.0
      %3458 = vmatpush1.msra.mxu0 0.0
      %3459 = vmatprep.subr.mxu0 0.0
      %3460 = vmatpush1.msra.mxu0 0.0
      %3461 = vmatprep.subr.mxu0 0.0
      %3462 = vmatpush1.msra.mxu0 0.0
      %3463 = vmatprep.subr.mxu0 0.0
      %3464 = vmatpush1.msra.mxu0 0.0
      %3465 = vmatprep.subr.mxu0 0.0
      %3466 = vmatpush1.msra.mxu0 0.0
      %3467 = vmatprep.subr.mxu0 0.0
      %3468 = vmatpush1.msra.mxu0 0.0
      %3469 = vmatprep.subr.mxu0 0.0
      %3470 = vmatpush1.msra.mxu0 0.0
      %3471 = vmatprep.mubr.f32.mxu0 0.0
      %3472 = vmatmul.mubr.f32.gmra.mrb[0].mxu0 %v2951
      %v3473 = vpop.f32.mrb[0].mxu0
      %v3474 = vadd.f32 0.0, %v3473
      %v3475 = vpop.f32.mrb[0].mxu0
      %v3476 = vadd.f32 0.0, %v3475
      %3477 = vmatprep.mubr.f32.mxu0 0.0
      %3478 = vmatmul.mubr.f32.gmra.mrb[0].mxu0 %v2954
      %v3479 = vpop.f32.mrb[0].mxu0
      %v3480 = vadd.f32 0.0, %v3479
      %v3481 = vpop.f32.mrb[0].mxu0
      %v3482 = vadd.f32 0.0, %v3481
      %3483 = vmatprep.mubr.f32.mxu0 0.0
      %3484 = vmatmul.mubr.f32.gmra.mrb[0].mxu0 %v2957
      %v3485 = vpop.f32.mrb[0].mxu0
      %v3486 = vadd.f32 0.0, %v3485
      %v3487 = vpop.f32.mrb[0].mxu0
      %v3488 = vadd.f32 0.0, %v3487
      %3489 = vmatprep.mubr.f32.mxu0 0.0
      %3490 = vmatmul.mubr.f32.gmra.mrb[0].mxu0 %v2960
      %v3491 = vpop.f32.mrb[0].mxu0
      %v3492 = vadd.f32 0.0, %v3491
      %v3493 = vpop.f32.mrb[0].mxu0
      %v3494 = vadd.f32 0.0, %v3493
      %3495 = vdwg.mxu0
      %3496 = vmatprep.subr.mxu0 %v2915
      %3497 = vmatpush1.msra.mxu0 %v2914
      %3498 = vmatprep.subr.mxu0 %v2931
      %3499 = vmatpush1.msra.mxu0 %v2930
      %3500 = vmatprep.subr.mxu0 %v669
      %3501 = vmatpush1.msra.mxu0 %v669
      %3502 = vmatprep.subr.mxu0 0.0
      %3503 = vmatpush1.msra.mxu0 0.0
      %3504 = vmatprep.subr.mxu0 0.0
      %3505 = vmatpush1.msra.mxu0 0.0
      %3506 = vmatprep.subr.mxu0 0.0
      %3507 = vmatpush1.msra.mxu0 0.0
      %3508 = vmatprep.subr.mxu0 0.0
      %3509 = vmatpush1.msra.mxu0 0.0
      %3510 = vmatprep.subr.mxu0 0.0
      %3511 = vmatpush1.msra.mxu0 0.0
      %3512 = vmatprep.subr.mxu0 0.0
      %3513 = vmatpush1.msra.mxu0 0.0
      %3514 = vmatprep.subr.mxu0 0.0
      %3515 = vmatpush1.msra.mxu0 0.0
      %3516 = vmatprep.subr.mxu0 0.0
      %3517 = vmatpush1.msra.mxu0 0.0
      %3518 = vmatprep.subr.mxu0 0.0
      %3519 = vmatpush1.msra.mxu0 0.0
      %3520 = vmatprep.subr.mxu0 0.0
      %3521 = vmatpush1.msra.mxu0 0.0
      %3522 = vmatprep.subr.mxu0 0.0
      %3523 = vmatpush1.msra.mxu0 0.0
      %3524 = vmatprep.subr.mxu0 0.0
      %3525 = vmatpush1.msra.mxu0 0.0
      %3526 = vmatprep.subr.mxu0 0.0
      %3527 = vmatpush1.msra.mxu0 0.0
      %3528 = vmatprep.subr.mxu0 0.0
      %3529 = vmatpush1.msra.mxu0 0.0
      %3530 = vmatprep.subr.mxu0 0.0
      %3531 = vmatpush1.msra.mxu0 0.0
      %3532 = vmatprep.subr.mxu0 0.0
      %3533 = vmatpush1.msra.mxu0 0.0
      %3534 = vmatprep.subr.mxu0 0.0
      %3535 = vmatpush1.msra.mxu0 0.0
      %3536 = vmatprep.subr.mxu0 0.0
      %3537 = vmatpush1.msra.mxu0 0.0
      %3538 = vmatprep.subr.mxu0 0.0
      %3539 = vmatpush1.msra.mxu0 0.0
      %3540 = vmatprep.subr.mxu0 0.0
      %3541 = vmatpush1.msra.mxu0 0.0
      %3542 = vmatprep.subr.mxu0 0.0
      %3543 = vmatpush1.msra.mxu0 0.0
      %3544 = vmatprep.subr.mxu0 0.0
      %3545 = vmatpush1.msra.mxu0 0.0
      %3546 = vmatprep.subr.mxu0 0.0
      %3547 = vmatpush1.msra.mxu0 0.0
      %3548 = vmatprep.subr.mxu0 0.0
      %3549 = vmatpush1.msra.mxu0 0.0
      %3550 = vmatprep.subr.mxu0 0.0
      %3551 = vmatpush1.msra.mxu0 0.0
      %3552 = vmatprep.subr.mxu0 0.0
      %3553 = vmatpush1.msra.mxu0 0.0
      %3554 = vmatprep.subr.mxu0 0.0
      %3555 = vmatpush1.msra.mxu0 0.0
      %3556 = vmatprep.subr.mxu0 0.0
      %3557 = vmatpush1.msra.mxu0 0.0
      %3558 = vmatprep.subr.mxu0 0.0
      %3559 = vmatpush1.msra.mxu0 0.0
      %3560 = vmatprep.mubr.f32.mxu0 0.0
      %3561 = vmatmul.mubr.f32.gmra.mrb[0].mxu0 %v2951
      %v3562 = vpop.f32.mrb[0].mxu0
      %v3563 = vadd.f32 0.0, %v3562
      %v3564 = vpop.f32.mrb[0].mxu0
      %v3565 = vadd.f32 0.0, %v3564
      %3566 = vmatprep.mubr.f32.mxu0 0.0
      %3567 = vmatmul.mubr.f32.gmra.mrb[0].mxu0 %v2954
      %v3568 = vpop.f32.mrb[0].mxu0
      %v3569 = vadd.f32 0.0, %v3568
      %v3570 = vpop.f32.mrb[0].mxu0
      %v3571 = vadd.f32 0.0, %v3570
      %3572 = vmatprep.mubr.f32.mxu0 0.0
      %3573 = vmatmul.mubr.f32.gmra.mrb[0].mxu0 %v2957
      %v3574 = vpop.f32.mrb[0].mxu0
      %v3575 = vadd.f32 0.0, %v3574
      %v3576 = vpop.f32.mrb[0].mxu0
      %v3577 = vadd.f32 0.0, %v3576
      %3578 = vmatprep.mubr.f32.mxu0 0.0
      %3579 = vmatmul.mubr.f32.gmra.mrb[0].mxu0 %v2960
      %v3580 = vpop.f32.mrb[0].mxu0
      %v3581 = vadd.f32 0.0, %v3580
      %v3582 = vpop.f32.mrb[0].mxu0
      %v3583 = vadd.f32 0.0, %v3582
      %3584 = vdwg.mxu0
      %3585 = vmatprep.subr.mxu0 %v2917
      %3586 = vmatpush1.msra.mxu0 %v2916
      %3587 = vmatprep.subr.mxu0 %v2937
      %3588 = vmatpush1.msra.mxu0 %v2936
      %3589 = vmatprep.subr.mxu0 %v669
      %3590 = vmatpush1.msra.mxu0 %v669
      %3591 = vmatprep.subr.mxu0 0.0
      %3592 = vmatpush1.msra.mxu0 0.0
      %3593 = vmatprep.subr.mxu0 0.0
      %3594 = vmatpush1.msra.mxu0 0.0
      %3595 = vmatprep.subr.mxu0 0.0
      %3596 = vmatpush1.msra.mxu0 0.0
      %3597 = vmatprep.subr.mxu0 0.0
      %3598 = vmatpush1.msra.mxu0 0.0
      %3599 = vmatprep.subr.mxu0 0.0
      %3600 = vmatpush1.msra.mxu0 0.0
      %3601 = vmatprep.subr.mxu0 0.0
      %3602 = vmatpush1.msra.mxu0 0.0
      %3603 = vmatprep.subr.mxu0 0.0
      %3604 = vmatpush1.msra.mxu0 0.0
      %3605 = vmatprep.subr.mxu0 0.0
      %3606 = vmatpush1.msra.mxu0 0.0
      %3607 = vmatprep.subr.mxu0 0.0
      %3608 = vmatpush1.msra.mxu0 0.0
      %3609 = vmatprep.subr.mxu0 0.0
      %3610 = vmatpush1.msra.mxu0 0.0
      %3611 = vmatprep.subr.mxu0 0.0
      %3612 = vmatpush1.msra.mxu0 0.0
      %3613 = vmatprep.subr.mxu0 0.0
      %3614 = vmatpush1.msra.mxu0 0.0
      %3615 = vmatprep.subr.mxu0 0.0
      %3616 = vmatpush1.msra.mxu0 0.0
      %3617 = vmatprep.subr.mxu0 0.0
      %3618 = vmatpush1.msra.mxu0 0.0
      %3619 = vmatprep.subr.mxu0 0.0
      %3620 = vmatpush1.msra.mxu0 0.0
      %3621 = vmatprep.subr.mxu0 0.0
      %3622 = vmatpush1.msra.mxu0 0.0
      %3623 = vmatprep.subr.mxu0 0.0
      %3624 = vmatpush1.msra.mxu0 0.0
      %3625 = vmatprep.subr.mxu0 0.0
      %3626 = vmatpush1.msra.mxu0 0.0
      %3627 = vmatprep.subr.mxu0 0.0
      %3628 = vmatpush1.msra.mxu0 0.0
      %3629 = vmatprep.subr.mxu0 0.0
      %3630 = vmatpush1.msra.mxu0 0.0
      %3631 = vmatprep.subr.mxu0 0.0
      %3632 = vmatpush1.msra.mxu0 0.0
      %3633 = vmatprep.subr.mxu0 0.0
      %3634 = vmatpush1.msra.mxu0 0.0
      %3635 = vmatprep.subr.mxu0 0.0
      %3636 = vmatpush1.msra.mxu0 0.0
      %3637 = vmatprep.subr.mxu0 0.0
      %3638 = vmatpush1.msra.mxu0 0.0
      %3639 = vmatprep.subr.mxu0 0.0
      %3640 = vmatpush1.msra.mxu0 0.0
      %3641 = vmatprep.subr.mxu0 0.0
      %3642 = vmatpush1.msra.mxu0 0.0
      %3643 = vmatprep.subr.mxu0 0.0
      %3644 = vmatpush1.msra.mxu0 0.0
      %3645 = vmatprep.subr.mxu0 0.0
      %3646 = vmatpush1.msra.mxu0 0.0
      %3647 = vmatprep.subr.mxu0 0.0
      %3648 = vmatpush1.msra.mxu0 0.0
      %3649 = vmatprep.mubr.f32.mxu0 0.0
      %3650 = vmatmul.mubr.f32.gmra.mrb[0].mxu0 %v2951
      %v3651 = vpop.f32.mrb[0].mxu0
      %v3652 = vadd.f32 0.0, %v3651
      %v3653 = vpop.f32.mrb[0].mxu0
      %v3654 = vadd.f32 0.0, %v3653
      %3655 = vmatprep.mubr.f32.mxu0 0.0
      %3656 = vmatmul.mubr.f32.gmra.mrb[0].mxu0 %v2954
      %v3657 = vpop.f32.mrb[0].mxu0
      %v3658 = vadd.f32 0.0, %v3657
      %v3659 = vpop.f32.mrb[0].mxu0
      %v3660 = vadd.f32 0.0, %v3659
      %3661 = vmatprep.mubr.f32.mxu0 0.0
      %3662 = vmatmul.mubr.f32.gmra.mrb[0].mxu0 %v2957
      %v3663 = vpop.f32.mrb[0].mxu0
      %v3664 = vadd.f32 0.0, %v3663
      %v3665 = vpop.f32.mrb[0].mxu0
      %v3666 = vadd.f32 0.0, %v3665
      %3667 = vmatprep.mubr.f32.mxu0 0.0
      %3668 = vmatmul.mubr.f32.gmra.mrb[0].mxu0 %v2960
      %v3669 = vpop.f32.mrb[0].mxu0
      %v3670 = vadd.f32 0.0, %v3669
      %v3671 = vpop.f32.mrb[0].mxu0
      %v3672 = vadd.f32 0.0, %v3671
      %3673 = vdwg.mxu0
      %3674 = vmatprep.subr.mxu0 %v2919
      %3675 = vmatpush1.msra.mxu0 %v2918
      %3676 = vmatprep.subr.mxu0 %v2907
      %3677 = vmatpush1.msra.mxu0 %v2906
      %3678 = vmatprep.subr.mxu0 %v669
      %3679 = vmatpush1.msra.mxu0 %v669
      %3680 = vmatprep.subr.mxu0 0.0
      %3681 = vmatpush1.msra.mxu0 0.0
      %3682 = vmatprep.subr.mxu0 0.0
      %3683 = vmatpush1.msra.mxu0 0.0
      %3684 = vmatprep.subr.mxu0 0.0
      %3685 = vmatpush1.msra.mxu0 0.0
      %3686 = vmatprep.subr.mxu0 0.0
      %3687 = vmatpush1.msra.mxu0 0.0
      %3688 = vmatprep.subr.mxu0 0.0
      %3689 = vmatpush1.msra.mxu0 0.0
      %3690 = vmatprep.subr.mxu0 0.0
      %3691 = vmatpush1.msra.mxu0 0.0
      %3692 = vmatprep.subr.mxu0 0.0
      %3693 = vmatpush1.msra.mxu0 0.0
      %3694 = vmatprep.subr.mxu0 0.0
      %3695 = vmatpush1.msra.mxu0 0.0
      %3696 = vmatprep.subr.mxu0 0.0
      %3697 = vmatpush1.msra.mxu0 0.0
      %3698 = vmatprep.subr.mxu0 0.0
      %3699 = vmatpush1.msra.mxu0 0.0
      %3700 = vmatprep.subr.mxu0 0.0
      %3701 = vmatpush1.msra.mxu0 0.0
      %3702 = vmatprep.subr.mxu0 0.0
      %3703 = vmatpush1.msra.mxu0 0.0
      %3704 = vmatprep.subr.mxu0 0.0
      %3705 = vmatpush1.msra.mxu0 0.0
      %3706 = vmatprep.subr.mxu0 0.0
      %3707 = vmatpush1.msra.mxu0 0.0
      %3708 = vmatprep.subr.mxu0 0.0
      %3709 = vmatpush1.msra.mxu0 0.0
      %3710 = vmatprep.subr.mxu0 0.0
      %3711 = vmatpush1.msra.mxu0 0.0
      %3712 = vmatprep.subr.mxu0 0.0
      %3713 = vmatpush1.msra.mxu0 0.0
      %3714 = vmatprep.subr.mxu0 0.0
      %3715 = vmatpush1.msra.mxu0 0.0
      %3716 = vmatprep.subr.mxu0 0.0
      %3717 = vmatpush1.msra.mxu0 0.0
      %3718 = vmatprep.subr.mxu0 0.0
      %3719 = vmatpush1.msra.mxu0 0.0
      %3720 = vmatprep.subr.mxu0 0.0
      %3721 = vmatpush1.msra.mxu0 0.0
      %3722 = vmatprep.subr.mxu0 0.0
      %3723 = vmatpush1.msra.mxu0 0.0
      %3724 = vmatprep.subr.mxu0 0.0
      %3725 = vmatpush1.msra.mxu0 0.0
      %3726 = vmatprep.subr.mxu0 0.0
      %3727 = vmatpush1.msra.mxu0 0.0
      %3728 = vmatprep.subr.mxu0 0.0
      %3729 = vmatpush1.msra.mxu0 0.0
      %3730 = vmatprep.subr.mxu0 0.0
      %3731 = vmatpush1.msra.mxu0 0.0
      %3732 = vmatprep.subr.mxu0 0.0
      %3733 = vmatpush1.msra.mxu0 0.0
      %3734 = vmatprep.subr.mxu0 0.0
      %3735 = vmatpush1.msra.mxu0 0.0
      %3736 = vmatprep.subr.mxu0 0.0
      %3737 = vmatpush1.msra.mxu0 0.0
      %3738 = vmatprep.mubr.f32.mxu0 0.0
      %3739 = vmatmul.mubr.f32.gmra.mrb[0].mxu0 %v2951
      %v3740 = vpop.f32.mrb[0].mxu0
      %v3741 = vadd.f32 0.0, %v3740
      %v3742 = vpop.f32.mrb[0].mxu0
      %v3743 = vadd.f32 0.0, %v3742
      %3744 = vmatprep.mubr.f32.mxu0 0.0
      %3745 = vmatmul.mubr.f32.gmra.mrb[0].mxu0 %v2954
      %v3746 = vpop.f32.mrb[0].mxu0
      %v3747 = vadd.f32 0.0, %v3746
      %v3748 = vpop.f32.mrb[0].mxu0
      %v3749 = vadd.f32 0.0, %v3748
      %3750 = vmatprep.mubr.f32.mxu0 0.0
      %3751 = vmatmul.mubr.f32.gmra.mrb[0].mxu0 %v2957
      %v3752 = vpop.f32.mrb[0].mxu0
      %v3753 = vadd.f32 0.0, %v3752
      %v3754 = vpop.f32.mrb[0].mxu0
      %v3755 = vadd.f32 0.0, %v3754
      %3756 = vmatprep.mubr.f32.mxu0 0.0
      %3757 = vmatmul.mubr.f32.gmra.mrb[0].mxu0 %v2960
      %v3758 = vpop.f32.mrb[0].mxu0
      %v3759 = vadd.f32 0.0, %v3758
      %v3760 = vpop.f32.mrb[0].mxu0
      %v3761 = vadd.f32 0.0, %v3760
      %3762 = vdwg.mxu0
      %3763 = vmatprep.subr.mxu0 %v2921
      %3764 = vmatpush1.msra.mxu0 %v2920
      %3765 = vmatprep.subr.mxu0 %v2909
      %3766 = vmatpush1.msra.mxu0 %v2908
      %3767 = vmatprep.subr.mxu0 %v669
      %3768 = vmatpush1.msra.mxu0 %v669
      %3769 = vmatprep.subr.mxu0 0.0
      %3770 = vmatpush1.msra.mxu0 0.0
      %3771 = vmatprep.subr.mxu0 0.0
      %3772 = vmatpush1.msra.mxu0 0.0
      %3773 = vmatprep.subr.mxu0 0.0
      %3774 = vmatpush1.msra.mxu0 0.0
      %3775 = vmatprep.subr.mxu0 0.0
      %3776 = vmatpush1.msra.mxu0 0.0
      %3777 = vmatprep.subr.mxu0 0.0
      %3778 = vmatpush1.msra.mxu0 0.0
      %3779 = vmatprep.subr.mxu0 0.0
      %3780 = vmatpush1.msra.mxu0 0.0
      %3781 = vmatprep.subr.mxu0 0.0
      %3782 = vmatpush1.msra.mxu0 0.0
      %3783 = vmatprep.subr.mxu0 0.0
      %3784 = vmatpush1.msra.mxu0 0.0
      %3785 = vmatprep.subr.mxu0 0.0
      %3786 = vmatpush1.msra.mxu0 0.0
      %3787 = vmatprep.subr.mxu0 0.0
      %3788 = vmatpush1.msra.mxu0 0.0
      %3789 = vmatprep.subr.mxu0 0.0
      %3790 = vmatpush1.msra.mxu0 0.0
      %3791 = vmatprep.subr.mxu0 0.0
      %3792 = vmatpush1.msra.mxu0 0.0
      %3793 = vmatprep.subr.mxu0 0.0
      %3794 = vmatpush1.msra.mxu0 0.0
      %3795 = vmatprep.subr.mxu0 0.0
      %3796 = vmatpush1.msra.mxu0 0.0
      %3797 = vmatprep.subr.mxu0 0.0
      %3798 = vmatpush1.msra.mxu0 0.0
      %3799 = vmatprep.subr.mxu0 0.0
      %3800 = vmatpush1.msra.mxu0 0.0
      %3801 = vmatprep.subr.mxu0 0.0
      %3802 = vmatpush1.msra.mxu0 0.0
      %3803 = vmatprep.subr.mxu0 0.0
      %3804 = vmatpush1.msra.mxu0 0.0
      %3805 = vmatprep.subr.mxu0 0.0
      %3806 = vmatpush1.msra.mxu0 0.0
      %3807 = vmatprep.subr.mxu0 0.0
      %3808 = vmatpush1.msra.mxu0 0.0
      %3809 = vmatprep.subr.mxu0 0.0
      %3810 = vmatpush1.msra.mxu0 0.0
      %3811 = vmatprep.subr.mxu0 0.0
      %3812 = vmatpush1.msra.mxu0 0.0
      %3813 = vmatprep.subr.mxu0 0.0
      %3814 = vmatpush1.msra.mxu0 0.0
      %3815 = vmatprep.subr.mxu0 0.0
      %3816 = vmatpush1.msra.mxu0 0.0
      %3817 = vmatprep.subr.mxu0 0.0
      %3818 = vmatpush1.msra.mxu0 0.0
      %3819 = vmatprep.subr.mxu0 0.0
      %3820 = vmatpush1.msra.mxu0 0.0
      %3821 = vmatprep.subr.mxu0 0.0
      %3822 = vmatpush1.msra.mxu0 0.0
      %3823 = vmatprep.subr.mxu0 0.0
      %3824 = vmatpush1.msra.mxu0 0.0
      %3825 = vmatprep.subr.mxu0 0.0
      %3826 = vmatpush1.msra.mxu0 0.0
      %3827 = vmatprep.mubr.f32.mxu0 0.0
      %3828 = vmatmul.mubr.f32.gmra.mrb[0].mxu0 %v2951
      %v3829 = vpop.f32.mrb[0].mxu0
      %v3830 = vadd.f32 0.0, %v3829
      %v3831 = vpop.f32.mrb[0].mxu0
      %v3832 = vadd.f32 0.0, %v3831
      %3833 = vmatprep.mubr.f32.mxu0 0.0
      %3834 = vmatmul.mubr.f32.gmra.mrb[0].mxu0 %v2954
      %v3835 = vpop.f32.mrb[0].mxu0
      %v3836 = vadd.f32 0.0, %v3835
      %v3837 = vpop.f32.mrb[0].mxu0
      %v3838 = vadd.f32 0.0, %v3837
      %3839 = vmatprep.mubr.f32.mxu0 0.0
      %3840 = vmatmul.mubr.f32.gmra.mrb[0].mxu0 %v2957
      %v3841 = vpop.f32.mrb[0].mxu0
      %v3842 = vadd.f32 0.0, %v3841
      %v3843 = vpop.f32.mrb[0].mxu0
      %v3844 = vadd.f32 0.0, %v3843
      %3845 = vmatprep.mubr.f32.mxu0 0.0
      %3846 = vmatmul.mubr.f32.gmra.mrb[0].mxu0 %v2960
      %v3847 = vpop.f32.mrb[0].mxu0
      %v3848 = vadd.f32 0.0, %v3847
      %v3849 = vpop.f32.mrb[0].mxu0
      %v3850 = vadd.f32 0.0, %v3849
      %3851 = vdwg.mxu0
      %3852 = vmatprep.subr.mxu0 %v2923
      %3853 = vmatpush1.msra.mxu0 %v2922
      %3854 = vmatprep.subr.mxu0 %v2938
      %3855 = vmatpush1.msra.mxu0 %v2903
      %3856 = vmatprep.subr.mxu0 %v669
      %3857 = vmatpush1.msra.mxu0 %v669
      %3858 = vmatprep.subr.mxu0 0.0
      %3859 = vmatpush1.msra.mxu0 0.0
      %3860 = vmatprep.subr.mxu0 0.0
      %3861 = vmatpush1.msra.mxu0 0.0
      %3862 = vmatprep.subr.mxu0 0.0
      %3863 = vmatpush1.msra.mxu0 0.0
      %3864 = vmatprep.subr.mxu0 0.0
      %3865 = vmatpush1.msra.mxu0 0.0
      %3866 = vmatprep.subr.mxu0 0.0
      %3867 = vmatpush1.msra.mxu0 0.0
      %3868 = vmatprep.subr.mxu0 0.0
      %3869 = vmatpush1.msra.mxu0 0.0
      %3870 = vmatprep.subr.mxu0 0.0
      %3871 = vmatpush1.msra.mxu0 0.0
      %3872 = vmatprep.subr.mxu0 0.0
      %3873 = vmatpush1.msra.mxu0 0.0
      %3874 = vmatprep.subr.mxu0 0.0
      %3875 = vmatpush1.msra.mxu0 0.0
      %3876 = vmatprep.subr.mxu0 0.0
      %3877 = vmatpush1.msra.mxu0 0.0
      %3878 = vmatprep.subr.mxu0 0.0
      %3879 = vmatpush1.msra.mxu0 0.0
      %3880 = vmatprep.subr.mxu0 0.0
      %3881 = vmatpush1.msra.mxu0 0.0
      %3882 = vmatprep.subr.mxu0 0.0
      %3883 = vmatpush1.msra.mxu0 0.0
      %3884 = vmatprep.subr.mxu0 0.0
      %3885 = vmatpush1.msra.mxu0 0.0
      %3886 = vmatprep.subr.mxu0 0.0
      %3887 = vmatpush1.msra.mxu0 0.0
      %3888 = vmatprep.subr.mxu0 0.0
      %3889 = vmatpush1.msra.mxu0 0.0
      %3890 = vmatprep.subr.mxu0 0.0
      %3891 = vmatpush1.msra.mxu0 0.0
      %3892 = vmatprep.subr.mxu0 0.0
      %3893 = vmatpush1.msra.mxu0 0.0
      %3894 = vmatprep.subr.mxu0 0.0
      %3895 = vmatpush1.msra.mxu0 0.0
      %3896 = vmatprep.subr.mxu0 0.0
      %3897 = vmatpush1.msra.mxu0 0.0
      %3898 = vmatprep.subr.mxu0 0.0
      %3899 = vmatpush1.msra.mxu0 0.0
      %3900 = vmatprep.subr.mxu0 0.0
      %3901 = vmatpush1.msra.mxu0 0.0
      %3902 = vmatprep.subr.mxu0 0.0
      %3903 = vmatpush1.msra.mxu0 0.0
      %3904 = vmatprep.subr.mxu0 0.0
      %3905 = vmatpush1.msra.mxu0 0.0
      %3906 = vmatprep.subr.mxu0 0.0
      %3907 = vmatpush1.msra.mxu0 0.0
      %3908 = vmatprep.subr.mxu0 0.0
      %3909 = vmatpush1.msra.mxu0 0.0
      %3910 = vmatprep.subr.mxu0 0.0
      %3911 = vmatpush1.msra.mxu0 0.0
      %3912 = vmatprep.subr.mxu0 0.0
      %3913 = vmatpush1.msra.mxu0 0.0
      %3914 = vmatprep.subr.mxu0 0.0
      %3915 = vmatpush1.msra.mxu0 0.0
      %3916 = vmatprep.mubr.f32.mxu0 0.0
      %3917 = vmatmul.mubr.f32.gmra.mrb[0].mxu0 %v2951
      %v3918 = vpop.f32.mrb[0].mxu0
      %v3919 = vadd.f32 0.0, %v3918
      %v3920 = vpop.f32.mrb[0].mxu0
      %v3921 = vadd.f32 0.0, %v3920
      %3922 = vmatprep.mubr.f32.mxu0 0.0
      %3923 = vmatmul.mubr.f32.gmra.mrb[0].mxu0 %v2954
      %v3924 = vpop.f32.mrb[0].mxu0
      %v3925 = vadd.f32 0.0, %v3924
      %v3926 = vpop.f32.mrb[0].mxu0
      %v3927 = vadd.f32 0.0, %v3926
      %3928 = vmatprep.mubr.f32.mxu0 0.0
      %3929 = vmatmul.mubr.f32.gmra.mrb[0].mxu0 %v2957
      %v3930 = vpop.f32.mrb[0].mxu0
      %v3931 = vadd.f32 0.0, %v3930
      %v3932 = vpop.f32.mrb[0].mxu0
      %v3933 = vadd.f32 0.0, %v3932
      %3934 = vmatprep.mubr.f32.mxu0 0.0
      %3935 = vmatmul.mubr.f32.gmra.mrb[0].mxu0 %v2960
      %v3936 = vpop.f32.mrb[0].mxu0
      %v3937 = vadd.f32 0.0, %v3936
      %v3938 = vpop.f32.mrb[0].mxu0
      %v3939 = vadd.f32 0.0, %v3938
      %3940 = vdwg.mxu0
      %3941 = vmatprep.subr.mxu0 %v2925
      %3942 = vmatpush1.msra.mxu0 %v2924
      %3943 = vmatprep.subr.mxu0 %v2939
      %3944 = vmatpush1.msra.mxu0 %v2905
      %3945 = vmatprep.subr.mxu0 %v669
      %3946 = vmatpush1.msra.mxu0 %v669
      %3947 = vmatprep.subr.mxu0 0.0
      %3948 = vmatpush1.msra.mxu0 0.0
      %3949 = vmatprep.subr.mxu0 0.0
      %3950 = vmatpush1.msra.mxu0 0.0
      %3951 = vmatprep.subr.mxu0 0.0
      %3952 = vmatpush1.msra.mxu0 0.0
      %3953 = vmatprep.subr.mxu0 0.0
      %3954 = vmatpush1.msra.mxu0 0.0
      %3955 = vmatprep.subr.mxu0 0.0
      %3956 = vmatpush1.msra.mxu0 0.0
      %3957 = vmatprep.subr.mxu0 0.0
      %3958 = vmatpush1.msra.mxu0 0.0
      %3959 = vmatprep.subr.mxu0 0.0
      %3960 = vmatpush1.msra.mxu0 0.0
      %3961 = vmatprep.subr.mxu0 0.0
      %3962 = vmatpush1.msra.mxu0 0.0
      %3963 = vmatprep.subr.mxu0 0.0
      %3964 = vmatpush1.msra.mxu0 0.0
      %3965 = vmatprep.subr.mxu0 0.0
      %3966 = vmatpush1.msra.mxu0 0.0
      %3967 = vmatprep.subr.mxu0 0.0
      %3968 = vmatpush1.msra.mxu0 0.0
      %3969 = vmatprep.subr.mxu0 0.0
      %3970 = vmatpush1.msra.mxu0 0.0
      %3971 = vmatprep.subr.mxu0 0.0
      %3972 = vmatpush1.msra.mxu0 0.0
      %3973 = vmatprep.subr.mxu0 0.0
      %3974 = vmatpush1.msra.mxu0 0.0
      %3975 = vmatprep.subr.mxu0 0.0
      %3976 = vmatpush1.msra.mxu0 0.0
      %3977 = vmatprep.subr.mxu0 0.0
      %3978 = vmatpush1.msra.mxu0 0.0
      %3979 = vmatprep.subr.mxu0 0.0
      %3980 = vmatpush1.msra.mxu0 0.0
      %3981 = vmatprep.subr.mxu0 0.0
      %3982 = vmatpush1.msra.mxu0 0.0
      %3983 = vmatprep.subr.mxu0 0.0
      %3984 = vmatpush1.msra.mxu0 0.0
      %3985 = vmatprep.subr.mxu0 0.0
      %3986 = vmatpush1.msra.mxu0 0.0
      %3987 = vmatprep.subr.mxu0 0.0
      %3988 = vmatpush1.msra.mxu0 0.0
      %3989 = vmatprep.subr.mxu0 0.0
      %3990 = vmatpush1.msra.mxu0 0.0
      %3991 = vmatprep.subr.mxu0 0.0
      %3992 = vmatpush1.msra.mxu0 0.0
      %3993 = vmatprep.subr.mxu0 0.0
      %3994 = vmatpush1.msra.mxu0 0.0
      %3995 = vmatprep.subr.mxu0 0.0
      %3996 = vmatpush1.msra.mxu0 0.0
      %3997 = vmatprep.subr.mxu0 0.0
      %3998 = vmatpush1.msra.mxu0 0.0
      %3999 = vmatprep.subr.mxu0 0.0
      %4000 = vmatpush1.msra.mxu0 0.0
      %4001 = vmatprep.subr.mxu0 0.0
      %4002 = vmatpush1.msra.mxu0 0.0
      %4003 = vmatprep.subr.mxu0 0.0
      %4004 = vmatpush1.msra.mxu0 0.0
      %4005 = vmatprep.mubr.f32.mxu0 0.0
      %4006 = vmatmul.mubr.f32.gmra.mrb[0].mxu0 %v2951
      %v4007 = vpop.f32.mrb[0].mxu0
      %v4008 = vadd.f32 0.0, %v4007
      %v4009 = vpop.f32.mrb[0].mxu0
      %v4010 = vadd.f32 0.0, %v4009
      %4011 = vmatprep.mubr.f32.mxu0 0.0
      %4012 = vmatmul.mubr.f32.gmra.mrb[0].mxu0 %v2954
      %v4013 = vpop.f32.mrb[0].mxu0
      %v4014 = vadd.f32 0.0, %v4013
      %v4015 = vpop.f32.mrb[0].mxu0
      %v4016 = vadd.f32 0.0, %v4015
      %4017 = vmatprep.mubr.f32.mxu0 0.0
      %4018 = vmatmul.mubr.f32.gmra.mrb[0].mxu0 %v2957
      %v4019 = vpop.f32.mrb[0].mxu0
      %v4020 = vadd.f32 0.0, %v4019
      %v4021 = vpop.f32.mrb[0].mxu0
      %v4022 = vadd.f32 0.0, %v4021
      %4023 = vmatprep.mubr.f32.mxu0 0.0
      %4024 = vmatmul.mubr.f32.gmra.mrb[0].mxu0 %v2960
      %v4025 = vpop.f32.mrb[0].mxu0
      %v4026 = vadd.f32 0.0, %v4025
      %v4027 = vpop.f32.mrb[0].mxu0
      %v4028 = vadd.f32 0.0, %v4027
      %4029 = vdwg.mxu0
      %4030 = vmatprep.subr.mxu0 %v2927
      %4031 = vmatpush1.msra.mxu0 %v2926
      %4032 = vmatprep.subr.mxu0 %v2915
      %4033 = vmatpush1.msra.mxu0 %v2914
      %4034 = vmatprep.subr.mxu0 %v669
      %4035 = vmatpush1.msra.mxu0 %v669
      %4036 = vmatprep.subr.mxu0 0.0
      %4037 = vmatpush1.msra.mxu0 0.0
      %4038 = vmatprep.subr.mxu0 0.0
      %4039 = vmatpush1.msra.mxu0 0.0
      %4040 = vmatprep.subr.mxu0 0.0
      %4041 = vmatpush1.msra.mxu0 0.0
      %4042 = vmatprep.subr.mxu0 0.0
      %4043 = vmatpush1.msra.mxu0 0.0
      %4044 = vmatprep.subr.mxu0 0.0
      %4045 = vmatpush1.msra.mxu0 0.0
      %4046 = vmatprep.subr.mxu0 0.0
      %4047 = vmatpush1.msra.mxu0 0.0
      %4048 = vmatprep.subr.mxu0 0.0
      %4049 = vmatpush1.msra.mxu0 0.0
      %4050 = vmatprep.subr.mxu0 0.0
      %4051 = vmatpush1.msra.mxu0 0.0
      %4052 = vmatprep.subr.mxu0 0.0
      %4053 = vmatpush1.msra.mxu0 0.0
      %4054 = vmatprep.subr.mxu0 0.0
      %4055 = vmatpush1.msra.mxu0 0.0
      %4056 = vmatprep.subr.mxu0 0.0
      %4057 = vmatpush1.msra.mxu0 0.0
      %4058 = vmatprep.subr.mxu0 0.0
      %4059 = vmatpush1.msra.mxu0 0.0
      %4060 = vmatprep.subr.mxu0 0.0
      %4061 = vmatpush1.msra.mxu0 0.0
      %4062 = vmatprep.subr.mxu0 0.0
      %4063 = vmatpush1.msra.mxu0 0.0
      %4064 = vmatprep.subr.mxu0 0.0
      %4065 = vmatpush1.msra.mxu0 0.0
      %4066 = vmatprep.subr.mxu0 0.0
      %4067 = vmatpush1.msra.mxu0 0.0
      %4068 = vmatprep.subr.mxu0 0.0
      %4069 = vmatpush1.msra.mxu0 0.0
      %4070 = vmatprep.subr.mxu0 0.0
      %4071 = vmatpush1.msra.mxu0 0.0
      %4072 = vmatprep.subr.mxu0 0.0
      %4073 = vmatpush1.msra.mxu0 0.0
      %4074 = vmatprep.subr.mxu0 0.0
      %4075 = vmatpush1.msra.mxu0 0.0
      %4076 = vmatprep.subr.mxu0 0.0
      %4077 = vmatpush1.msra.mxu0 0.0
      %4078 = vmatprep.subr.mxu0 0.0
      %4079 = vmatpush1.msra.mxu0 0.0
      %4080 = vmatprep.subr.mxu0 0.0
      %4081 = vmatpush1.msra.mxu0 0.0
      %4082 = vmatprep.subr.mxu0 0.0
      %4083 = vmatpush1.msra.mxu0 0.0
      %4084 = vmatprep.subr.mxu0 0.0
      %4085 = vmatpush1.msra.mxu0 0.0
      %4086 = vmatprep.subr.mxu0 0.0
      %4087 = vmatpush1.msra.mxu0 0.0
      %4088 = vmatprep.subr.mxu0 0.0
      %4089 = vmatpush1.msra.mxu0 0.0
      %4090 = vmatprep.subr.mxu0 0.0
      %4091 = vmatpush1.msra.mxu0 0.0
      %4092 = vmatprep.subr.mxu0 0.0
      %4093 = vmatpush1.msra.mxu0 0.0
      %4094 = vmatprep.mubr.f32.mxu0 0.0
      %4095 = vmatmul.mubr.f32.gmra.mrb[0].mxu0 %v2951
      %v4096 = vpop.f32.mrb[0].mxu0
      %v4097 = vadd.f32 0.0, %v4096
      %v4098 = vpop.f32.mrb[0].mxu0
      %v4099 = vadd.f32 0.0, %v4098
      %4100 = vmatprep.mubr.f32.mxu0 0.0
      %4101 = vmatmul.mubr.f32.gmra.mrb[0].mxu0 %v2954
      %v4102 = vpop.f32.mrb[0].mxu0
      %v4103 = vadd.f32 0.0, %v4102
      %v4104 = vpop.f32.mrb[0].mxu0
      %v4105 = vadd.f32 0.0, %v4104
      %4106 = vmatprep.mubr.f32.mxu0 0.0
      %4107 = vmatmul.mubr.f32.gmra.mrb[0].mxu0 %v2957
      %v4108 = vpop.f32.mrb[0].mxu0
      %v4109 = vadd.f32 0.0, %v4108
      %v4110 = vpop.f32.mrb[0].mxu0
      %v4111 = vadd.f32 0.0, %v4110
      %4112 = vmatprep.mubr.f32.mxu0 0.0
      %4113 = vmatmul.mubr.f32.gmra.mrb[0].mxu0 %v2960
      %v4114 = vpop.f32.mrb[0].mxu0
      %v4115 = vadd.f32 0.0, %v4114
      %v4116 = vpop.f32.mrb[0].mxu0
      %v4117 = vadd.f32 0.0, %v4116
      %4118 = vdwg.mxu0
      %4119 = vmatprep.subr.mxu0 %v2929
      %4120 = vmatpush1.msra.mxu0 %v2928
      %4121 = vmatprep.subr.mxu0 %v2941
      %4122 = vmatpush1.msra.mxu0 %v2940
      %4123 = vmatprep.subr.mxu0 %v669
      %4124 = vmatpush1.msra.mxu0 %v669
      %4125 = vmatprep.subr.mxu0 0.0
      %4126 = vmatpush1.msra.mxu0 0.0
      %4127 = vmatprep.subr.mxu0 0.0
      %4128 = vmatpush1.msra.mxu0 0.0
      %4129 = vmatprep.subr.mxu0 0.0
      %4130 = vmatpush1.msra.mxu0 0.0
      %4131 = vmatprep.subr.mxu0 0.0
      %4132 = vmatpush1.msra.mxu0 0.0
      %4133 = vmatprep.subr.mxu0 0.0
      %4134 = vmatpush1.msra.mxu0 0.0
      %4135 = vmatprep.subr.mxu0 0.0
      %4136 = vmatpush1.msra.mxu0 0.0
      %4137 = vmatprep.subr.mxu0 0.0
      %4138 = vmatpush1.msra.mxu0 0.0
      %4139 = vmatprep.subr.mxu0 0.0
      %4140 = vmatpush1.msra.mxu0 0.0
      %4141 = vmatprep.subr.mxu0 0.0
      %4142 = vmatpush1.msra.mxu0 0.0
      %4143 = vmatprep.subr.mxu0 0.0
      %4144 = vmatpush1.msra.mxu0 0.0
      %4145 = vmatprep.subr.mxu0 0.0
      %4146 = vmatpush1.msra.mxu0 0.0
      %4147 = vmatprep.subr.mxu0 0.0
      %4148 = vmatpush1.msra.mxu0 0.0
      %4149 = vmatprep.subr.mxu0 0.0
      %4150 = vmatpush1.msra.mxu0 0.0
      %4151 = vmatprep.subr.mxu0 0.0
      %4152 = vmatpush1.msra.mxu0 0.0
      %4153 = vmatprep.subr.mxu0 0.0
      %4154 = vmatpush1.msra.mxu0 0.0
      %4155 = vmatprep.subr.mxu0 0.0
      %4156 = vmatpush1.msra.mxu0 0.0
      %4157 = vmatprep.subr.mxu0 0.0
      %4158 = vmatpush1.msra.mxu0 0.0
      %4159 = vmatprep.subr.mxu0 0.0
      %4160 = vmatpush1.msra.mxu0 0.0
      %4161 = vmatprep.subr.mxu0 0.0
      %4162 = vmatpush1.msra.mxu0 0.0
      %4163 = vmatprep.subr.mxu0 0.0
      %4164 = vmatpush1.msra.mxu0 0.0
      %4165 = vmatprep.subr.mxu0 0.0
      %4166 = vmatpush1.msra.mxu0 0.0
      %4167 = vmatprep.subr.mxu0 0.0
      %4168 = vmatpush1.msra.mxu0 0.0
      %4169 = vmatprep.subr.mxu0 0.0
      %4170 = vmatpush1.msra.mxu0 0.0
      %4171 = vmatprep.subr.mxu0 0.0
      %4172 = vmatpush1.msra.mxu0 0.0
      %4173 = vmatprep.subr.mxu0 0.0
      %4174 = vmatpush1.msra.mxu0 0.0
      %4175 = vmatprep.subr.mxu0 0.0
      %4176 = vmatpush1.msra.mxu0 0.0
      %4177 = vmatprep.subr.mxu0 0.0
      %4178 = vmatpush1.msra.mxu0 0.0
      %4179 = vmatprep.subr.mxu0 0.0
      %4180 = vmatpush1.msra.mxu0 0.0
      %4181 = vmatprep.subr.mxu0 0.0
      %4182 = vmatpush1.msra.mxu0 0.0
      %4183 = vmatprep.mubr.f32.mxu0 0.0
      %4184 = vmatmul.mubr.f32.gmra.mrb[0].mxu0 %v2951
      %v4185 = vpop.f32.mrb[0].mxu0
      %v4186 = vadd.f32 0.0, %v4185
      %v4187 = vpop.f32.mrb[0].mxu0
      %v4188 = vadd.f32 0.0, %v4187
      %4189 = vmatprep.mubr.f32.mxu0 0.0
      %4190 = vmatmul.mubr.f32.gmra.mrb[0].mxu0 %v2954
      %v4191 = vpop.f32.mrb[0].mxu0
      %v4192 = vadd.f32 0.0, %v4191
      %v4193 = vpop.f32.mrb[0].mxu0
      %v4194 = vadd.f32 0.0, %v4193
      %4195 = vmatprep.mubr.f32.mxu0 0.0
      %4196 = vmatmul.mubr.f32.gmra.mrb[0].mxu0 %v2957
      %v4197 = vpop.f32.mrb[0].mxu0
      %v4198 = vadd.f32 0.0, %v4197
      %v4199 = vpop.f32.mrb[0].mxu0
      %v4200 = vadd.f32 0.0, %v4199
      %4201 = vmatprep.mubr.f32.mxu0 0.0
      %4202 = vmatmul.mubr.f32.gmra.mrb[0].mxu0 %v2960
      %v4203 = vpop.f32.mrb[0].mxu0
      %v4204 = vadd.f32 0.0, %v4203
      %v4205 = vpop.f32.mrb[0].mxu0
      %v4206 = vadd.f32 0.0, %v4205
      %4207 = vdwg.mxu0
      %4208 = vmatprep.subr.mxu0 %v2931
      %4209 = vmatpush1.msra.mxu0 %v2930
      %4210 = vmatprep.subr.mxu0 %v2942
      %4211 = vmatpush1.msra.mxu0 %v2911
      %4212 = vmatprep.subr.mxu0 %v669
      %4213 = vmatpush1.msra.mxu0 %v669
      %4214 = vmatprep.subr.mxu0 0.0
      %4215 = vmatpush1.msra.mxu0 0.0
      %4216 = vmatprep.subr.mxu0 0.0
      %4217 = vmatpush1.msra.mxu0 0.0
      %4218 = vmatprep.subr.mxu0 0.0
      %4219 = vmatpush1.msra.mxu0 0.0
      %4220 = vmatprep.subr.mxu0 0.0
      %4221 = vmatpush1.msra.mxu0 0.0
      %4222 = vmatprep.subr.mxu0 0.0
      %4223 = vmatpush1.msra.mxu0 0.0
      %4224 = vmatprep.subr.mxu0 0.0
      %4225 = vmatpush1.msra.mxu0 0.0
      %4226 = vmatprep.subr.mxu0 0.0
      %4227 = vmatpush1.msra.mxu0 0.0
      %4228 = vmatprep.subr.mxu0 0.0
      %4229 = vmatpush1.msra.mxu0 0.0
      %4230 = vmatprep.subr.mxu0 0.0
      %4231 = vmatpush1.msra.mxu0 0.0
      %4232 = vmatprep.subr.mxu0 0.0
      %4233 = vmatpush1.msra.mxu0 0.0
      %4234 = vmatprep.subr.mxu0 0.0
      %4235 = vmatpush1.msra.mxu0 0.0
      %4236 = vmatprep.subr.mxu0 0.0
      %4237 = vmatpush1.msra.mxu0 0.0
      %4238 = vmatprep.subr.mxu0 0.0
      %4239 = vmatpush1.msra.mxu0 0.0
      %4240 = vmatprep.subr.mxu0 0.0
      %4241 = vmatpush1.msra.mxu0 0.0
      %4242 = vmatprep.subr.mxu0 0.0
      %4243 = vmatpush1.msra.mxu0 0.0
      %4244 = vmatprep.subr.mxu0 0.0
      %4245 = vmatpush1.msra.mxu0 0.0
      %4246 = vmatprep.subr.mxu0 0.0
      %4247 = vmatpush1.msra.mxu0 0.0
      %4248 = vmatprep.subr.mxu0 0.0
      %4249 = vmatpush1.msra.mxu0 0.0
      %4250 = vmatprep.subr.mxu0 0.0
      %4251 = vmatpush1.msra.mxu0 0.0
      %4252 = vmatprep.subr.mxu0 0.0
      %4253 = vmatpush1.msra.mxu0 0.0
      %4254 = vmatprep.subr.mxu0 0.0
      %4255 = vmatpush1.msra.mxu0 0.0
      %4256 = vmatprep.subr.mxu0 0.0
      %4257 = vmatpush1.msra.mxu0 0.0
      %4258 = vmatprep.subr.mxu0 0.0
      %4259 = vmatpush1.msra.mxu0 0.0
      %4260 = vmatprep.subr.mxu0 0.0
      %4261 = vmatpush1.msra.mxu0 0.0
      %4262 = vmatprep.subr.mxu0 0.0
      %4263 = vmatpush1.msra.mxu0 0.0
      %4264 = vmatprep.subr.mxu0 0.0
      %4265 = vmatpush1.msra.mxu0 0.0
      %4266 = vmatprep.subr.mxu0 0.0
      %4267 = vmatpush1.msra.mxu0 0.0
      %4268 = vmatprep.subr.mxu0 0.0
      %4269 = vmatpush1.msra.mxu0 0.0
      %4270 = vmatprep.subr.mxu0 0.0
      %4271 = vmatpush1.msra.mxu0 0.0
      %4272 = vmatprep.mubr.f32.mxu0 0.0
      %4273 = vmatmul.mubr.f32.gmra.mrb[0].mxu0 %v2951
      %v4274 = vpop.f32.mrb[0].mxu0
      %v4275 = vadd.f32 0.0, %v4274
      %v4276 = vpop.f32.mrb[0].mxu0
      %v4277 = vadd.f32 0.0, %v4276
      %4278 = vmatprep.mubr.f32.mxu0 0.0
      %4279 = vmatmul.mubr.f32.gmra.mrb[0].mxu0 %v2954
      %v4280 = vpop.f32.mrb[0].mxu0
      %v4281 = vadd.f32 0.0, %v4280
      %v4282 = vpop.f32.mrb[0].mxu0
      %v4283 = vadd.f32 0.0, %v4282
      %4284 = vmatprep.mubr.f32.mxu0 0.0
      %4285 = vmatmul.mubr.f32.gmra.mrb[0].mxu0 %v2957
      %v4286 = vpop.f32.mrb[0].mxu0
      %v4287 = vadd.f32 0.0, %v4286
      %v4288 = vpop.f32.mrb[0].mxu0
      %v4289 = vadd.f32 0.0, %v4288
      %4290 = vmatprep.mubr.f32.mxu0 0.0
      %4291 = vmatmul.mubr.f32.gmra.mrb[0].mxu0 %v2960
      %v4292 = vpop.f32.mrb[0].mxu0
      %v4293 = vadd.f32 0.0, %v4292
      %v4294 = vpop.f32.mrb[0].mxu0
      %v4295 = vadd.f32 0.0, %v4294
      %4296 = vdwg.mxu0
      %4297 = vmatprep.subr.mxu0 %v2933
      %4298 = vmatpush1.msra.mxu0 %v2932
      %4299 = vmatprep.subr.mxu0 %v2944
      %4300 = vmatpush1.msra.mxu0 %v2943
      %4301 = vmatprep.subr.mxu0 %v669
      %4302 = vmatpush1.msra.mxu0 %v669
      %4303 = vmatprep.subr.mxu0 0.0
      %4304 = vmatpush1.msra.mxu0 0.0
      %4305 = vmatprep.subr.mxu0 0.0
      %4306 = vmatpush1.msra.mxu0 0.0
      %4307 = vmatprep.subr.mxu0 0.0
      %4308 = vmatpush1.msra.mxu0 0.0
      %4309 = vmatprep.subr.mxu0 0.0
      %4310 = vmatpush1.msra.mxu0 0.0
      %4311 = vmatprep.subr.mxu0 0.0
      %4312 = vmatpush1.msra.mxu0 0.0
      %4313 = vmatprep.subr.mxu0 0.0
      %4314 = vmatpush1.msra.mxu0 0.0
      %4315 = vmatprep.subr.mxu0 0.0
      %4316 = vmatpush1.msra.mxu0 0.0
      %4317 = vmatprep.subr.mxu0 0.0
      %4318 = vmatpush1.msra.mxu0 0.0
      %4319 = vmatprep.subr.mxu0 0.0
      %4320 = vmatpush1.msra.mxu0 0.0
      %4321 = vmatprep.subr.mxu0 0.0
      %4322 = vmatpush1.msra.mxu0 0.0
      %4323 = vmatprep.subr.mxu0 0.0
      %4324 = vmatpush1.msra.mxu0 0.0
      %4325 = vmatprep.subr.mxu0 0.0
      %4326 = vmatpush1.msra.mxu0 0.0
      %4327 = vmatprep.subr.mxu0 0.0
      %4328 = vmatpush1.msra.mxu0 0.0
      %4329 = vmatprep.subr.mxu0 0.0
      %4330 = vmatpush1.msra.mxu0 0.0
      %4331 = vmatprep.subr.mxu0 0.0
      %4332 = vmatpush1.msra.mxu0 0.0
      %4333 = vmatprep.subr.mxu0 0.0
      %4334 = vmatpush1.msra.mxu0 0.0
      %4335 = vmatprep.subr.mxu0 0.0
      %4336 = vmatpush1.msra.mxu0 0.0
      %4337 = vmatprep.subr.mxu0 0.0
      %4338 = vmatpush1.msra.mxu0 0.0
      %4339 = vmatprep.subr.mxu0 0.0
      %4340 = vmatpush1.msra.mxu0 0.0
      %4341 = vmatprep.subr.mxu0 0.0
      %4342 = vmatpush1.msra.mxu0 0.0
      %4343 = vmatprep.subr.mxu0 0.0
      %4344 = vmatpush1.msra.mxu0 0.0
      %4345 = vmatprep.subr.mxu0 0.0
      %4346 = vmatpush1.msra.mxu0 0.0
      %4347 = vmatprep.subr.mxu0 0.0
      %4348 = vmatpush1.msra.mxu0 0.0
      %4349 = vmatprep.subr.mxu0 0.0
      %4350 = vmatpush1.msra.mxu0 0.0
      %4351 = vmatprep.subr.mxu0 0.0
      %4352 = vmatpush1.msra.mxu0 0.0
      %4353 = vmatprep.subr.mxu0 0.0
      %4354 = vmatpush1.msra.mxu0 0.0
      %4355 = vmatprep.subr.mxu0 0.0
      %4356 = vmatpush1.msra.mxu0 0.0
      %4357 = vmatprep.subr.mxu0 0.0
      %4358 = vmatpush1.msra.mxu0 0.0
      %4359 = vmatprep.subr.mxu0 0.0
      %4360 = vmatpush1.msra.mxu0 0.0
      %4361 = vmatprep.mubr.f32.mxu0 0.0
      %4362 = vmatmul.mubr.f32.gmra.mrb[0].mxu0 %v2951
      %v4363 = vpop.f32.mrb[0].mxu0
      %v4364 = vadd.f32 0.0, %v4363
      %v4365 = vpop.f32.mrb[0].mxu0
      %v4366 = vadd.f32 0.0, %v4365
      %4367 = vmatprep.mubr.f32.mxu0 0.0
      %4368 = vmatmul.mubr.f32.gmra.mrb[0].mxu0 %v2954
      %v4369 = vpop.f32.mrb[0].mxu0
      %v4370 = vadd.f32 0.0, %v4369
      %v4371 = vpop.f32.mrb[0].mxu0
      %v4372 = vadd.f32 0.0, %v4371
      %4373 = vmatprep.mubr.f32.mxu0 0.0
      %4374 = vmatmul.mubr.f32.gmra.mrb[0].mxu0 %v2957
      %v4375 = vpop.f32.mrb[0].mxu0
      %v4376 = vadd.f32 0.0, %v4375
      %v4377 = vpop.f32.mrb[0].mxu0
      %v4378 = vadd.f32 0.0, %v4377
      %4379 = vmatprep.mubr.f32.mxu0 0.0
      %4380 = vmatmul.mubr.f32.gmra.mrb[0].mxu0 %v2960
      %v4381 = vpop.f32.mrb[0].mxu0
      %v4382 = vadd.f32 0.0, %v4381
      %v4383 = vpop.f32.mrb[0].mxu0
      %v4384 = vadd.f32 0.0, %v4383
      %4385 = vdwg.mxu0
      %v4418 = vcombine.low %v3029, %v3031
      %v4419 = vcombine.low %v3118, %v3120
      %v4420 = vcombine.low %v3207, %v3209
      %v4421 = vcombine.low %v3296, %v3298
      %v4422 = vcombine.low %v3385, %v3387
      %v4423 = vcombine.low %v3474, %v3476
      %v4424 = vcombine.low %v3563, %v3565
      %v4425 = vcombine.low %v3652, %v3654
      %v4426 = vcombine.low %v3741, %v3743
      %v4427 = vcombine.low %v3830, %v3832
      %v4428 = vcombine.low %v3919, %v3921
      %v4429 = vcombine.low %v4008, %v4010
      %v4430 = vcombine.low %v4097, %v4099
      %v4431 = vcombine.low %v4186, %v4188
      %v4432 = vcombine.low %v4275, %v4277
      %v4433 = vcombine.low %v4364, %v4366
      %4450 = vst [vmem:[%s251] sm:$0x77] %v4418
      %4451 = vst [vmem:[%s251 + $0x8] sm:$0x77] %v4419
      %4452 = vst [vmem:[%s251 + $0x10] sm:$0x77] %v4420
      %4453 = vst [vmem:[%s251 + $0x18] sm:$0x77] %v4421
      %4454 = vst [vmem:[%s251 + $0x20] sm:$0x77] %v4422
      %4455 = vst [vmem:[%s251 + $0x28] sm:$0x77] %v4423
      %4456 = vst [vmem:[%s251 + $0x30] sm:$0x77] %v4424
      %4457 = vst [vmem:[%s251 + $0x38] sm:$0x77] %v4425
      %4458 = vst [vmem:[%s251 + $0x40] sm:$0x77] %v4426
      %4459 = vst [vmem:[%s251 + $0x48] sm:$0x77] %v4427
      %4460 = vst [vmem:[%s251 + $0x50] sm:$0x77] %v4428
      %4461 = vst [vmem:[%s251 + $0x58] sm:$0x77] %v4429
      %4462 = vst [vmem:[%s251 + $0x60] sm:$0x77] %v4430
      %4463 = vst [vmem:[%s251 + $0x68] sm:$0x77] %v4431
      %4464 = vst [vmem:[%s251 + $0x70] sm:$0x77] %v4432
      %4465 = vst [vmem:[%s251 + $0x78] sm:$0x77] %v4433
      %v4498 = vcombine.low %v3035, %v3037
      %v4499 = vcombine.low %v3124, %v3126
      %v4500 = vcombine.low %v3213, %v3215
      %v4501 = vcombine.low %v3302, %v3304
      %v4502 = vcombine.low %v3391, %v3393
      %v4503 = vcombine.low %v3480, %v3482
      %v4504 = vcombine.low %v3569, %v3571
      %v4505 = vcombine.low %v3658, %v3660
      %v4506 = vcombine.low %v3747, %v3749
      %v4507 = vcombine.low %v3836, %v3838
      %v4508 = vcombine.low %v3925, %v3927
      %v4509 = vcombine.low %v4014, %v4016
      %v4510 = vcombine.low %v4103, %v4105
      %v4511 = vcombine.low %v4192, %v4194
      %v4512 = vcombine.low %v4281, %v4283
      %v4513 = vcombine.low %v4370, %v4372
      %4530 = vst [vmem:[%s251 + $0x80] sm:$0x77] %v4498
      %4531 = vst [vmem:[%s251 + $0x88] sm:$0x77] %v4499
      %4532 = vst [vmem:[%s251 + $0x90] sm:$0x77] %v4500
      %4533 = vst [vmem:[%s251 + $0x98] sm:$0x77] %v4501
      %4534 = vst [vmem:[%s251 + $0xa0] sm:$0x77] %v4502
      %4535 = vst [vmem:[%s251 + $0xa8] sm:$0x77] %v4503
      %4536 = vst [vmem:[%s251 + $0xb0] sm:$0x77] %v4504
      %4537 = vst [vmem:[%s251 + $0xb8] sm:$0x77] %v4505
      %4538 = vst [vmem:[%s251 + $0xc0] sm:$0x77] %v4506
      %4539 = vst [vmem:[%s251 + $0xc8] sm:$0x77] %v4507
      %4540 = vst [vmem:[%s251 + $0xd0] sm:$0x77] %v4508
      %4541 = vst [vmem:[%s251 + $0xd8] sm:$0x77] %v4509
      %4542 = vst [vmem:[%s251 + $0xe0] sm:$0x77] %v4510
      %4543 = vst [vmem:[%s251 + $0xe8] sm:$0x77] %v4511
      %4544 = vst [vmem:[%s251 + $0xf0] sm:$0x77] %v4512
      %4545 = vst [vmem:[%s251 + $0xf8] sm:$0x77] %v4513
      %v4578 = vcombine.low %v3041, %v3043
      %v4579 = vcombine.low %v3130, %v3132
      %v4580 = vcombine.low %v3219, %v3221
      %v4581 = vcombine.low %v3308, %v3310
      %v4582 = vcombine.low %v3397, %v3399
      %v4583 = vcombine.low %v3486, %v3488
      %v4584 = vcombine.low %v3575, %v3577
      %v4585 = vcombine.low %v3664, %v3666
      %v4586 = vcombine.low %v3753, %v3755
      %v4587 = vcombine.low %v3842, %v3844
      %v4588 = vcombine.low %v3931, %v3933
      %v4589 = vcombine.low %v4020, %v4022
      %v4590 = vcombine.low %v4109, %v4111
      %v4591 = vcombine.low %v4198, %v4200
      %v4592 = vcombine.low %v4287, %v4289
      %v4593 = vcombine.low %v4376, %v4378
      %4610 = vst [vmem:[%s251 + $0x100] sm:$0x77] %v4578
      %4611 = vst [vmem:[%s251 + $0x108] sm:$0x77] %v4579
      %4612 = vst [vmem:[%s251 + $0x110] sm:$0x77] %v4580
      %4613 = vst [vmem:[%s251 + $0x118] sm:$0x77] %v4581
      %4614 = vst [vmem:[%s251 + $0x120] sm:$0x77] %v4582
      %4615 = vst [vmem:[%s251 + $0x128] sm:$0x77] %v4583
      %4616 = vst [vmem:[%s251 + $0x130] sm:$0x77] %v4584
      %4617 = vst [vmem:[%s251 + $0x138] sm:$0x77] %v4585
      %4618 = vst [vmem:[%s251 + $0x140] sm:$0x77] %v4586
      %4619 = vst [vmem:[%s251 + $0x148] sm:$0x77] %v4587
      %4620 = vst [vmem:[%s251 + $0x150] sm:$0x77] %v4588
      %4621 = vst [vmem:[%s251 + $0x158] sm:$0x77] %v4589
      %4622 = vst [vmem:[%s251 + $0x160] sm:$0x77] %v4590
      %4623 = vst [vmem:[%s251 + $0x168] sm:$0x77] %v4591
      %4624 = vst [vmem:[%s251 + $0x170] sm:$0x77] %v4592
      %4625 = vst [vmem:[%s251 + $0x178] sm:$0x77] %v4593
      %v4658 = vcombine.low %v3047, %v3049
      %v4659 = vcombine.low %v3136, %v3138
      %v4660 = vcombine.low %v3225, %v3227
      %v4661 = vcombine.low %v3314, %v3316
      %v4662 = vcombine.low %v3403, %v3405
      %v4663 = vcombine.low %v3492, %v3494
      %v4664 = vcombine.low %v3581, %v3583
      %v4665 = vcombine.low %v3670, %v3672
      %v4666 = vcombine.low %v3759, %v3761
      %v4667 = vcombine.low %v3848, %v3850
      %v4668 = vcombine.low %v3937, %v3939
      %v4669 = vcombine.low %v4026, %v4028
      %v4670 = vcombine.low %v4115, %v4117
      %v4671 = vcombine.low %v4204, %v4206
      %v4672 = vcombine.low %v4293, %v4295
      %v4673 = vcombine.low %v4382, %v4384
      %4690 = vst [vmem:[%s251 + $0x180] sm:$0x77] %v4658
      %4691 = vst [vmem:[%s251 + $0x188] sm:$0x77] %v4659
      %4692 = vst [vmem:[%s251 + $0x190] sm:$0x77] %v4660
      %4693 = vst [vmem:[%s251 + $0x198] sm:$0x77] %v4661
      %4694 = vst [vmem:[%s251 + $0x1a0] sm:$0x77] %v4662
      %4695 = vst [vmem:[%s251 + $0x1a8] sm:$0x77] %v4663
      %4696 = vst [vmem:[%s251 + $0x1b0] sm:$0x77] %v4664
      %4697 = vst [vmem:[%s251 + $0x1b8] sm:$0x77] %v4665
      %4698 = vst [vmem:[%s251 + $0x1c0] sm:$0x77] %v4666
      %4699 = vst [vmem:[%s251 + $0x1c8] sm:$0x77] %v4667
      %4700 = vst [vmem:[%s251 + $0x1d0] sm:$0x77] %v4668
      %4701 = vst [vmem:[%s251 + $0x1d8] sm:$0x77] %v4669
      %4702 = vst [vmem:[%s251 + $0x1e0] sm:$0x77] %v4670
      %4703 = vst [vmem:[%s251 + $0x1e8] sm:$0x77] %v4671
      %4704 = vst [vmem:[%s251 + $0x1f0] sm:$0x77] %v4672
      %4705 = vst [vmem:[%s251 + $0x1f8] sm:$0x77] %v4673
      %p4706 = scmp.lt.s32.totalorder %s17, 1
      %s4707 = scalar_select %p4706, %s17, 1
      %s4708 = smul.addr %s4707, 128
      %s4709 = smul.addr %s4708, 4
      %s4710 = scalar_lea.vmem %s6, %s4709
      // Predicated region
      $region45: #{decoder_forward.1} parent=43 // pred_check
        %p4711 = pneg %p166
      $region46: #{decoder_forward.1} parent=43 // pred_check_branch
        %4713 = sbr.rel (%p4711) target = $region48
      $region47: #{decoder_forward.1} parent=43 // pred_region
        _
      $region48: #{decoder_forward.1} parent=43 // pred_fallthru
        _
    $region44: #{decoder_forward.1} parent=5 // pred_fallthru
      _
    %p4714 = scmp.le.s32.totalorder 2, %s12
    // Predicated region
    $region49: #{decoder_forward.1} parent=5 // pred_check
      %p4715 = pneg %p4714
    $region50: #{decoder_forward.1} parent=5 // pred_check_branch
      %4717 = sbr.rel (%p4715) target = $region52
    $region51: #{decoder_forward.1} parent=5 // pred_region
      %s4718 = ssub.s32 %s12, 2
      // Predicated region
      $region53: #{decoder_forward.1} parent=51 // pred_check
        %p4719 = pneg %p172
      $region54: #{decoder_forward.1} parent=51 // pred_check_branch
        %4721 = sbr.rel (%p4719) target = $region56
      $region55: #{decoder_forward.1} parent=51 // pred_region
        %p4722 = scmp.lt.s32.totalorder %s18, 1
        %s4723 = scalar_select %p4722, %s18, 1
        %s4724 = smul.addr %s4723, 128
        %s4725 = smul.addr %s4724, 4
        %s4726 = scalar_lea.vmem %s6, %s4725
      $region56: #{decoder_forward.1} parent=51 // pred_fallthru
        _
    $region52: #{decoder_forward.1} parent=5 // pred_fallthru
      _
  $region6: #{decoder_forward.1} parent=0 // loop_footer
    %s16 = sadd.s32 1, %s12
  $region7: #{decoder_forward.1} parent=0 // loop_footer_branch
    %11 = sbr.rel target = $region3
  $region8: #{decoder_forward.1} parent=0 // loop_exit
    _

</llo_original>
